<compile_context>
chip_gen: v6e
topology: v6e:2x2x1
jax: 0.10.0
libtpu: 0.0.40
codegen_flags: <defaults>
</compile_context>

<pallas_src>
import functools

import jax
import jax.numpy as jnp
from jax.experimental import pallas as pl
from jax.experimental.pallas import tpu as pltpu


def _conv_bn_relu3_kernel(x_ref, w_ref, pool_ref, g_ref, b_ref, o_ref,
                          *, N, Dp, Do, kD, eps, inv_m, do_act):
    """Whole problem resident in VMEM (small demo shapes); no grid.

    x_ref    : (N*Dp, KL)      lane-packed, zero-padded input; KL = pad128(Hp*Wp*Cin)
    w_ref    : (kD, KL, NOUT)  per-D-tap block-Toeplitz-along-(H,W) conv weight
    pool_ref : (NOUT, NOUT)    0/1 same-output-channel lane-pooling matrix
    g_ref    : (1, NOUT)       gamma tiled across the (Ho, Wo) lane groups
    b_ref    : (1, NOUT)       beta  tiled across the (Ho, Wo) lane groups
    o_ref    : (N*Do, NOUT)    output slab, rows = (n, do), lanes = (ho, wo, co)
    """
    NOUT = o_ref.shape[1]
    M = N * Do

    # --- Conv3d as kD accumulating MXU contractions (K = KL each).
    # Each tap operand is N contiguous (Do, KL) row blocks of the packed input.
    acc = jnp.zeros((M, NOUT), jnp.float32)
    for kd in range(kD):
        taps = [x_ref[n * Dp + kd: n * Dp + kd + Do, :] for n in range(N)]
        xt = taps[0] if N == 1 else jnp.concatenate(taps, axis=0)   # (M, KL)
        acc = acc + jnp.dot(xt, w_ref[kd], preferred_element_type=jnp.float32)
    # Conv bias intentionally omitted: a per-channel constant shift is
    # cancelled exactly by the training-mode BN mean subtraction below.

    # --- BatchNorm3d, training-mode batch stats over all N*D*H*W positions.
    # Reduce rows with a cheap axis-0 sum, fold the per-channel lane groups
    # (lanes ordered (ho, wo, co), period Cout) with one tiny pool matmul, and
    # broadcast the (1, NOUT) row back over rows on the VPU.
    pool = pool_ref[...]
    sum_row = jnp.sum(acc, axis=0, keepdims=True)                     # (1, NOUT)
    mean_row = jnp.dot(sum_row, pool,
                       preferred_element_type=jnp.float32) * inv_m    # (1, NOUT)
    cen = acc - mean_row
    ss_row = jnp.sum(cen * cen, axis=0, keepdims=True)
    var_row = jnp.dot(ss_row, pool,
                      preferred_element_type=jnp.float32) * inv_m     # biased var
    scale_row = jax.lax.rsqrt(var_row + eps) * g_ref[...]             # EUP: 1 row
    y = cen * scale_row + b_ref[...]

    if do_act:
        y = jnp.maximum(y, 0.0)                                        # ReLU

    o_ref[...] = y.astype(o_ref.dtype)


def conv_bn_relu3(x_ncdhw, weight, bias, gamma, beta, *, ksize, padding,
                  do_act=True, eps=1e-5, mxu_dtype=jnp.bfloat16):
    """Forward of ConvBnRelu3.  x_ncdhw: (N, Cin, D, H, W), PyTorch layout.

    mxu_dtype: operand dtype for the conv contraction (bf16 recommended on all
    TPU generations); the accumulator and BN math stay in f32.
    """
    N, Cin, D, H, W = x_ncdhw.shape
    Cout = weight.shape[0]
    kD = kH = kW = ksize
    p = padding
    Do, Ho, Wo = D + 2 * p - kD + 1, H + 2 * p - kH + 1, W + 2 * p - kW + 1
    Dp, Hp, Wp = D + 2 * p, H + 2 * p, W + 2 * p
    K_raw = Hp * Wp * Cin
    KL = ((K_raw + 127) // 128) * 128          # pad each D-tap K block to 128 lanes
    NOUT = Ho * Wo * Cout                      # 512 at demo shape -> lane-dense
    M = N * Do
    compute_dtype = x_ncdhw.dtype if mxu_dtype is None else mxu_dtype

    # ---- input layout plumbing (pure transpose/pad/reshape; no compute) ----
    x = jnp.transpose(x_ncdhw, (0, 2, 3, 4, 1))                  # NCDHW -> NDHWC
    x = jnp.pad(x, ((0, 0), (p, p), (p, p), (p, p), (0, 0)))     # (N,Dp,Hp,Wp,Cin)
    x2d = x.reshape(N * Dp, K_raw)
    x2d = jnp.pad(x2d, ((0, 0), (0, KL - K_raw))).astype(compute_dtype)

    # ---- per-D-tap block-Toeplitz-along-(H, W) weight ----
    # w_toep[kd, (hp*Wp+wp)*Cin+ci, (ho*Wo+wo)*Cout+co] =
    #     weight[co, ci, kd, hp-ho, wp-wo]   if 0<=hp-ho<kH and 0<=wp-wo<kW else 0
    w_perm = jnp.transpose(weight, (2, 3, 4, 1, 0))              # (kD,kH,kW,Cin,Cout)
    kh_idx = jnp.arange(Hp)[:, None] - jnp.arange(Ho)[None, :]   # (Hp, Ho)
    kw_idx = jnp.arange(Wp)[:, None] - jnp.arange(Wo)[None, :]   # (Wp, Wo)
    vh = (kh_idx >= 0) & (kh_idx < kH)
    vw = (kw_idx >= 0) & (kw_idx < kW)
    g = jnp.take(w_perm, jnp.clip(kh_idx, 0, kH - 1), axis=1)    # (kD,Hp,Ho,kW,Cin,Cout)
    g = jnp.take(g, jnp.clip(kw_idx, 0, kW - 1), axis=3)         # (kD,Hp,Ho,Wp,Wo,Cin,Cout)
    mask = (vh[None, :, :, None, None, None, None]
            & vw[None, None, None, :, :, None, None])
    g = jnp.where(mask, g, 0.0)
    w_toep = jnp.transpose(g, (0, 1, 3, 5, 2, 4, 6)).reshape(kD, K_raw, NOUT)
    w_toep = jnp.pad(w_toep, ((0, 0), (0, KL - K_raw), (0, 0))).astype(compute_dtype)

    # 0/1 channel-pooling matrix: output lanes ordered (ho, wo, co), co fastest;
    # pool[j, j'] = 1 iff j and j' belong to the same output channel.
    lane = jnp.arange(NOUT)
    pool = (lane[:, None] % Cout == lane[None, :] % Cout).astype(jnp.float32)

    # BN affine params, tiled across the (Ho, Wo) lane groups.
    g_row = jnp.tile(gamma.reshape(1, Cout).astype(jnp.float32), (1, Ho * Wo))
    b_row = jnp.tile(beta.reshape(1, Cout).astype(jnp.float32), (1, Ho * Wo))

    # Conv bias is not shipped: cancelled exactly by the train-mode BN mean
    # subtraction, so the forward output is unchanged.
    del bias

    kernel = functools.partial(
        _conv_bn_relu3_kernel,
        N=N, Dp=Dp, Do=Do, kD=kD,
        eps=float(eps), inv_m=1.0 / float(N * Do * Ho * Wo), do_act=do_act)

    itemsize = jnp.dtype(compute_dtype).itemsize
    cost = pl.CostEstimate(
        flops=int(2.0 * M * (kD * KL) * NOUT        # conv contraction
                  + 6.0 * M * NOUT                  # BN center/scale/shift/relu
                  + 2.0 * 2.0 * NOUT * NOUT),       # two (1,NOUT)@(NOUT,NOUT) pools
        transcendentals=int(NOUT),                  # rsqrt on one row
        bytes_accessed=int(x2d.size * itemsize + w_toep.size * itemsize
                           + pool.size * 4 + 2 * NOUT * 4
                           + M * NOUT * jnp.dtype(x_ncdhw.dtype).itemsize))

    out_slab = pl.pallas_call(
        kernel,
        out_shape=jax.ShapeDtypeStruct((M, NOUT), x_ncdhw.dtype),
        in_specs=[pl.BlockSpec(memory_space=pltpu.MemorySpace.VMEM)] * 5,
        out_specs=pl.BlockSpec(memory_space=pltpu.MemorySpace.VMEM),
        cost_estimate=cost,
    )(x2d, w_toep, pool, g_row, b_row)

    # (N*Do, Ho*Wo*Cout) row-major is exactly NDHWC; back to PyTorch NCDHW.
    out = out_slab.reshape(N, Do, Ho, Wo, Cout)
    return jnp.transpose(out, (0, 4, 1, 2, 3))


if __name__ == "__main__":
    key = jax.random.PRNGKey(0)
    k_x, k_w, k_b, k_g, k_beta = jax.random.split(key, 5)

    # Small shapes consistent with ConvBnRelu3(in_channels=4, out_channels=8,
    # ksize=3, padding=1) on a (2, 4, 8, 8, 8) NCDHW volume.
    N, Cin, D, H, W = 2, 4, 8, 8, 8
    Cout, ksize, padding = 8, 3, 1

    x = jax.random.normal(k_x, (N, Cin, D, H, W), jnp.float32)
    weight = 0.1 * jax.random.normal(k_w, (Cout, Cin, ksize, ksize, ksize),
                                     jnp.float32)
    bias = 0.1 * jax.random.normal(k_b, (Cout,), jnp.float32)
    gamma = 1.0 + 0.1 * jax.random.normal(k_g, (Cout,), jnp.float32)
    beta = 0.1 * jax.random.normal(k_beta, (Cout,), jnp.float32)

    out = conv_bn_relu3(x, weight, bias, gamma, beta,
                        ksize=ksize, padding=padding, do_act=True)
    out = jax.block_until_ready(out)
    assert out.shape == (N, Cout, D, H, W), out.shape

    # Self-check against a pure-JAX f32 reference (Conv3d + train-mode BN +
    # ReLU).  The kernel runs the conv contraction with bf16 MXU operands, so
    # the tolerance is loosened accordingly (statistics stay in f32).
    ref_conv = jax.lax.conv_general_dilated(
        x, weight, window_strides=(1, 1, 1),
        padding=[(padding, padding)] * 3,
        dimension_numbers=("NCDHW", "OIDHW", "NCDHW"),
        precision=jax.lax.Precision.HIGHEST)
    ref_conv = ref_conv + bias.reshape(1, Cout, 1, 1, 1)
    mu = jnp.mean(ref_conv, axis=(0, 2, 3, 4), keepdims=True)
    var = jnp.var(ref_conv, axis=(0, 2, 3, 4), keepdims=True)
    ref = (ref_conv - mu) * jax.lax.rsqrt(var + 1e-5)
    ref = ref * gamma.reshape(1, Cout, 1, 1, 1) + beta.reshape(1, Cout, 1, 1, 1)
    ref = jnp.maximum(ref, 0.0)
    err = float(jnp.max(jnp.abs(out - ref)))
    assert err < 5e-2, err

    print("KERNEL_OK")
</pallas_src>

<mosaic_0001>
module attributes {stable_mosaic.version = 11 : i64} {
  func.func @_conv_bn_relu3_kernel(%arg0: memref<20x512xbf16, #tpu.memory_space<vmem>>, %arg1: memref<3x512x512xbf16, #tpu.memory_space<vmem>>, %arg2: memref<512x512xf32, #tpu.memory_space<vmem>>, %arg3: memref<1x512xf32, #tpu.memory_space<vmem>>, %arg4: memref<1x512xf32, #tpu.memory_space<vmem>>, %arg5: memref<16x512xf32, #tpu.memory_space<vmem>>) attributes {dimension_semantics = [], scalar_prefetch = 0 : i64, scratch_operands = 0 : i64, tpu.core_type = #tpu.core_type<tc>} {
    %cst = arith.constant 0.000000e+00 : f32
    %0 = vector.broadcast %cst : f32 to vector<16x512xf32>
    %c0 = arith.constant 0 : index
    %c0_0 = arith.constant 0 : index
    %1 = vector.load %arg0[%c0, %c0_0] : memref<20x512xbf16, #tpu.memory_space<vmem>>, vector<8x512xbf16>
    %c10 = arith.constant 10 : index
    %c0_1 = arith.constant 0 : index
    %2 = vector.load %arg0[%c10, %c0_1] : memref<20x512xbf16, #tpu.memory_space<vmem>>, vector<8x512xbf16>
    %3 = tpu.concatenate %1, %2 in 0 : vector<8x512xbf16>, vector<8x512xbf16> -> vector<16x512xbf16>
    %c0_2 = arith.constant 0 : index
    %c0_3 = arith.constant 0 : index
    %c0_4 = arith.constant 0 : index
    %4 = vector.load %arg1[%c0_2, %c0_3, %c0_4] : memref<3x512x512xbf16, #tpu.memory_space<vmem>>, vector<1x512x512xbf16>
    %5 = vector.shape_cast %4 : vector<1x512x512xbf16> to vector<512x512xbf16>
    %cst_5 = arith.constant dense<0.000000e+00> : vector<16x512xf32>
    %6 = tpu.matmul %3, %5, %cst_5 {dimension_numbers = #tpu.dot_dimension_numbers<[1], [0], [0], [1], [0, 0, 1, 1], [], []>} : vector<16x512xbf16>, vector<512x512xbf16>, vector<16x512xf32> -> vector<16x512xf32>
    %7 = arith.addf %0, %6 : vector<16x512xf32>
    %c1 = arith.constant 1 : index
    %c0_6 = arith.constant 0 : index
    %8 = vector.load %arg0[%c1, %c0_6] : memref<20x512xbf16, #tpu.memory_space<vmem>>, vector<8x512xbf16>
    %c11 = arith.constant 11 : index
    %c0_7 = arith.constant 0 : index
    %9 = vector.load %arg0[%c11, %c0_7] : memref<20x512xbf16, #tpu.memory_space<vmem>>, vector<8x512xbf16>
    %10 = tpu.concatenate %8, %9 in 0 : vector<8x512xbf16>, vector<8x512xbf16> -> vector<16x512xbf16>
    %c1_8 = arith.constant 1 : index
    %c0_9 = arith.constant 0 : index
    %c0_10 = arith.constant 0 : index
    %11 = vector.load %arg1[%c1_8, %c0_9, %c0_10] : memref<3x512x512xbf16, #tpu.memory_space<vmem>>, vector<1x512x512xbf16>
    %12 = vector.shape_cast %11 : vector<1x512x512xbf16> to vector<512x512xbf16>
    %cst_11 = arith.constant dense<0.000000e+00> : vector<16x512xf32>
    %13 = tpu.matmul %10, %12, %cst_11 {dimension_numbers = #tpu.dot_dimension_numbers<[1], [0], [0], [1], [0, 0, 1, 1], [], []>} : vector<16x512xbf16>, vector<512x512xbf16>, vector<16x512xf32> -> vector<16x512xf32>
    %14 = arith.addf %7, %13 : vector<16x512xf32>
    %c2 = arith.constant 2 : index
    %c0_12 = arith.constant 0 : index
    %15 = vector.load %arg0[%c2, %c0_12] : memref<20x512xbf16, #tpu.memory_space<vmem>>, vector<8x512xbf16>
    %c12 = arith.constant 12 : index
    %c0_13 = arith.constant 0 : index
    %16 = vector.load %arg0[%c12, %c0_13] : memref<20x512xbf16, #tpu.memory_space<vmem>>, vector<8x512xbf16>
    %17 = tpu.concatenate %15, %16 in 0 : vector<8x512xbf16>, vector<8x512xbf16> -> vector<16x512xbf16>
    %c2_14 = arith.constant 2 : index
    %c0_15 = arith.constant 0 : index
    %c0_16 = arith.constant 0 : index
    %18 = vector.load %arg1[%c2_14, %c0_15, %c0_16] : memref<3x512x512xbf16, #tpu.memory_space<vmem>>, vector<1x512x512xbf16>
    %19 = vector.shape_cast %18 : vector<1x512x512xbf16> to vector<512x512xbf16>
    %cst_17 = arith.constant dense<0.000000e+00> : vector<16x512xf32>
    %20 = tpu.matmul %17, %19, %cst_17 {dimension_numbers = #tpu.dot_dimension_numbers<[1], [0], [0], [1], [0, 0, 1, 1], [], []>} : vector<16x512xbf16>, vector<512x512xbf16>, vector<16x512xf32> -> vector<16x512xf32>
    %21 = arith.addf %14, %20 : vector<16x512xf32>
    %c0_18 = arith.constant 0 : index
    %c0_19 = arith.constant 0 : index
    %22 = vector.load %arg2[%c0_18, %c0_19] : memref<512x512xf32, #tpu.memory_space<vmem>>, vector<512x512xf32>
    %cst_20 = arith.constant dense<0.000000e+00> : vector<512xf32>
    %23 = vector.multi_reduction <add>, %21, %cst_20 [0] : vector<16x512xf32> to vector<512xf32>
    %24 = vector.shape_cast %23 : vector<512xf32> to vector<1x512xf32>
    %cst_21 = arith.constant dense<0.000000e+00> : vector<1x512xf32>
    %25 = tpu.matmul %24, %22, %cst_21 {dimension_numbers = #tpu.dot_dimension_numbers<[1], [0], [0], [1], [0, 0, 1, 1], [], []>} : vector<1x512xf32>, vector<512x512xf32>, vector<1x512xf32> -> vector<1x512xf32>
    %cst_22 = arith.constant 9.765625E-4 : f32
    %26 = vector.broadcast %cst_22 : f32 to vector<1x512xf32>
    %27 = arith.mulf %25, %26 : vector<1x512xf32>
    %28 = vector.broadcast %27 : vector<1x512xf32> to vector<16x512xf32>
    %29 = arith.subf %21, %28 : vector<16x512xf32>
    %30 = arith.mulf %29, %29 : vector<16x512xf32>
    %cst_23 = arith.constant dense<0.000000e+00> : vector<512xf32>
    %31 = vector.multi_reduction <add>, %30, %cst_23 [0] : vector<16x512xf32> to vector<512xf32>
    %32 = vector.shape_cast %31 : vector<512xf32> to vector<1x512xf32>
    %cst_24 = arith.constant dense<0.000000e+00> : vector<1x512xf32>
    %33 = tpu.matmul %32, %22, %cst_24 {dimension_numbers = #tpu.dot_dimension_numbers<[1], [0], [0], [1], [0, 0, 1, 1], [], []>} : vector<1x512xf32>, vector<512x512xf32>, vector<1x512xf32> -> vector<1x512xf32>
    %cst_25 = arith.constant 9.765625E-4 : f32
    %34 = vector.broadcast %cst_25 : f32 to vector<1x512xf32>
    %35 = arith.mulf %33, %34 : vector<1x512xf32>
    %cst_26 = arith.constant 9.99999974E-6 : f32
    %36 = vector.broadcast %cst_26 : f32 to vector<1x512xf32>
    %37 = arith.addf %35, %36 : vector<1x512xf32>
    %38 = math.rsqrt %37 : vector<1x512xf32>
    %c0_27 = arith.constant 0 : index
    %c0_28 = arith.constant 0 : index
    %39 = vector.load %arg3[%c0_27, %c0_28] : memref<1x512xf32, #tpu.memory_space<vmem>>, vector<1x512xf32>
    %40 = arith.mulf %38, %39 : vector<1x512xf32>
    %41 = vector.broadcast %40 : vector<1x512xf32> to vector<16x512xf32>
    %42 = arith.mulf %29, %41 : vector<16x512xf32>
    %c0_29 = arith.constant 0 : index
    %c0_30 = arith.constant 0 : index
    %43 = vector.load %arg4[%c0_29, %c0_30] : memref<1x512xf32, #tpu.memory_space<vmem>>, vector<1x512xf32>
    %44 = vector.broadcast %43 : vector<1x512xf32> to vector<16x512xf32>
    %45 = arith.addf %42, %44 : vector<16x512xf32>
    %cst_31 = arith.constant 0.000000e+00 : f32
    %46 = vector.broadcast %cst_31 : f32 to vector<16x512xf32>
    %47 = arith.maximumf %45, %46 : vector<16x512xf32>
    %c0_32 = arith.constant 0 : index
    %c0_33 = arith.constant 0 : index
    %48 = vector.load %arg5[%c0_32, %c0_33] : memref<16x512xf32, #tpu.memory_space<vmem>>, vector<16x512xf32>
    tpu.vector_store %arg5[%c0_32, %c0_33], %47 {strides = array<i32>} : memref<16x512xf32, #tpu.memory_space<vmem>>, vector<16x512xf32>,
    return
  }
}

</mosaic_0001>

<llo_original>
// kernel: tpu_custom_call.1
$region0: #{tpu_custom_call.1}
  #allocation0 [shape = 'u32[]', space=smem, size = 0x4, offset = 0x4, fixed_abs, tag = 'smem constant byte address 0x4 - core index']
  #allocation1 [shape = 'u32[144,128]{1,0:T(1,128)}', space=vmem, size = 0x12000, scoped, tag = 'internal scratch']
  %s0 = inlined_call_operand.hbm [shape: bf16[20,512], index: 0, kind: input, shape index: {}]
  %s1 = inlined_call_operand.hbm [shape: bf16[3,512,512], index: 1, kind: input, shape index: {}]
  %s2 = inlined_call_operand.hbm [shape: f32[512,512], index: 2, kind: input, shape index: {}]
  %s3 = inlined_call_operand.hbm [shape: f32[1,512], index: 3, kind: input, shape index: {}]
  %s4 = inlined_call_operand.hbm [shape: f32[1,512], index: 4, kind: input, shape index: {}]
  %s5 = inlined_call_operand.hbm [shape: f32[16,512], index: 5, kind: output, shape index: {}]
  %s6 = sld [smem:[#allocation0]]
  $region50: #{tpu_custom_call.1} parent=0
    _
  %s8 = ssub.s32 1, %s6
  %s9 = scalar_select 0, %s8, %s6
  $region1: #{tpu_custom_call.1} parent=0
    #allocation2 [shape = 'u8[24576]{0}', space=vmem, size = 0x6000, scoped, tag = 'input window, operand 0, single buffered']
    #allocation3 [shape = 's32[1]{0}', space=sflag, size = 0x4, scoped, tag = 'scoped memory for tpu_custom_call.1']
    #allocation4 [shape = 's32[1]{0}', space=sflag, size = 0x4, scoped, tag = 'scoped memory for tpu_custom_call.1']
    #allocation5 [shape = 'u8[1572864]{0}', space=vmem, size = 0x180000, scoped, tag = 'input window, operand 1, single buffered']
    #allocation6 [shape = 's32[1]{0}', space=sflag, size = 0x4, scoped, tag = 'scoped memory for tpu_custom_call.1']
    #allocation7 [shape = 'u8[1048576]{0}', space=vmem, size = 0x100000, scoped, tag = 'input window, operand 2, single buffered']
    #allocation8 [shape = 'u8[2048]{0}', space=vmem, size = 0x800, scoped, tag = 'input window, operand 3, single buffered']
    #allocation9 [shape = 's32[1]{0}', space=sflag, size = 0x4, scoped, tag = 'scoped memory for tpu_custom_call.1']
    #allocation10 [shape = 'u8[2048]{0}', space=vmem, size = 0x800, scoped, tag = 'input window, operand 4, single buffered']
    #allocation11 [shape = 'u8[32768]{0}', space=vmem, size = 0x8000, scoped, tag = 'output window, operand 0, single buffered']
    %10 = vsyncpa [#allocation3], 0
    %11 = vsyncpa [#allocation6], 0
    %12 = vsyncpa [#allocation9], 0
    %13 = vsyncpa [#allocation4], 0
    // Predicated region
    $region2: #{tpu_custom_call.1} parent=1 // pred_check
      _
    $region3: #{tpu_custom_call.1} parent=1 // pred_check_branch
      %15 = sbr.rel (0) target = $region5
    $region4: #{tpu_custom_call.1} parent=1 // pred_region
      %s17 = ssub.s32 768, 768
      %18 = vsyncadd [#allocation3], %s17
      %s19 = sshll.u32 [#allocation2], 4
      %s20 = int_to_ptr.vmem [resolvable:$true] %s19
      %25 = dma.hbm_to_vmem [thread:$0]  %s0, 768, %s20, [#allocation3], 256, 256, 16
    $region5: #{tpu_custom_call.1} parent=1 // pred_fallthru
      _
    // Predicated region
    $region6: #{tpu_custom_call.1} parent=1 // pred_check
      _
    $region7: #{tpu_custom_call.1} parent=1 // pred_check_branch
      %27 = sbr.rel (0) target = $region9
    $region8: #{tpu_custom_call.1} parent=1 // pred_region
      %s29 = ssub.s32 49152, 49152
      %30 = vsyncadd [#allocation6], %s29
      %s31 = sshll.u32 [#allocation5], 4
      %s32 = int_to_ptr.vmem [resolvable:$true] %s31
      %37 = dma.hbm_to_vmem [thread:$0]  %s1, 49152, %s32, [#allocation6], 256, 256, 16
    $region9: #{tpu_custom_call.1} parent=1 // pred_fallthru
      _
    // Predicated region
    $region10: #{tpu_custom_call.1} parent=1 // pred_check
      _
    $region11: #{tpu_custom_call.1} parent=1 // pred_check_branch
      %39 = sbr.rel (0) target = $region13
    $region12: #{tpu_custom_call.1} parent=1 // pred_region
      %s41 = ssub.s32 32768, 32768
      %42 = vsyncadd [#allocation6], %s41
      %s43 = sshll.u32 [#allocation7], 4
      %s44 = int_to_ptr.vmem [resolvable:$true] %s43
      %49 = dma.hbm_to_vmem [thread:$0]  %s2, 32768, %s44, [#allocation6], 512, 512, 32
    $region13: #{tpu_custom_call.1} parent=1 // pred_fallthru
      _
    // Predicated region
    $region14: #{tpu_custom_call.1} parent=1 // pred_check
      _
    $region15: #{tpu_custom_call.1} parent=1 // pred_check_branch
      %51 = sbr.rel (0) target = $region17
    $region16: #{tpu_custom_call.1} parent=1 // pred_region
      %s53 = ssub.s32 64, 64
      %54 = vsyncadd [#allocation9], %s53
      %s56 = sshll.u32 [#allocation8], 4
      %s57 = int_to_ptr.vmem [resolvable:$true] %s56
      %59 = dma.hbm_to_vmem [thread:$0]  %s3, 64, %s57, [#allocation9]
    $region17: #{tpu_custom_call.1} parent=1 // pred_fallthru
      _
    // Predicated region
    $region18: #{tpu_custom_call.1} parent=1 // pred_check
      _
    $region19: #{tpu_custom_call.1} parent=1 // pred_check_branch
      %61 = sbr.rel (0) target = $region21
    $region20: #{tpu_custom_call.1} parent=1 // pred_region
      %s63 = ssub.s32 64, 64
      %64 = vsyncadd [#allocation9], %s63
      %s66 = sshll.u32 [#allocation10], 4
      %s67 = int_to_ptr.vmem [resolvable:$true] %s66
      %69 = dma.hbm_to_vmem [thread:$0]  %s4, 64, %s67, [#allocation9]
    $region21: #{tpu_custom_call.1} parent=1 // pred_fallthru
      _
    // Predicated region
    $region22: #{tpu_custom_call.1} parent=1 // pred_check
      _
    $region23: #{tpu_custom_call.1} parent=1 // pred_check_branch
      %71 = sbr.rel (0) target = $region25
    $region24: #{tpu_custom_call.1} parent=1 // pred_region
      %72 = dma.done [#allocation3], 768
    $region25: #{tpu_custom_call.1} parent=1 // pred_fallthru
      _
    // Predicated region
    $region26: #{tpu_custom_call.1} parent=1 // pred_check
      _
    $region27: #{tpu_custom_call.1} parent=1 // pred_check_branch
      %74 = sbr.rel (0) target = $region29
    $region28: #{tpu_custom_call.1} parent=1 // pred_region
      %75 = dma.done [#allocation6], 49152
    $region29: #{tpu_custom_call.1} parent=1 // pred_fallthru
      _
    // Predicated region
    $region30: #{tpu_custom_call.1} parent=1 // pred_check
      _
    $region31: #{tpu_custom_call.1} parent=1 // pred_check_branch
      %77 = sbr.rel (0) target = $region33
    $region32: #{tpu_custom_call.1} parent=1 // pred_region
      %78 = dma.done [#allocation6], 32768
    $region33: #{tpu_custom_call.1} parent=1 // pred_fallthru
      _
    // Predicated region
    $region34: #{tpu_custom_call.1} parent=1 // pred_check
      _
    $region35: #{tpu_custom_call.1} parent=1 // pred_check_branch
      %80 = sbr.rel (0) target = $region37
    $region36: #{tpu_custom_call.1} parent=1 // pred_region
      %81 = dma.done [#allocation9], 64
    $region37: #{tpu_custom_call.1} parent=1 // pred_fallthru
      _
    // Predicated region
    $region38: #{tpu_custom_call.1} parent=1 // pred_check
      _
    $region39: #{tpu_custom_call.1} parent=1 // pred_check_branch
      %83 = sbr.rel (0) target = $region41
    $region40: #{tpu_custom_call.1} parent=1 // pred_region
      %84 = dma.done [#allocation9], 64
    $region41: #{tpu_custom_call.1} parent=1 // pred_fallthru
      _
    %v85 = vld [vmem:[#allocation2] sm:$0xff]
    %v86 = vld [vmem:[#allocation2 + $0x8] sm:$0xff]
    %v87 = vld [vmem:[#allocation2 + $0x10] sm:$0xee]
    %v88 = vld [vmem:[#allocation2 + $0x18] sm:$0xee]
    %v89 = vld [vmem:[#allocation2 + $0x20] sm:$0x11]
    %v90 = vld [vmem:[#allocation2 + $0x28] sm:$0x11]
    %v93 = vunpack.c.l.b16 %v85
    %v94 = vunpack.c.h.b16 %v85
    %v95 = vunpack.c.l.b16 %v86
    %v96 = vunpack.c.h.b16 %v86
    %v97 = vpack.c.b16 %v93, %v93
    %v98 = vpack.c.b16 %v94, %v94
    %v99 = vpack.c.b16 %v95, %v95
    %v100 = vpack.c.b16 %v96, %v96
    %v105 = vunpack.c.l.b16 %v87
    %v106 = vunpack.c.h.b16 %v87
    %v107 = vunpack.c.l.b16 %v88
    %v108 = vunpack.c.h.b16 %v88
    %v109 = vunpack.c.l.b16 %v89
    %v110 = vunpack.c.h.b16 %v89
    %v111 = vunpack.c.l.b16 %v90
    %v112 = vunpack.c.h.b16 %v90
    %v113 = vpack.c.b16 %v109, %v105
    %v114 = vpack.c.b16 %v110, %v106
    %v115 = vpack.c.b16 %v111, %v107
    %v116 = vpack.c.b16 %v112, %v108
    %v117 = vrot.slane %v113, 5
    %v118 = vrot.slane %v114, 5
    %v119 = vrot.slane %v115, 5
    %v120 = vrot.slane %v116, 5
    %vm121 = vcmask 1043456
    %v124 = vsel %vm121, %v97, %v117
    %v128 = vsel %vm121, %v98, %v118
    %v132 = vsel %vm121, %v99, %v119
    %v136 = vsel %vm121, %v100, %v120
    %v138 = vld [vmem:[#allocation5] sm:$0xff]
    %v139 = vld [vmem:[#allocation5 + $0x8] sm:$0xff]
    %v140 = vld [vmem:[#allocation5 + $0x10] sm:$0xff]
    %v141 = vld [vmem:[#allocation5 + $0x18] sm:$0xff]
    %v142 = vld [vmem:[#allocation5 + $0x20] sm:$0xff]
    %v143 = vld [vmem:[#allocation5 + $0x28] sm:$0xff]
    %v144 = vld [vmem:[#allocation5 + $0x30] sm:$0xff]
    %v145 = vld [vmem:[#allocation5 + $0x38] sm:$0xff]
    %v146 = vld [vmem:[#allocation5 + $0x40] sm:$0xff]
    %v147 = vld [vmem:[#allocation5 + $0x48] sm:$0xff]
    %v148 = vld [vmem:[#allocation5 + $0x50] sm:$0xff]
    %v149 = vld [vmem:[#allocation5 + $0x58] sm:$0xff]
    %v150 = vld [vmem:[#allocation5 + $0x60] sm:$0xff]
    %v151 = vld [vmem:[#allocation5 + $0x68] sm:$0xff]
    %v152 = vld [vmem:[#allocation5 + $0x70] sm:$0xff]
    %v153 = vld [vmem:[#allocation5 + $0x78] sm:$0xff]
    %v154 = vld [vmem:[#allocation5 + $0x80] sm:$0xff]
    %v155 = vld [vmem:[#allocation5 + $0x88] sm:$0xff]
    %v156 = vld [vmem:[#allocation5 + $0x90] sm:$0xff]
    %v157 = vld [vmem:[#allocation5 + $0x98] sm:$0xff]
    %v158 = vld [vmem:[#allocation5 + $0xa0] sm:$0xff]
    %v159 = vld [vmem:[#allocation5 + $0xa8] sm:$0xff]
    %v160 = vld [vmem:[#allocation5 + $0xb0] sm:$0xff]
    %v161 = vld [vmem:[#allocation5 + $0xb8] sm:$0xff]
    %v162 = vld [vmem:[#allocation5 + $0xc0] sm:$0xff]
    %v163 = vld [vmem:[#allocation5 + $0xc8] sm:$0xff]
    %v164 = vld [vmem:[#allocation5 + $0xd0] sm:$0xff]
    %v165 = vld [vmem:[#allocation5 + $0xd8] sm:$0xff]
    %v166 = vld [vmem:[#allocation5 + $0xe0] sm:$0xff]
    %v167 = vld [vmem:[#allocation5 + $0xe8] sm:$0xff]
    %v168 = vld [vmem:[#allocation5 + $0xf0] sm:$0xff]
    %v169 = vld [vmem:[#allocation5 + $0xf8] sm:$0xff]
    %v170 = vld [vmem:[#allocation5 + $0x100] sm:$0xff]
    %v171 = vld [vmem:[#allocation5 + $0x108] sm:$0xff]
    %v172 = vld [vmem:[#allocation5 + $0x110] sm:$0xff]
    %v173 = vld [vmem:[#allocation5 + $0x118] sm:$0xff]
    %v174 = vld [vmem:[#allocation5 + $0x120] sm:$0xff]
    %v175 = vld [vmem:[#allocation5 + $0x128] sm:$0xff]
    %v176 = vld [vmem:[#allocation5 + $0x130] sm:$0xff]
    %v177 = vld [vmem:[#allocation5 + $0x138] sm:$0xff]
    %v178 = vld [vmem:[#allocation5 + $0x140] sm:$0xff]
    %v179 = vld [vmem:[#allocation5 + $0x148] sm:$0xff]
    %v180 = vld [vmem:[#allocation5 + $0x150] sm:$0xff]
    %v181 = vld [vmem:[#allocation5 + $0x158] sm:$0xff]
    %v182 = vld [vmem:[#allocation5 + $0x160] sm:$0xff]
    %v183 = vld [vmem:[#allocation5 + $0x168] sm:$0xff]
    %v184 = vld [vmem:[#allocation5 + $0x170] sm:$0xff]
    %v185 = vld [vmem:[#allocation5 + $0x178] sm:$0xff]
    %v186 = vld [vmem:[#allocation5 + $0x180] sm:$0xff]
    %v187 = vld [vmem:[#allocation5 + $0x188] sm:$0xff]
    %v188 = vld [vmem:[#allocation5 + $0x190] sm:$0xff]
    %v189 = vld [vmem:[#allocation5 + $0x198] sm:$0xff]
    %v190 = vld [vmem:[#allocation5 + $0x1a0] sm:$0xff]
    %v191 = vld [vmem:[#allocation5 + $0x1a8] sm:$0xff]
    %v192 = vld [vmem:[#allocation5 + $0x1b0] sm:$0xff]
    %v193 = vld [vmem:[#allocation5 + $0x1b8] sm:$0xff]
    %v194 = vld [vmem:[#allocation5 + $0x1c0] sm:$0xff]
    %v195 = vld [vmem:[#allocation5 + $0x1c8] sm:$0xff]
    %v196 = vld [vmem:[#allocation5 + $0x1d0] sm:$0xff]
    %v197 = vld [vmem:[#allocation5 + $0x1d8] sm:$0xff]
    %v198 = vld [vmem:[#allocation5 + $0x1e0] sm:$0xff]
    %v199 = vld [vmem:[#allocation5 + $0x1e8] sm:$0xff]
    %v200 = vld [vmem:[#allocation5 + $0x1f0] sm:$0xff]
    %v201 = vld [vmem:[#allocation5 + $0x1f8] sm:$0xff]
    %v202 = vld [vmem:[#allocation5 + $0x200] sm:$0xff]
    %v203 = vld [vmem:[#allocation5 + $0x208] sm:$0xff]
    %v204 = vld [vmem:[#allocation5 + $0x210] sm:$0xff]
    %v205 = vld [vmem:[#allocation5 + $0x218] sm:$0xff]
    %v206 = vld [vmem:[#allocation5 + $0x220] sm:$0xff]
    %v207 = vld [vmem:[#allocation5 + $0x228] sm:$0xff]
    %v208 = vld [vmem:[#allocation5 + $0x230] sm:$0xff]
    %v209 = vld [vmem:[#allocation5 + $0x238] sm:$0xff]
    %v210 = vld [vmem:[#allocation5 + $0x240] sm:$0xff]
    %v211 = vld [vmem:[#allocation5 + $0x248] sm:$0xff]
    %v212 = vld [vmem:[#allocation5 + $0x250] sm:$0xff]
    %v213 = vld [vmem:[#allocation5 + $0x258] sm:$0xff]
    %v214 = vld [vmem:[#allocation5 + $0x260] sm:$0xff]
    %v215 = vld [vmem:[#allocation5 + $0x268] sm:$0xff]
    %v216 = vld [vmem:[#allocation5 + $0x270] sm:$0xff]
    %v217 = vld [vmem:[#allocation5 + $0x278] sm:$0xff]
    %v218 = vld [vmem:[#allocation5 + $0x280] sm:$0xff]
    %v219 = vld [vmem:[#allocation5 + $0x288] sm:$0xff]
    %v220 = vld [vmem:[#allocation5 + $0x290] sm:$0xff]
    %v221 = vld [vmem:[#allocation5 + $0x298] sm:$0xff]
    %v222 = vld [vmem:[#allocation5 + $0x2a0] sm:$0xff]
    %v223 = vld [vmem:[#allocation5 + $0x2a8] sm:$0xff]
    %v224 = vld [vmem:[#allocation5 + $0x2b0] sm:$0xff]
    %v225 = vld [vmem:[#allocation5 + $0x2b8] sm:$0xff]
    %v226 = vld [vmem:[#allocation5 + $0x2c0] sm:$0xff]
    %v227 = vld [vmem:[#allocation5 + $0x2c8] sm:$0xff]
    %v228 = vld [vmem:[#allocation5 + $0x2d0] sm:$0xff]
    %v229 = vld [vmem:[#allocation5 + $0x2d8] sm:$0xff]
    %v230 = vld [vmem:[#allocation5 + $0x2e0] sm:$0xff]
    %v231 = vld [vmem:[#allocation5 + $0x2e8] sm:$0xff]
    %v232 = vld [vmem:[#allocation5 + $0x2f0] sm:$0xff]
    %v233 = vld [vmem:[#allocation5 + $0x2f8] sm:$0xff]
    %v234 = vld [vmem:[#allocation5 + $0x300] sm:$0xff]
    %v235 = vld [vmem:[#allocation5 + $0x308] sm:$0xff]
    %v236 = vld [vmem:[#allocation5 + $0x310] sm:$0xff]
    %v237 = vld [vmem:[#allocation5 + $0x318] sm:$0xff]
    %v238 = vld [vmem:[#allocation5 + $0x320] sm:$0xff]
    %v239 = vld [vmem:[#allocation5 + $0x328] sm:$0xff]
    %v240 = vld [vmem:[#allocation5 + $0x330] sm:$0xff]
    %v241 = vld [vmem:[#allocation5 + $0x338] sm:$0xff]
    %v242 = vld [vmem:[#allocation5 + $0x340] sm:$0xff]
    %v243 = vld [vmem:[#allocation5 + $0x348] sm:$0xff]
    %v244 = vld [vmem:[#allocation5 + $0x350] sm:$0xff]
    %v245 = vld [vmem:[#allocation5 + $0x358] sm:$0xff]
    %v246 = vld [vmem:[#allocation5 + $0x360] sm:$0xff]
    %v247 = vld [vmem:[#allocation5 + $0x368] sm:$0xff]
    %v248 = vld [vmem:[#allocation5 + $0x370] sm:$0xff]
    %v249 = vld [vmem:[#allocation5 + $0x378] sm:$0xff]
    %v250 = vld [vmem:[#allocation5 + $0x380] sm:$0xff]
    %v251 = vld [vmem:[#allocation5 + $0x388] sm:$0xff]
    %v252 = vld [vmem:[#allocation5 + $0x390] sm:$0xff]
    %v253 = vld [vmem:[#allocation5 + $0x398] sm:$0xff]
    %v254 = vld [vmem:[#allocation5 + $0x3a0] sm:$0xff]
    %v255 = vld [vmem:[#allocation5 + $0x3a8] sm:$0xff]
    %v256 = vld [vmem:[#allocation5 + $0x3b0] sm:$0xff]
    %v257 = vld [vmem:[#allocation5 + $0x3b8] sm:$0xff]
    %v258 = vld [vmem:[#allocation5 + $0x3c0] sm:$0xff]
    %v259 = vld [vmem:[#allocation5 + $0x3c8] sm:$0xff]
    %v260 = vld [vmem:[#allocation5 + $0x3d0] sm:$0xff]
    %v261 = vld [vmem:[#allocation5 + $0x3d8] sm:$0xff]
    %v262 = vld [vmem:[#allocation5 + $0x3e0] sm:$0xff]
    %v263 = vld [vmem:[#allocation5 + $0x3e8] sm:$0xff]
    %v264 = vld [vmem:[#allocation5 + $0x3f0] sm:$0xff]
    %v265 = vld [vmem:[#allocation5 + $0x3f8] sm:$0xff]
    %v266 = vld [vmem:[#allocation2 + $0x10] sm:$0x11]
    %v267 = vld [vmem:[#allocation2 + $0x18] sm:$0x11]
    %v268 = vld [vmem:[#allocation2 + $0x20] sm:$0x33]
    %v269 = vld [vmem:[#allocation2 + $0x28] sm:$0x33]
    %v272 = vunpack.c.l.b16 %v266
    %v273 = vunpack.c.h.b16 %v266
    %v274 = vunpack.c.l.b16 %v267
    %v275 = vunpack.c.h.b16 %v267
    %v276 = vpack.c.b16 %v272, %v93
    %v277 = vpack.c.b16 %v273, %v94
    %v278 = vpack.c.b16 %v274, %v95
    %v279 = vpack.c.b16 %v275, %v96
    %v281 = vshrl.u32 %v276, 16
    %v283 = vshll.u32 %v276, 16
    %v285 = vrot.slane %v283, 1
    %v286 = vor.u32 %v281, %v285
    %v288 = vshrl.u32 %v277, 16
    %v290 = vshll.u32 %v277, 16
    %v292 = vrot.slane %v290, 1
    %v293 = vor.u32 %v288, %v292
    %v295 = vshrl.u32 %v278, 16
    %v297 = vshll.u32 %v278, 16
    %v299 = vrot.slane %v297, 1
    %v300 = vor.u32 %v295, %v299
    %v302 = vshrl.u32 %v279, 16
    %v304 = vshll.u32 %v279, 16
    %v306 = vrot.slane %v304, 1
    %v307 = vor.u32 %v302, %v306
    %v310 = vunpack.c.l.b16 %v268
    %v311 = vunpack.c.h.b16 %v268
    %v312 = vunpack.c.l.b16 %v269
    %v313 = vunpack.c.h.b16 %v269
    %v314 = vpack.c.b16 %v310, %v105
    %v315 = vpack.c.b16 %v311, %v106
    %v316 = vpack.c.b16 %v312, %v107
    %v317 = vpack.c.b16 %v313, %v108
    %v319 = vshrl.u32 %v314, 16
    %v321 = vrot.slane %v319, 5
    %v322 = vshll.u32 %v314, 16
    %v324 = vrot.slane %v322, 6
    %v325 = vor.u32 %v321, %v324
    %v327 = vshrl.u32 %v315, 16
    %v329 = vrot.slane %v327, 5
    %v330 = vshll.u32 %v315, 16
    %v332 = vrot.slane %v330, 6
    %v333 = vor.u32 %v329, %v332
    %v335 = vshrl.u32 %v316, 16
    %v337 = vrot.slane %v335, 5
    %v338 = vshll.u32 %v316, 16
    %v340 = vrot.slane %v338, 6
    %v341 = vor.u32 %v337, %v340
    %v343 = vshrl.u32 %v317, 16
    %v345 = vrot.slane %v343, 5
    %v346 = vshll.u32 %v317, 16
    %v348 = vrot.slane %v346, 6
    %v349 = vor.u32 %v345, %v348
    %v352 = vsel %vm121, %v286, %v325
    %v356 = vsel %vm121, %v293, %v333
    %v360 = vsel %vm121, %v300, %v341
    %v364 = vsel %vm121, %v307, %v349
    %s366 = scalar_lea.vmem [#allocation5], 1024
    %v367 = vld [vmem:[%s366] sm:$0xff]
    %v368 = vld [vmem:[%s366 + $0x8] sm:$0xff]
    %v369 = vld [vmem:[%s366 + $0x10] sm:$0xff]
    %v370 = vld [vmem:[%s366 + $0x18] sm:$0xff]
    %v371 = vld [vmem:[%s366 + $0x20] sm:$0xff]
    %v372 = vld [vmem:[%s366 + $0x28] sm:$0xff]
    %v373 = vld [vmem:[%s366 + $0x30] sm:$0xff]
    %v374 = vld [vmem:[%s366 + $0x38] sm:$0xff]
    %v375 = vld [vmem:[%s366 + $0x40] sm:$0xff]
    %v376 = vld [vmem:[%s366 + $0x48] sm:$0xff]
    %v377 = vld [vmem:[%s366 + $0x50] sm:$0xff]
    %v378 = vld [vmem:[%s366 + $0x58] sm:$0xff]
    %v379 = vld [vmem:[%s366 + $0x60] sm:$0xff]
    %v380 = vld [vmem:[%s366 + $0x68] sm:$0xff]
    %v381 = vld [vmem:[%s366 + $0x70] sm:$0xff]
    %v382 = vld [vmem:[%s366 + $0x78] sm:$0xff]
    %v383 = vld [vmem:[%s366 + $0x80] sm:$0xff]
    %v384 = vld [vmem:[%s366 + $0x88] sm:$0xff]
    %v385 = vld [vmem:[%s366 + $0x90] sm:$0xff]
    %v386 = vld [vmem:[%s366 + $0x98] sm:$0xff]
    %v387 = vld [vmem:[%s366 + $0xa0] sm:$0xff]
    %v388 = vld [vmem:[%s366 + $0xa8] sm:$0xff]
    %v389 = vld [vmem:[%s366 + $0xb0] sm:$0xff]
    %v390 = vld [vmem:[%s366 + $0xb8] sm:$0xff]
    %v391 = vld [vmem:[%s366 + $0xc0] sm:$0xff]
    %v392 = vld [vmem:[%s366 + $0xc8] sm:$0xff]
    %v393 = vld [vmem:[%s366 + $0xd0] sm:$0xff]
    %v394 = vld [vmem:[%s366 + $0xd8] sm:$0xff]
    %v395 = vld [vmem:[%s366 + $0xe0] sm:$0xff]
    %v396 = vld [vmem:[%s366 + $0xe8] sm:$0xff]
    %v397 = vld [vmem:[%s366 + $0xf0] sm:$0xff]
    %v398 = vld [vmem:[%s366 + $0xf8] sm:$0xff]
    %v399 = vld [vmem:[%s366 + $0x100] sm:$0xff]
    %v400 = vld [vmem:[%s366 + $0x108] sm:$0xff]
    %v401 = vld [vmem:[%s366 + $0x110] sm:$0xff]
    %v402 = vld [vmem:[%s366 + $0x118] sm:$0xff]
    %v403 = vld [vmem:[%s366 + $0x120] sm:$0xff]
    %v404 = vld [vmem:[%s366 + $0x128] sm:$0xff]
    %v405 = vld [vmem:[%s366 + $0x130] sm:$0xff]
    %v406 = vld [vmem:[%s366 + $0x138] sm:$0xff]
    %v407 = vld [vmem:[%s366 + $0x140] sm:$0xff]
    %v408 = vld [vmem:[%s366 + $0x148] sm:$0xff]
    %v409 = vld [vmem:[%s366 + $0x150] sm:$0xff]
    %v410 = vld [vmem:[%s366 + $0x158] sm:$0xff]
    %v411 = vld [vmem:[%s366 + $0x160] sm:$0xff]
    %v412 = vld [vmem:[%s366 + $0x168] sm:$0xff]
    %v413 = vld [vmem:[%s366 + $0x170] sm:$0xff]
    %v414 = vld [vmem:[%s366 + $0x178] sm:$0xff]
    %v415 = vld [vmem:[%s366 + $0x180] sm:$0xff]
    %v416 = vld [vmem:[%s366 + $0x188] sm:$0xff]
    %v417 = vld [vmem:[%s366 + $0x190] sm:$0xff]
    %v418 = vld [vmem:[%s366 + $0x198] sm:$0xff]
    %v419 = vld [vmem:[%s366 + $0x1a0] sm:$0xff]
    %v420 = vld [vmem:[%s366 + $0x1a8] sm:$0xff]
    %v421 = vld [vmem:[%s366 + $0x1b0] sm:$0xff]
    %v422 = vld [vmem:[%s366 + $0x1b8] sm:$0xff]
    %v423 = vld [vmem:[%s366 + $0x1c0] sm:$0xff]
    %v424 = vld [vmem:[%s366 + $0x1c8] sm:$0xff]
    %v425 = vld [vmem:[%s366 + $0x1d0] sm:$0xff]
    %v426 = vld [vmem:[%s366 + $0x1d8] sm:$0xff]
    %v427 = vld [vmem:[%s366 + $0x1e0] sm:$0xff]
    %v428 = vld [vmem:[%s366 + $0x1e8] sm:$0xff]
    %v429 = vld [vmem:[%s366 + $0x1f0] sm:$0xff]
    %v430 = vld [vmem:[%s366 + $0x1f8] sm:$0xff]
    %v431 = vld [vmem:[%s366 + $0x200] sm:$0xff]
    %v432 = vld [vmem:[%s366 + $0x208] sm:$0xff]
    %v433 = vld [vmem:[%s366 + $0x210] sm:$0xff]
    %v434 = vld [vmem:[%s366 + $0x218] sm:$0xff]
    %v435 = vld [vmem:[%s366 + $0x220] sm:$0xff]
    %v436 = vld [vmem:[%s366 + $0x228] sm:$0xff]
    %v437 = vld [vmem:[%s366 + $0x230] sm:$0xff]
    %v438 = vld [vmem:[%s366 + $0x238] sm:$0xff]
    %v439 = vld [vmem:[%s366 + $0x240] sm:$0xff]
    %v440 = vld [vmem:[%s366 + $0x248] sm:$0xff]
    %v441 = vld [vmem:[%s366 + $0x250] sm:$0xff]
    %v442 = vld [vmem:[%s366 + $0x258] sm:$0xff]
    %v443 = vld [vmem:[%s366 + $0x260] sm:$0xff]
    %v444 = vld [vmem:[%s366 + $0x268] sm:$0xff]
    %v445 = vld [vmem:[%s366 + $0x270] sm:$0xff]
    %v446 = vld [vmem:[%s366 + $0x278] sm:$0xff]
    %v447 = vld [vmem:[%s366 + $0x280] sm:$0xff]
    %v448 = vld [vmem:[%s366 + $0x288] sm:$0xff]
    %v449 = vld [vmem:[%s366 + $0x290] sm:$0xff]
    %v450 = vld [vmem:[%s366 + $0x298] sm:$0xff]
    %v451 = vld [vmem:[%s366 + $0x2a0] sm:$0xff]
    %v452 = vld [vmem:[%s366 + $0x2a8] sm:$0xff]
    %v453 = vld [vmem:[%s366 + $0x2b0] sm:$0xff]
    %v454 = vld [vmem:[%s366 + $0x2b8] sm:$0xff]
    %v455 = vld [vmem:[%s366 + $0x2c0] sm:$0xff]
    %v456 = vld [vmem:[%s366 + $0x2c8] sm:$0xff]
    %v457 = vld [vmem:[%s366 + $0x2d0] sm:$0xff]
    %v458 = vld [vmem:[%s366 + $0x2d8] sm:$0xff]
    %v459 = vld [vmem:[%s366 + $0x2e0] sm:$0xff]
    %v460 = vld [vmem:[%s366 + $0x2e8] sm:$0xff]
    %v461 = vld [vmem:[%s366 + $0x2f0] sm:$0xff]
    %v462 = vld [vmem:[%s366 + $0x2f8] sm:$0xff]
    %v463 = vld [vmem:[%s366 + $0x300] sm:$0xff]
    %v464 = vld [vmem:[%s366 + $0x308] sm:$0xff]
    %v465 = vld [vmem:[%s366 + $0x310] sm:$0xff]
    %v466 = vld [vmem:[%s366 + $0x318] sm:$0xff]
    %v467 = vld [vmem:[%s366 + $0x320] sm:$0xff]
    %v468 = vld [vmem:[%s366 + $0x328] sm:$0xff]
    %v469 = vld [vmem:[%s366 + $0x330] sm:$0xff]
    %v470 = vld [vmem:[%s366 + $0x338] sm:$0xff]
    %v471 = vld [vmem:[%s366 + $0x340] sm:$0xff]
    %v472 = vld [vmem:[%s366 + $0x348] sm:$0xff]
    %v473 = vld [vmem:[%s366 + $0x350] sm:$0xff]
    %v474 = vld [vmem:[%s366 + $0x358] sm:$0xff]
    %v475 = vld [vmem:[%s366 + $0x360] sm:$0xff]
    %v476 = vld [vmem:[%s366 + $0x368] sm:$0xff]
    %v477 = vld [vmem:[%s366 + $0x370] sm:$0xff]
    %v478 = vld [vmem:[%s366 + $0x378] sm:$0xff]
    %v479 = vld [vmem:[%s366 + $0x380] sm:$0xff]
    %v480 = vld [vmem:[%s366 + $0x388] sm:$0xff]
    %v481 = vld [vmem:[%s366 + $0x390] sm:$0xff]
    %v482 = vld [vmem:[%s366 + $0x398] sm:$0xff]
    %v483 = vld [vmem:[%s366 + $0x3a0] sm:$0xff]
    %v484 = vld [vmem:[%s366 + $0x3a8] sm:$0xff]
    %v485 = vld [vmem:[%s366 + $0x3b0] sm:$0xff]
    %v486 = vld [vmem:[%s366 + $0x3b8] sm:$0xff]
    %v487 = vld [vmem:[%s366 + $0x3c0] sm:$0xff]
    %v488 = vld [vmem:[%s366 + $0x3c8] sm:$0xff]
    %v489 = vld [vmem:[%s366 + $0x3d0] sm:$0xff]
    %v490 = vld [vmem:[%s366 + $0x3d8] sm:$0xff]
    %v491 = vld [vmem:[%s366 + $0x3e0] sm:$0xff]
    %v492 = vld [vmem:[%s366 + $0x3e8] sm:$0xff]
    %v493 = vld [vmem:[%s366 + $0x3f0] sm:$0xff]
    %v494 = vld [vmem:[%s366 + $0x3f8] sm:$0xff]
    %v623 = vunpack.c.l.b16 %v367
    %v624 = vunpack.c.h.b16 %v367
    %v625 = vunpack.c.l.b16 %v368
    %v626 = vunpack.c.h.b16 %v368
    %v627 = vunpack.c.l.b16 %v369
    %v628 = vunpack.c.h.b16 %v369
    %v629 = vunpack.c.l.b16 %v370
    %v630 = vunpack.c.h.b16 %v370
    %v631 = vunpack.c.l.b16 %v371
    %v632 = vunpack.c.h.b16 %v371
    %v633 = vunpack.c.l.b16 %v372
    %v634 = vunpack.c.h.b16 %v372
    %v635 = vunpack.c.l.b16 %v373
    %v636 = vunpack.c.h.b16 %v373
    %v637 = vunpack.c.l.b16 %v374
    %v638 = vunpack.c.h.b16 %v374
    %v639 = vunpack.c.l.b16 %v375
    %v640 = vunpack.c.h.b16 %v375
    %v641 = vunpack.c.l.b16 %v376
    %v642 = vunpack.c.h.b16 %v376
    %v643 = vunpack.c.l.b16 %v377
    %v644 = vunpack.c.h.b16 %v377
    %v645 = vunpack.c.l.b16 %v378
    %v646 = vunpack.c.h.b16 %v378
    %v647 = vunpack.c.l.b16 %v379
    %v648 = vunpack.c.h.b16 %v379
    %v649 = vunpack.c.l.b16 %v380
    %v650 = vunpack.c.h.b16 %v380
    %v651 = vunpack.c.l.b16 %v381
    %v652 = vunpack.c.h.b16 %v381
    %v653 = vunpack.c.l.b16 %v382
    %v654 = vunpack.c.h.b16 %v382
    %v655 = vunpack.c.l.b16 %v383
    %v656 = vunpack.c.h.b16 %v383
    %v657 = vunpack.c.l.b16 %v384
    %v658 = vunpack.c.h.b16 %v384
    %v659 = vunpack.c.l.b16 %v385
    %v660 = vunpack.c.h.b16 %v385
    %v661 = vunpack.c.l.b16 %v386
    %v662 = vunpack.c.h.b16 %v386
    %v663 = vunpack.c.l.b16 %v387
    %v664 = vunpack.c.h.b16 %v387
    %v665 = vunpack.c.l.b16 %v388
    %v666 = vunpack.c.h.b16 %v388
    %v667 = vunpack.c.l.b16 %v389
    %v668 = vunpack.c.h.b16 %v389
    %v669 = vunpack.c.l.b16 %v390
    %v670 = vunpack.c.h.b16 %v390
    %v671 = vunpack.c.l.b16 %v391
    %v672 = vunpack.c.h.b16 %v391
    %v673 = vunpack.c.l.b16 %v392
    %v674 = vunpack.c.h.b16 %v392
    %v675 = vunpack.c.l.b16 %v393
    %v676 = vunpack.c.h.b16 %v393
    %v677 = vunpack.c.l.b16 %v394
    %v678 = vunpack.c.h.b16 %v394
    %v679 = vunpack.c.l.b16 %v395
    %v680 = vunpack.c.h.b16 %v395
    %v681 = vunpack.c.l.b16 %v396
    %v682 = vunpack.c.h.b16 %v396
    %v683 = vunpack.c.l.b16 %v397
    %v684 = vunpack.c.h.b16 %v397
    %v685 = vunpack.c.l.b16 %v398
    %v686 = vunpack.c.h.b16 %v398
    %v687 = vunpack.c.l.b16 %v399
    %v688 = vunpack.c.h.b16 %v399
    %v689 = vunpack.c.l.b16 %v400
    %v690 = vunpack.c.h.b16 %v400
    %v691 = vunpack.c.l.b16 %v401
    %v692 = vunpack.c.h.b16 %v401
    %v693 = vunpack.c.l.b16 %v402
    %v694 = vunpack.c.h.b16 %v402
    %v695 = vunpack.c.l.b16 %v403
    %v696 = vunpack.c.h.b16 %v403
    %v697 = vunpack.c.l.b16 %v404
    %v698 = vunpack.c.h.b16 %v404
    %v699 = vunpack.c.l.b16 %v405
    %v700 = vunpack.c.h.b16 %v405
    %v701 = vunpack.c.l.b16 %v406
    %v702 = vunpack.c.h.b16 %v406
    %v703 = vunpack.c.l.b16 %v407
    %v704 = vunpack.c.h.b16 %v407
    %v705 = vunpack.c.l.b16 %v408
    %v706 = vunpack.c.h.b16 %v408
    %v707 = vunpack.c.l.b16 %v409
    %v708 = vunpack.c.h.b16 %v409
    %v709 = vunpack.c.l.b16 %v410
    %v710 = vunpack.c.h.b16 %v410
    %v711 = vunpack.c.l.b16 %v411
    %v712 = vunpack.c.h.b16 %v411
    %v713 = vunpack.c.l.b16 %v412
    %v714 = vunpack.c.h.b16 %v412
    %v715 = vunpack.c.l.b16 %v413
    %v716 = vunpack.c.h.b16 %v413
    %v717 = vunpack.c.l.b16 %v414
    %v718 = vunpack.c.h.b16 %v414
    %v719 = vunpack.c.l.b16 %v415
    %v720 = vunpack.c.h.b16 %v415
    %v721 = vunpack.c.l.b16 %v416
    %v722 = vunpack.c.h.b16 %v416
    %v723 = vunpack.c.l.b16 %v417
    %v724 = vunpack.c.h.b16 %v417
    %v725 = vunpack.c.l.b16 %v418
    %v726 = vunpack.c.h.b16 %v418
    %v727 = vunpack.c.l.b16 %v419
    %v728 = vunpack.c.h.b16 %v419
    %v729 = vunpack.c.l.b16 %v420
    %v730 = vunpack.c.h.b16 %v420
    %v731 = vunpack.c.l.b16 %v421
    %v732 = vunpack.c.h.b16 %v421
    %v733 = vunpack.c.l.b16 %v422
    %v734 = vunpack.c.h.b16 %v422
    %v735 = vunpack.c.l.b16 %v423
    %v736 = vunpack.c.h.b16 %v423
    %v737 = vunpack.c.l.b16 %v424
    %v738 = vunpack.c.h.b16 %v424
    %v739 = vunpack.c.l.b16 %v425
    %v740 = vunpack.c.h.b16 %v425
    %v741 = vunpack.c.l.b16 %v426
    %v742 = vunpack.c.h.b16 %v426
    %v743 = vunpack.c.l.b16 %v427
    %v744 = vunpack.c.h.b16 %v427
    %v745 = vunpack.c.l.b16 %v428
    %v746 = vunpack.c.h.b16 %v428
    %v747 = vunpack.c.l.b16 %v429
    %v748 = vunpack.c.h.b16 %v429
    %v749 = vunpack.c.l.b16 %v430
    %v750 = vunpack.c.h.b16 %v430
    %v751 = vunpack.c.l.b16 %v431
    %v752 = vunpack.c.h.b16 %v431
    %v753 = vunpack.c.l.b16 %v432
    %v754 = vunpack.c.h.b16 %v432
    %v755 = vunpack.c.l.b16 %v433
    %v756 = vunpack.c.h.b16 %v433
    %v757 = vunpack.c.l.b16 %v434
    %v758 = vunpack.c.h.b16 %v434
    %v759 = vunpack.c.l.b16 %v435
    %v760 = vunpack.c.h.b16 %v435
    %v761 = vunpack.c.l.b16 %v436
    %v762 = vunpack.c.h.b16 %v436
    %v763 = vunpack.c.l.b16 %v437
    %v764 = vunpack.c.h.b16 %v437
    %v765 = vunpack.c.l.b16 %v438
    %v766 = vunpack.c.h.b16 %v438
    %v767 = vunpack.c.l.b16 %v439
    %v768 = vunpack.c.h.b16 %v439
    %v769 = vunpack.c.l.b16 %v440
    %v770 = vunpack.c.h.b16 %v440
    %v771 = vunpack.c.l.b16 %v441
    %v772 = vunpack.c.h.b16 %v441
    %v773 = vunpack.c.l.b16 %v442
    %v774 = vunpack.c.h.b16 %v442
    %v775 = vunpack.c.l.b16 %v443
    %v776 = vunpack.c.h.b16 %v443
    %v777 = vunpack.c.l.b16 %v444
    %v778 = vunpack.c.h.b16 %v444
    %v779 = vunpack.c.l.b16 %v445
    %v780 = vunpack.c.h.b16 %v445
    %v781 = vunpack.c.l.b16 %v446
    %v782 = vunpack.c.h.b16 %v446
    %v783 = vunpack.c.l.b16 %v447
    %v784 = vunpack.c.h.b16 %v447
    %v785 = vunpack.c.l.b16 %v448
    %v786 = vunpack.c.h.b16 %v448
    %v787 = vunpack.c.l.b16 %v449
    %v788 = vunpack.c.h.b16 %v449
    %v789 = vunpack.c.l.b16 %v450
    %v790 = vunpack.c.h.b16 %v450
    %v791 = vunpack.c.l.b16 %v451
    %v792 = vunpack.c.h.b16 %v451
    %v793 = vunpack.c.l.b16 %v452
    %v794 = vunpack.c.h.b16 %v452
    %v795 = vunpack.c.l.b16 %v453
    %v796 = vunpack.c.h.b16 %v453
    %v797 = vunpack.c.l.b16 %v454
    %v798 = vunpack.c.h.b16 %v454
    %v799 = vunpack.c.l.b16 %v455
    %v800 = vunpack.c.h.b16 %v455
    %v801 = vunpack.c.l.b16 %v456
    %v802 = vunpack.c.h.b16 %v456
    %v803 = vunpack.c.l.b16 %v457
    %v804 = vunpack.c.h.b16 %v457
    %v805 = vunpack.c.l.b16 %v458
    %v806 = vunpack.c.h.b16 %v458
    %v807 = vunpack.c.l.b16 %v459
    %v808 = vunpack.c.h.b16 %v459
    %v809 = vunpack.c.l.b16 %v460
    %v810 = vunpack.c.h.b16 %v460
    %v811 = vunpack.c.l.b16 %v461
    %v812 = vunpack.c.h.b16 %v461
    %v813 = vunpack.c.l.b16 %v462
    %v814 = vunpack.c.h.b16 %v462
    %v815 = vunpack.c.l.b16 %v463
    %v816 = vunpack.c.h.b16 %v463
    %v817 = vunpack.c.l.b16 %v464
    %v818 = vunpack.c.h.b16 %v464
    %v819 = vunpack.c.l.b16 %v465
    %v820 = vunpack.c.h.b16 %v465
    %v821 = vunpack.c.l.b16 %v466
    %v822 = vunpack.c.h.b16 %v466
    %v823 = vunpack.c.l.b16 %v467
    %v824 = vunpack.c.h.b16 %v467
    %v825 = vunpack.c.l.b16 %v468
    %v826 = vunpack.c.h.b16 %v468
    %v827 = vunpack.c.l.b16 %v469
    %v828 = vunpack.c.h.b16 %v469
    %v829 = vunpack.c.l.b16 %v470
    %v830 = vunpack.c.h.b16 %v470
    %v831 = vunpack.c.l.b16 %v471
    %v832 = vunpack.c.h.b16 %v471
    %v833 = vunpack.c.l.b16 %v472
    %v834 = vunpack.c.h.b16 %v472
    %v835 = vunpack.c.l.b16 %v473
    %v836 = vunpack.c.h.b16 %v473
    %v837 = vunpack.c.l.b16 %v474
    %v838 = vunpack.c.h.b16 %v474
    %v839 = vunpack.c.l.b16 %v475
    %v840 = vunpack.c.h.b16 %v475
    %v841 = vunpack.c.l.b16 %v476
    %v842 = vunpack.c.h.b16 %v476
    %v843 = vunpack.c.l.b16 %v477
    %v844 = vunpack.c.h.b16 %v477
    %v845 = vunpack.c.l.b16 %v478
    %v846 = vunpack.c.h.b16 %v478
    %v847 = vunpack.c.l.b16 %v479
    %v848 = vunpack.c.h.b16 %v479
    %v849 = vunpack.c.l.b16 %v480
    %v850 = vunpack.c.h.b16 %v480
    %v851 = vunpack.c.l.b16 %v481
    %v852 = vunpack.c.h.b16 %v481
    %v853 = vunpack.c.l.b16 %v482
    %v854 = vunpack.c.h.b16 %v482
    %v855 = vunpack.c.l.b16 %v483
    %v856 = vunpack.c.h.b16 %v483
    %v857 = vunpack.c.l.b16 %v484
    %v858 = vunpack.c.h.b16 %v484
    %v859 = vunpack.c.l.b16 %v485
    %v860 = vunpack.c.h.b16 %v485
    %v861 = vunpack.c.l.b16 %v486
    %v862 = vunpack.c.h.b16 %v486
    %v863 = vunpack.c.l.b16 %v487
    %v864 = vunpack.c.h.b16 %v487
    %v865 = vunpack.c.l.b16 %v488
    %v866 = vunpack.c.h.b16 %v488
    %v867 = vunpack.c.l.b16 %v489
    %v868 = vunpack.c.h.b16 %v489
    %v869 = vunpack.c.l.b16 %v490
    %v870 = vunpack.c.h.b16 %v490
    %v871 = vunpack.c.l.b16 %v491
    %v872 = vunpack.c.h.b16 %v491
    %v873 = vunpack.c.l.b16 %v492
    %v874 = vunpack.c.h.b16 %v492
    %v875 = vunpack.c.l.b16 %v493
    %v876 = vunpack.c.h.b16 %v493
    %v877 = vunpack.c.l.b16 %v494
    %v878 = vunpack.c.h.b16 %v494
    %v879 = vpack.c.b16 %v627, %v623
    %v880 = vpack.c.b16 %v628, %v624
    %v881 = vpack.c.b16 %v629, %v625
    %v882 = vpack.c.b16 %v630, %v626
    %v883 = vpack.c.b16 %v635, %v631
    %v884 = vpack.c.b16 %v636, %v632
    %v885 = vpack.c.b16 %v637, %v633
    %v886 = vpack.c.b16 %v638, %v634
    %v887 = vpack.c.b16 %v643, %v639
    %v888 = vpack.c.b16 %v644, %v640
    %v889 = vpack.c.b16 %v645, %v641
    %v890 = vpack.c.b16 %v646, %v642
    %v891 = vpack.c.b16 %v651, %v647
    %v892 = vpack.c.b16 %v652, %v648
    %v893 = vpack.c.b16 %v653, %v649
    %v894 = vpack.c.b16 %v654, %v650
    %v895 = vpack.c.b16 %v659, %v655
    %v896 = vpack.c.b16 %v660, %v656
    %v897 = vpack.c.b16 %v661, %v657
    %v898 = vpack.c.b16 %v662, %v658
    %v899 = vpack.c.b16 %v667, %v663
    %v900 = vpack.c.b16 %v668, %v664
    %v901 = vpack.c.b16 %v669, %v665
    %v902 = vpack.c.b16 %v670, %v666
    %v903 = vpack.c.b16 %v675, %v671
    %v904 = vpack.c.b16 %v676, %v672
    %v905 = vpack.c.b16 %v677, %v673
    %v906 = vpack.c.b16 %v678, %v674
    %v907 = vpack.c.b16 %v683, %v679
    %v908 = vpack.c.b16 %v684, %v680
    %v909 = vpack.c.b16 %v685, %v681
    %v910 = vpack.c.b16 %v686, %v682
    %v911 = vpack.c.b16 %v691, %v687
    %v912 = vpack.c.b16 %v692, %v688
    %v913 = vpack.c.b16 %v693, %v689
    %v914 = vpack.c.b16 %v694, %v690
    %v915 = vpack.c.b16 %v699, %v695
    %v916 = vpack.c.b16 %v700, %v696
    %v917 = vpack.c.b16 %v701, %v697
    %v918 = vpack.c.b16 %v702, %v698
    %v919 = vpack.c.b16 %v707, %v703
    %v920 = vpack.c.b16 %v708, %v704
    %v921 = vpack.c.b16 %v709, %v705
    %v922 = vpack.c.b16 %v710, %v706
    %v923 = vpack.c.b16 %v715, %v711
    %v924 = vpack.c.b16 %v716, %v712
    %v925 = vpack.c.b16 %v717, %v713
    %v926 = vpack.c.b16 %v718, %v714
    %v927 = vpack.c.b16 %v723, %v719
    %v928 = vpack.c.b16 %v724, %v720
    %v929 = vpack.c.b16 %v725, %v721
    %v930 = vpack.c.b16 %v726, %v722
    %v931 = vpack.c.b16 %v731, %v727
    %v932 = vpack.c.b16 %v732, %v728
    %v933 = vpack.c.b16 %v733, %v729
    %v934 = vpack.c.b16 %v734, %v730
    %v935 = vpack.c.b16 %v739, %v735
    %v936 = vpack.c.b16 %v740, %v736
    %v937 = vpack.c.b16 %v741, %v737
    %v938 = vpack.c.b16 %v742, %v738
    %v939 = vpack.c.b16 %v747, %v743
    %v940 = vpack.c.b16 %v748, %v744
    %v941 = vpack.c.b16 %v749, %v745
    %v942 = vpack.c.b16 %v750, %v746
    %v943 = vpack.c.b16 %v755, %v751
    %v944 = vpack.c.b16 %v756, %v752
    %v945 = vpack.c.b16 %v757, %v753
    %v946 = vpack.c.b16 %v758, %v754
    %v947 = vpack.c.b16 %v763, %v759
    %v948 = vpack.c.b16 %v764, %v760
    %v949 = vpack.c.b16 %v765, %v761
    %v950 = vpack.c.b16 %v766, %v762
    %v951 = vpack.c.b16 %v771, %v767
    %v952 = vpack.c.b16 %v772, %v768
    %v953 = vpack.c.b16 %v773, %v769
    %v954 = vpack.c.b16 %v774, %v770
    %v955 = vpack.c.b16 %v779, %v775
    %v956 = vpack.c.b16 %v780, %v776
    %v957 = vpack.c.b16 %v781, %v777
    %v958 = vpack.c.b16 %v782, %v778
    %v959 = vpack.c.b16 %v787, %v783
    %v960 = vpack.c.b16 %v788, %v784
    %v961 = vpack.c.b16 %v789, %v785
    %v962 = vpack.c.b16 %v790, %v786
    %v963 = vpack.c.b16 %v795, %v791
    %v964 = vpack.c.b16 %v796, %v792
    %v965 = vpack.c.b16 %v797, %v793
    %v966 = vpack.c.b16 %v798, %v794
    %v967 = vpack.c.b16 %v803, %v799
    %v968 = vpack.c.b16 %v804, %v800
    %v969 = vpack.c.b16 %v805, %v801
    %v970 = vpack.c.b16 %v806, %v802
    %v971 = vpack.c.b16 %v811, %v807
    %v972 = vpack.c.b16 %v812, %v808
    %v973 = vpack.c.b16 %v813, %v809
    %v974 = vpack.c.b16 %v814, %v810
    %v975 = vpack.c.b16 %v819, %v815
    %v976 = vpack.c.b16 %v820, %v816
    %v977 = vpack.c.b16 %v821, %v817
    %v978 = vpack.c.b16 %v822, %v818
    %v979 = vpack.c.b16 %v827, %v823
    %v980 = vpack.c.b16 %v828, %v824
    %v981 = vpack.c.b16 %v829, %v825
    %v982 = vpack.c.b16 %v830, %v826
    %v983 = vpack.c.b16 %v835, %v831
    %v984 = vpack.c.b16 %v836, %v832
    %v985 = vpack.c.b16 %v837, %v833
    %v986 = vpack.c.b16 %v838, %v834
    %v987 = vpack.c.b16 %v843, %v839
    %v988 = vpack.c.b16 %v844, %v840
    %v989 = vpack.c.b16 %v845, %v841
    %v990 = vpack.c.b16 %v846, %v842
    %v991 = vpack.c.b16 %v851, %v847
    %v992 = vpack.c.b16 %v852, %v848
    %v993 = vpack.c.b16 %v853, %v849
    %v994 = vpack.c.b16 %v854, %v850
    %v995 = vpack.c.b16 %v859, %v855
    %v996 = vpack.c.b16 %v860, %v856
    %v997 = vpack.c.b16 %v861, %v857
    %v998 = vpack.c.b16 %v862, %v858
    %v999 = vpack.c.b16 %v867, %v863
    %v1000 = vpack.c.b16 %v868, %v864
    %v1001 = vpack.c.b16 %v869, %v865
    %v1002 = vpack.c.b16 %v870, %v866
    %v1003 = vpack.c.b16 %v875, %v871
    %v1004 = vpack.c.b16 %v876, %v872
    %v1005 = vpack.c.b16 %v877, %v873
    %v1006 = vpack.c.b16 %v878, %v874
    %1135 = vmatprep.subr.bf16.mxu0 %v908
    %1136 = vmatpush1.bf16.msra.mxu0 %v907
    %1137 = vmatprep.subr.bf16.mxu0 %v904
    %1138 = vmatpush1.bf16.msra.mxu0 %v903
    %1139 = vmatprep.subr.bf16.mxu0 %v900
    %1140 = vmatpush1.bf16.msra.mxu0 %v899
    %1141 = vmatprep.subr.bf16.mxu0 %v896
    %1142 = vmatpush1.bf16.msra.mxu0 %v895
    %1143 = vmatprep.subr.bf16.mxu0 %v892
    %1144 = vmatpush1.bf16.msra.mxu0 %v891
    %1145 = vmatprep.subr.bf16.mxu0 %v888
    %1146 = vmatpush1.bf16.msra.mxu0 %v887
    %1147 = vmatprep.subr.bf16.mxu0 %v884
    %1148 = vmatpush1.bf16.msra.mxu0 %v883
    %1149 = vmatprep.subr.bf16.mxu0 %v880
    %1150 = vmatpush1.bf16.msra.mxu0 %v879
    %1151 = vmatprep.subr.bf16.mxu0 %v940
    %1152 = vmatpush2.bf16.msra.mxu0 %v939
    %1153 = vmatprep.subr.bf16.mxu0 %v936
    %1154 = vmatpush2.bf16.msra.mxu0 %v935
    %1155 = vmatprep.subr.bf16.mxu0 %v932
    %1156 = vmatpush2.bf16.msra.mxu0 %v931
    %1157 = vmatprep.subr.bf16.mxu0 %v928
    %1158 = vmatpush2.bf16.msra.mxu0 %v927
    %1159 = vmatprep.subr.bf16.mxu0 %v924
    %1160 = vmatpush2.bf16.msra.mxu0 %v923
    %1161 = vmatprep.subr.bf16.mxu0 %v920
    %1162 = vmatpush2.bf16.msra.mxu0 %v919
    %1163 = vmatprep.subr.bf16.mxu0 %v916
    %1164 = vmatpush2.bf16.msra.mxu0 %v915
    %1165 = vmatprep.subr.bf16.mxu0 %v912
    %1166 = vmatpush2.bf16.msra.mxu0 %v911
    %1167 = vmatprep.mubr.bf16.mxu0 %v356
    %1168 = vmatmul.mubr.bf16.gmra.mxu0 %v352
    %v1169 = vpop.f32.mrf.mxu0
    %v1170 = vadd.f32 0.0, %v1169
    %v1171 = vpop.f32.mrf.mxu0
    %v1172 = vadd.f32 0.0, %v1171
    %v1173 = vpop.f32.mrf.mxu0
    %v1174 = vadd.f32 0.0, %v1173
    %v1175 = vpop.f32.mrf.mxu0
    %v1176 = vadd.f32 0.0, %v1175
    %1177 = vdwg.mxu0
    %1178 = vmatprep.subr.bf16.mxu0 %v972
    %1179 = vmatpush1.bf16.msra.mxu0 %v971
    %1180 = vmatprep.subr.bf16.mxu0 %v968
    %1181 = vmatpush1.bf16.msra.mxu0 %v967
    %1182 = vmatprep.subr.bf16.mxu0 %v964
    %1183 = vmatpush1.bf16.msra.mxu0 %v963
    %1184 = vmatprep.subr.bf16.mxu0 %v960
    %1185 = vmatpush1.bf16.msra.mxu0 %v959
    %1186 = vmatprep.subr.bf16.mxu0 %v956
    %1187 = vmatpush1.bf16.msra.mxu0 %v955
    %1188 = vmatprep.subr.bf16.mxu0 %v952
    %1189 = vmatpush1.bf16.msra.mxu0 %v951
    %1190 = vmatprep.subr.bf16.mxu0 %v948
    %1191 = vmatpush1.bf16.msra.mxu0 %v947
    %1192 = vmatprep.subr.bf16.mxu0 %v944
    %1193 = vmatpush1.bf16.msra.mxu0 %v943
    %1194 = vmatprep.subr.bf16.mxu0 %v1004
    %1195 = vmatpush2.bf16.msra.mxu0 %v1003
    %1196 = vmatprep.subr.bf16.mxu0 %v1000
    %1197 = vmatpush2.bf16.msra.mxu0 %v999
    %1198 = vmatprep.subr.bf16.mxu0 %v996
    %1199 = vmatpush2.bf16.msra.mxu0 %v995
    %1200 = vmatprep.subr.bf16.mxu0 %v992
    %1201 = vmatpush2.bf16.msra.mxu0 %v991
    %1202 = vmatprep.subr.bf16.mxu0 %v988
    %1203 = vmatpush2.bf16.msra.mxu0 %v987
    %1204 = vmatprep.subr.bf16.mxu0 %v984
    %1205 = vmatpush2.bf16.msra.mxu0 %v983
    %1206 = vmatprep.subr.bf16.mxu0 %v980
    %1207 = vmatpush2.bf16.msra.mxu0 %v979
    %1208 = vmatprep.subr.bf16.mxu0 %v976
    %1209 = vmatpush2.bf16.msra.mxu0 %v975
    %1210 = vmatprep.mubr.bf16.mxu0 %v364
    %1211 = vmatmul.mubr.bf16.gmra.mxu0 %v360
    %v1212 = vpop.f32.mrf.mxu0
    %v1213 = vadd.f32 %v1170, %v1212
    %v1214 = vpop.f32.mrf.mxu0
    %v1215 = vadd.f32 %v1172, %v1214
    %v1216 = vpop.f32.mrf.mxu0
    %v1217 = vadd.f32 %v1174, %v1216
    %v1218 = vpop.f32.mrf.mxu0
    %v1219 = vadd.f32 %v1176, %v1218
    %1220 = vdwg.mxu0
    %1221 = vmatprep.subr.bf16.mxu0 %v910
    %1222 = vmatpush1.bf16.msra.mxu0 %v909
    %1223 = vmatprep.subr.bf16.mxu0 %v906
    %1224 = vmatpush1.bf16.msra.mxu0 %v905
    %1225 = vmatprep.subr.bf16.mxu0 %v902
    %1226 = vmatpush1.bf16.msra.mxu0 %v901
    %1227 = vmatprep.subr.bf16.mxu0 %v898
    %1228 = vmatpush1.bf16.msra.mxu0 %v897
    %1229 = vmatprep.subr.bf16.mxu0 %v894
    %1230 = vmatpush1.bf16.msra.mxu0 %v893
    %1231 = vmatprep.subr.bf16.mxu0 %v890
    %1232 = vmatpush1.bf16.msra.mxu0 %v889
    %1233 = vmatprep.subr.bf16.mxu0 %v886
    %1234 = vmatpush1.bf16.msra.mxu0 %v885
    %1235 = vmatprep.subr.bf16.mxu0 %v882
    %1236 = vmatpush1.bf16.msra.mxu0 %v881
    %1237 = vmatprep.subr.bf16.mxu0 %v942
    %1238 = vmatpush2.bf16.msra.mxu0 %v941
    %1239 = vmatprep.subr.bf16.mxu0 %v938
    %1240 = vmatpush2.bf16.msra.mxu0 %v937
    %1241 = vmatprep.subr.bf16.mxu0 %v934
    %1242 = vmatpush2.bf16.msra.mxu0 %v933
    %1243 = vmatprep.subr.bf16.mxu0 %v930
    %1244 = vmatpush2.bf16.msra.mxu0 %v929
    %1245 = vmatprep.subr.bf16.mxu0 %v926
    %1246 = vmatpush2.bf16.msra.mxu0 %v925
    %1247 = vmatprep.subr.bf16.mxu0 %v922
    %1248 = vmatpush2.bf16.msra.mxu0 %v921
    %1249 = vmatprep.subr.bf16.mxu0 %v918
    %1250 = vmatpush2.bf16.msra.mxu0 %v917
    %1251 = vmatprep.subr.bf16.mxu0 %v914
    %1252 = vmatpush2.bf16.msra.mxu0 %v913
    %1253 = vmatprep.mubr.bf16.mxu0 %v356
    %1254 = vmatmul.mubr.bf16.gmra.mxu0 %v352
    %v1255 = vpop.f32.mrf.mxu0
    %v1256 = vadd.f32 0.0, %v1255
    %v1257 = vpop.f32.mrf.mxu0
    %v1258 = vadd.f32 0.0, %v1257
    %v1259 = vpop.f32.mrf.mxu0
    %v1260 = vadd.f32 0.0, %v1259
    %v1261 = vpop.f32.mrf.mxu0
    %v1262 = vadd.f32 0.0, %v1261
    %1263 = vdwg.mxu0
    %1264 = vmatprep.subr.bf16.mxu0 %v974
    %1265 = vmatpush1.bf16.msra.mxu0 %v973
    %1266 = vmatprep.subr.bf16.mxu0 %v970
    %1267 = vmatpush1.bf16.msra.mxu0 %v969
    %1268 = vmatprep.subr.bf16.mxu0 %v966
    %1269 = vmatpush1.bf16.msra.mxu0 %v965
    %1270 = vmatprep.subr.bf16.mxu0 %v962
    %1271 = vmatpush1.bf16.msra.mxu0 %v961
    %1272 = vmatprep.subr.bf16.mxu0 %v958
    %1273 = vmatpush1.bf16.msra.mxu0 %v957
    %1274 = vmatprep.subr.bf16.mxu0 %v954
    %1275 = vmatpush1.bf16.msra.mxu0 %v953
    %1276 = vmatprep.subr.bf16.mxu0 %v950
    %1277 = vmatpush1.bf16.msra.mxu0 %v949
    %1278 = vmatprep.subr.bf16.mxu0 %v946
    %1279 = vmatpush1.bf16.msra.mxu0 %v945
    %1280 = vmatprep.subr.bf16.mxu0 %v1006
    %1281 = vmatpush2.bf16.msra.mxu0 %v1005
    %1282 = vmatprep.subr.bf16.mxu0 %v1002
    %1283 = vmatpush2.bf16.msra.mxu0 %v1001
    %1284 = vmatprep.subr.bf16.mxu0 %v998
    %1285 = vmatpush2.bf16.msra.mxu0 %v997
    %1286 = vmatprep.subr.bf16.mxu0 %v994
    %1287 = vmatpush2.bf16.msra.mxu0 %v993
    %1288 = vmatprep.subr.bf16.mxu0 %v990
    %1289 = vmatpush2.bf16.msra.mxu0 %v989
    %1290 = vmatprep.subr.bf16.mxu0 %v986
    %1291 = vmatpush2.bf16.msra.mxu0 %v985
    %1292 = vmatprep.subr.bf16.mxu0 %v982
    %1293 = vmatpush2.bf16.msra.mxu0 %v981
    %1294 = vmatprep.subr.bf16.mxu0 %v978
    %1295 = vmatpush2.bf16.msra.mxu0 %v977
    %1296 = vmatprep.mubr.bf16.mxu0 %v364
    %1297 = vmatmul.mubr.bf16.gmra.mxu0 %v360
    %v1298 = vpop.f32.mrf.mxu0
    %v1299 = vadd.f32 %v1256, %v1298
    %v1300 = vpop.f32.mrf.mxu0
    %v1301 = vadd.f32 %v1258, %v1300
    %v1302 = vpop.f32.mrf.mxu0
    %v1303 = vadd.f32 %v1260, %v1302
    %v1304 = vpop.f32.mrf.mxu0
    %v1305 = vadd.f32 %v1262, %v1304
    %1306 = vdwg.mxu0
    %v1435 = vunpack.c.l.b16 %v138
    %v1436 = vunpack.c.h.b16 %v138
    %v1437 = vunpack.c.l.b16 %v139
    %v1438 = vunpack.c.h.b16 %v139
    %v1439 = vunpack.c.l.b16 %v140
    %v1440 = vunpack.c.h.b16 %v140
    %v1441 = vunpack.c.l.b16 %v141
    %v1442 = vunpack.c.h.b16 %v141
    %v1443 = vunpack.c.l.b16 %v142
    %v1444 = vunpack.c.h.b16 %v142
    %v1445 = vunpack.c.l.b16 %v143
    %v1446 = vunpack.c.h.b16 %v143
    %v1447 = vunpack.c.l.b16 %v144
    %v1448 = vunpack.c.h.b16 %v144
    %v1449 = vunpack.c.l.b16 %v145
    %v1450 = vunpack.c.h.b16 %v145
    %v1451 = vunpack.c.l.b16 %v146
    %v1452 = vunpack.c.h.b16 %v146
    %v1453 = vunpack.c.l.b16 %v147
    %v1454 = vunpack.c.h.b16 %v147
    %v1455 = vunpack.c.l.b16 %v148
    %v1456 = vunpack.c.h.b16 %v148
    %v1457 = vunpack.c.l.b16 %v149
    %v1458 = vunpack.c.h.b16 %v149
    %v1459 = vunpack.c.l.b16 %v150
    %v1460 = vunpack.c.h.b16 %v150
    %v1461 = vunpack.c.l.b16 %v151
    %v1462 = vunpack.c.h.b16 %v151
    %v1463 = vunpack.c.l.b16 %v152
    %v1464 = vunpack.c.h.b16 %v152
    %v1465 = vunpack.c.l.b16 %v153
    %v1466 = vunpack.c.h.b16 %v153
    %v1467 = vunpack.c.l.b16 %v154
    %v1468 = vunpack.c.h.b16 %v154
    %v1469 = vunpack.c.l.b16 %v155
    %v1470 = vunpack.c.h.b16 %v155
    %v1471 = vunpack.c.l.b16 %v156
    %v1472 = vunpack.c.h.b16 %v156
    %v1473 = vunpack.c.l.b16 %v157
    %v1474 = vunpack.c.h.b16 %v157
    %v1475 = vunpack.c.l.b16 %v158
    %v1476 = vunpack.c.h.b16 %v158
    %v1477 = vunpack.c.l.b16 %v159
    %v1478 = vunpack.c.h.b16 %v159
    %v1479 = vunpack.c.l.b16 %v160
    %v1480 = vunpack.c.h.b16 %v160
    %v1481 = vunpack.c.l.b16 %v161
    %v1482 = vunpack.c.h.b16 %v161
    %v1483 = vunpack.c.l.b16 %v162
    %v1484 = vunpack.c.h.b16 %v162
    %v1485 = vunpack.c.l.b16 %v163
    %v1486 = vunpack.c.h.b16 %v163
    %v1487 = vunpack.c.l.b16 %v164
    %v1488 = vunpack.c.h.b16 %v164
    %v1489 = vunpack.c.l.b16 %v165
    %v1490 = vunpack.c.h.b16 %v165
    %v1491 = vunpack.c.l.b16 %v166
    %v1492 = vunpack.c.h.b16 %v166
    %v1493 = vunpack.c.l.b16 %v167
    %v1494 = vunpack.c.h.b16 %v167
    %v1495 = vunpack.c.l.b16 %v168
    %v1496 = vunpack.c.h.b16 %v168
    %v1497 = vunpack.c.l.b16 %v169
    %v1498 = vunpack.c.h.b16 %v169
    %v1499 = vunpack.c.l.b16 %v170
    %v1500 = vunpack.c.h.b16 %v170
    %v1501 = vunpack.c.l.b16 %v171
    %v1502 = vunpack.c.h.b16 %v171
    %v1503 = vunpack.c.l.b16 %v172
    %v1504 = vunpack.c.h.b16 %v172
    %v1505 = vunpack.c.l.b16 %v173
    %v1506 = vunpack.c.h.b16 %v173
    %v1507 = vunpack.c.l.b16 %v174
    %v1508 = vunpack.c.h.b16 %v174
    %v1509 = vunpack.c.l.b16 %v175
    %v1510 = vunpack.c.h.b16 %v175
    %v1511 = vunpack.c.l.b16 %v176
    %v1512 = vunpack.c.h.b16 %v176
    %v1513 = vunpack.c.l.b16 %v177
    %v1514 = vunpack.c.h.b16 %v177
    %v1515 = vunpack.c.l.b16 %v178
    %v1516 = vunpack.c.h.b16 %v178
    %v1517 = vunpack.c.l.b16 %v179
    %v1518 = vunpack.c.h.b16 %v179
    %v1519 = vunpack.c.l.b16 %v180
    %v1520 = vunpack.c.h.b16 %v180
    %v1521 = vunpack.c.l.b16 %v181
    %v1522 = vunpack.c.h.b16 %v181
    %v1523 = vunpack.c.l.b16 %v182
    %v1524 = vunpack.c.h.b16 %v182
    %v1525 = vunpack.c.l.b16 %v183
    %v1526 = vunpack.c.h.b16 %v183
    %v1527 = vunpack.c.l.b16 %v184
    %v1528 = vunpack.c.h.b16 %v184
    %v1529 = vunpack.c.l.b16 %v185
    %v1530 = vunpack.c.h.b16 %v185
    %v1531 = vunpack.c.l.b16 %v186
    %v1532 = vunpack.c.h.b16 %v186
    %v1533 = vunpack.c.l.b16 %v187
    %v1534 = vunpack.c.h.b16 %v187
    %v1535 = vunpack.c.l.b16 %v188
    %v1536 = vunpack.c.h.b16 %v188
    %v1537 = vunpack.c.l.b16 %v189
    %v1538 = vunpack.c.h.b16 %v189
    %v1539 = vunpack.c.l.b16 %v190
    %v1540 = vunpack.c.h.b16 %v190
    %v1541 = vunpack.c.l.b16 %v191
    %v1542 = vunpack.c.h.b16 %v191
    %v1543 = vunpack.c.l.b16 %v192
    %v1544 = vunpack.c.h.b16 %v192
    %v1545 = vunpack.c.l.b16 %v193
    %v1546 = vunpack.c.h.b16 %v193
    %v1547 = vunpack.c.l.b16 %v194
    %v1548 = vunpack.c.h.b16 %v194
    %v1549 = vunpack.c.l.b16 %v195
    %v1550 = vunpack.c.h.b16 %v195
    %v1551 = vunpack.c.l.b16 %v196
    %v1552 = vunpack.c.h.b16 %v196
    %v1553 = vunpack.c.l.b16 %v197
    %v1554 = vunpack.c.h.b16 %v197
    %v1555 = vunpack.c.l.b16 %v198
    %v1556 = vunpack.c.h.b16 %v198
    %v1557 = vunpack.c.l.b16 %v199
    %v1558 = vunpack.c.h.b16 %v199
    %v1559 = vunpack.c.l.b16 %v200
    %v1560 = vunpack.c.h.b16 %v200
    %v1561 = vunpack.c.l.b16 %v201
    %v1562 = vunpack.c.h.b16 %v201
    %v1563 = vunpack.c.l.b16 %v202
    %v1564 = vunpack.c.h.b16 %v202
    %v1565 = vunpack.c.l.b16 %v203
    %v1566 = vunpack.c.h.b16 %v203
    %v1567 = vunpack.c.l.b16 %v204
    %v1568 = vunpack.c.h.b16 %v204
    %v1569 = vunpack.c.l.b16 %v205
    %v1570 = vunpack.c.h.b16 %v205
    %v1571 = vunpack.c.l.b16 %v206
    %v1572 = vunpack.c.h.b16 %v206
    %v1573 = vunpack.c.l.b16 %v207
    %v1574 = vunpack.c.h.b16 %v207
    %v1575 = vunpack.c.l.b16 %v208
    %v1576 = vunpack.c.h.b16 %v208
    %v1577 = vunpack.c.l.b16 %v209
    %v1578 = vunpack.c.h.b16 %v209
    %v1579 = vunpack.c.l.b16 %v210
    %v1580 = vunpack.c.h.b16 %v210
    %v1581 = vunpack.c.l.b16 %v211
    %v1582 = vunpack.c.h.b16 %v211
    %v1583 = vunpack.c.l.b16 %v212
    %v1584 = vunpack.c.h.b16 %v212
    %v1585 = vunpack.c.l.b16 %v213
    %v1586 = vunpack.c.h.b16 %v213
    %v1587 = vunpack.c.l.b16 %v214
    %v1588 = vunpack.c.h.b16 %v214
    %v1589 = vunpack.c.l.b16 %v215
    %v1590 = vunpack.c.h.b16 %v215
    %v1591 = vunpack.c.l.b16 %v216
    %v1592 = vunpack.c.h.b16 %v216
    %v1593 = vunpack.c.l.b16 %v217
    %v1594 = vunpack.c.h.b16 %v217
    %v1595 = vunpack.c.l.b16 %v218
    %v1596 = vunpack.c.h.b16 %v218
    %v1597 = vunpack.c.l.b16 %v219
    %v1598 = vunpack.c.h.b16 %v219
    %v1599 = vunpack.c.l.b16 %v220
    %v1600 = vunpack.c.h.b16 %v220
    %v1601 = vunpack.c.l.b16 %v221
    %v1602 = vunpack.c.h.b16 %v221
    %v1603 = vunpack.c.l.b16 %v222
    %v1604 = vunpack.c.h.b16 %v222
    %v1605 = vunpack.c.l.b16 %v223
    %v1606 = vunpack.c.h.b16 %v223
    %v1607 = vunpack.c.l.b16 %v224
    %v1608 = vunpack.c.h.b16 %v224
    %v1609 = vunpack.c.l.b16 %v225
    %v1610 = vunpack.c.h.b16 %v225
    %v1611 = vunpack.c.l.b16 %v226
    %v1612 = vunpack.c.h.b16 %v226
    %v1613 = vunpack.c.l.b16 %v227
    %v1614 = vunpack.c.h.b16 %v227
    %v1615 = vunpack.c.l.b16 %v228
    %v1616 = vunpack.c.h.b16 %v228
    %v1617 = vunpack.c.l.b16 %v229
    %v1618 = vunpack.c.h.b16 %v229
    %v1619 = vunpack.c.l.b16 %v230
    %v1620 = vunpack.c.h.b16 %v230
    %v1621 = vunpack.c.l.b16 %v231
    %v1622 = vunpack.c.h.b16 %v231
    %v1623 = vunpack.c.l.b16 %v232
    %v1624 = vunpack.c.h.b16 %v232
    %v1625 = vunpack.c.l.b16 %v233
    %v1626 = vunpack.c.h.b16 %v233
    %v1627 = vunpack.c.l.b16 %v234
    %v1628 = vunpack.c.h.b16 %v234
    %v1629 = vunpack.c.l.b16 %v235
    %v1630 = vunpack.c.h.b16 %v235
    %v1631 = vunpack.c.l.b16 %v236
    %v1632 = vunpack.c.h.b16 %v236
    %v1633 = vunpack.c.l.b16 %v237
    %v1634 = vunpack.c.h.b16 %v237
    %v1635 = vunpack.c.l.b16 %v238
    %v1636 = vunpack.c.h.b16 %v238
    %v1637 = vunpack.c.l.b16 %v239
    %v1638 = vunpack.c.h.b16 %v239
    %v1639 = vunpack.c.l.b16 %v240
    %v1640 = vunpack.c.h.b16 %v240
    %v1641 = vunpack.c.l.b16 %v241
    %v1642 = vunpack.c.h.b16 %v241
    %v1643 = vunpack.c.l.b16 %v242
    %v1644 = vunpack.c.h.b16 %v242
    %v1645 = vunpack.c.l.b16 %v243
    %v1646 = vunpack.c.h.b16 %v243
    %v1647 = vunpack.c.l.b16 %v244
    %v1648 = vunpack.c.h.b16 %v244
    %v1649 = vunpack.c.l.b16 %v245
    %v1650 = vunpack.c.h.b16 %v245
    %v1651 = vunpack.c.l.b16 %v246
    %v1652 = vunpack.c.h.b16 %v246
    %v1653 = vunpack.c.l.b16 %v247
    %v1654 = vunpack.c.h.b16 %v247
    %v1655 = vunpack.c.l.b16 %v248
    %v1656 = vunpack.c.h.b16 %v248
    %v1657 = vunpack.c.l.b16 %v249
    %v1658 = vunpack.c.h.b16 %v249
    %v1659 = vunpack.c.l.b16 %v250
    %v1660 = vunpack.c.h.b16 %v250
    %v1661 = vunpack.c.l.b16 %v251
    %v1662 = vunpack.c.h.b16 %v251
    %v1663 = vunpack.c.l.b16 %v252
    %v1664 = vunpack.c.h.b16 %v252
    %v1665 = vunpack.c.l.b16 %v253
    %v1666 = vunpack.c.h.b16 %v253
    %v1667 = vunpack.c.l.b16 %v254
    %v1668 = vunpack.c.h.b16 %v254
    %v1669 = vunpack.c.l.b16 %v255
    %v1670 = vunpack.c.h.b16 %v255
    %v1671 = vunpack.c.l.b16 %v256
    %v1672 = vunpack.c.h.b16 %v256
    %v1673 = vunpack.c.l.b16 %v257
    %v1674 = vunpack.c.h.b16 %v257
    %v1675 = vunpack.c.l.b16 %v258
    %v1676 = vunpack.c.h.b16 %v258
    %v1677 = vunpack.c.l.b16 %v259
    %v1678 = vunpack.c.h.b16 %v259
    %v1679 = vunpack.c.l.b16 %v260
    %v1680 = vunpack.c.h.b16 %v260
    %v1681 = vunpack.c.l.b16 %v261
    %v1682 = vunpack.c.h.b16 %v261
    %v1683 = vunpack.c.l.b16 %v262
    %v1684 = vunpack.c.h.b16 %v262
    %v1685 = vunpack.c.l.b16 %v263
    %v1686 = vunpack.c.h.b16 %v263
    %v1687 = vunpack.c.l.b16 %v264
    %v1688 = vunpack.c.h.b16 %v264
    %v1689 = vunpack.c.l.b16 %v265
    %v1690 = vunpack.c.h.b16 %v265
    %v1691 = vpack.c.b16 %v1439, %v1435
    %v1692 = vpack.c.b16 %v1440, %v1436
    %v1693 = vpack.c.b16 %v1441, %v1437
    %v1694 = vpack.c.b16 %v1442, %v1438
    %v1695 = vpack.c.b16 %v1447, %v1443
    %v1696 = vpack.c.b16 %v1448, %v1444
    %v1697 = vpack.c.b16 %v1449, %v1445
    %v1698 = vpack.c.b16 %v1450, %v1446
    %v1699 = vpack.c.b16 %v1455, %v1451
    %v1700 = vpack.c.b16 %v1456, %v1452
    %v1701 = vpack.c.b16 %v1457, %v1453
    %v1702 = vpack.c.b16 %v1458, %v1454
    %v1703 = vpack.c.b16 %v1463, %v1459
    %v1704 = vpack.c.b16 %v1464, %v1460
    %v1705 = vpack.c.b16 %v1465, %v1461
    %v1706 = vpack.c.b16 %v1466, %v1462
    %v1707 = vpack.c.b16 %v1471, %v1467
    %v1708 = vpack.c.b16 %v1472, %v1468
    %v1709 = vpack.c.b16 %v1473, %v1469
    %v1710 = vpack.c.b16 %v1474, %v1470
    %v1711 = vpack.c.b16 %v1479, %v1475
    %v1712 = vpack.c.b16 %v1480, %v1476
    %v1713 = vpack.c.b16 %v1481, %v1477
    %v1714 = vpack.c.b16 %v1482, %v1478
    %v1715 = vpack.c.b16 %v1487, %v1483
    %v1716 = vpack.c.b16 %v1488, %v1484
    %v1717 = vpack.c.b16 %v1489, %v1485
    %v1718 = vpack.c.b16 %v1490, %v1486
    %v1719 = vpack.c.b16 %v1495, %v1491
    %v1720 = vpack.c.b16 %v1496, %v1492
    %v1721 = vpack.c.b16 %v1497, %v1493
    %v1722 = vpack.c.b16 %v1498, %v1494
    %v1723 = vpack.c.b16 %v1503, %v1499
    %v1724 = vpack.c.b16 %v1504, %v1500
    %v1725 = vpack.c.b16 %v1505, %v1501
    %v1726 = vpack.c.b16 %v1506, %v1502
    %v1727 = vpack.c.b16 %v1511, %v1507
    %v1728 = vpack.c.b16 %v1512, %v1508
    %v1729 = vpack.c.b16 %v1513, %v1509
    %v1730 = vpack.c.b16 %v1514, %v1510
    %v1731 = vpack.c.b16 %v1519, %v1515
    %v1732 = vpack.c.b16 %v1520, %v1516
    %v1733 = vpack.c.b16 %v1521, %v1517
    %v1734 = vpack.c.b16 %v1522, %v1518
    %v1735 = vpack.c.b16 %v1527, %v1523
    %v1736 = vpack.c.b16 %v1528, %v1524
    %v1737 = vpack.c.b16 %v1529, %v1525
    %v1738 = vpack.c.b16 %v1530, %v1526
    %v1739 = vpack.c.b16 %v1535, %v1531
    %v1740 = vpack.c.b16 %v1536, %v1532
    %v1741 = vpack.c.b16 %v1537, %v1533
    %v1742 = vpack.c.b16 %v1538, %v1534
    %v1743 = vpack.c.b16 %v1543, %v1539
    %v1744 = vpack.c.b16 %v1544, %v1540
    %v1745 = vpack.c.b16 %v1545, %v1541
    %v1746 = vpack.c.b16 %v1546, %v1542
    %v1747 = vpack.c.b16 %v1551, %v1547
    %v1748 = vpack.c.b16 %v1552, %v1548
    %v1749 = vpack.c.b16 %v1553, %v1549
    %v1750 = vpack.c.b16 %v1554, %v1550
    %v1751 = vpack.c.b16 %v1559, %v1555
    %v1752 = vpack.c.b16 %v1560, %v1556
    %v1753 = vpack.c.b16 %v1561, %v1557
    %v1754 = vpack.c.b16 %v1562, %v1558
    %v1755 = vpack.c.b16 %v1567, %v1563
    %v1756 = vpack.c.b16 %v1568, %v1564
    %v1757 = vpack.c.b16 %v1569, %v1565
    %v1758 = vpack.c.b16 %v1570, %v1566
    %v1759 = vpack.c.b16 %v1575, %v1571
    %v1760 = vpack.c.b16 %v1576, %v1572
    %v1761 = vpack.c.b16 %v1577, %v1573
    %v1762 = vpack.c.b16 %v1578, %v1574
    %v1763 = vpack.c.b16 %v1583, %v1579
    %v1764 = vpack.c.b16 %v1584, %v1580
    %v1765 = vpack.c.b16 %v1585, %v1581
    %v1766 = vpack.c.b16 %v1586, %v1582
    %v1767 = vpack.c.b16 %v1591, %v1587
    %v1768 = vpack.c.b16 %v1592, %v1588
    %v1769 = vpack.c.b16 %v1593, %v1589
    %v1770 = vpack.c.b16 %v1594, %v1590
    %v1771 = vpack.c.b16 %v1599, %v1595
    %v1772 = vpack.c.b16 %v1600, %v1596
    %v1773 = vpack.c.b16 %v1601, %v1597
    %v1774 = vpack.c.b16 %v1602, %v1598
    %v1775 = vpack.c.b16 %v1607, %v1603
    %v1776 = vpack.c.b16 %v1608, %v1604
    %v1777 = vpack.c.b16 %v1609, %v1605
    %v1778 = vpack.c.b16 %v1610, %v1606
    %v1779 = vpack.c.b16 %v1615, %v1611
    %v1780 = vpack.c.b16 %v1616, %v1612
    %v1781 = vpack.c.b16 %v1617, %v1613
    %v1782 = vpack.c.b16 %v1618, %v1614
    %v1783 = vpack.c.b16 %v1623, %v1619
    %v1784 = vpack.c.b16 %v1624, %v1620
    %v1785 = vpack.c.b16 %v1625, %v1621
    %v1786 = vpack.c.b16 %v1626, %v1622
    %v1787 = vpack.c.b16 %v1631, %v1627
    %v1788 = vpack.c.b16 %v1632, %v1628
    %v1789 = vpack.c.b16 %v1633, %v1629
    %v1790 = vpack.c.b16 %v1634, %v1630
    %v1791 = vpack.c.b16 %v1639, %v1635
    %v1792 = vpack.c.b16 %v1640, %v1636
    %v1793 = vpack.c.b16 %v1641, %v1637
    %v1794 = vpack.c.b16 %v1642, %v1638
    %v1795 = vpack.c.b16 %v1647, %v1643
    %v1796 = vpack.c.b16 %v1648, %v1644
    %v1797 = vpack.c.b16 %v1649, %v1645
    %v1798 = vpack.c.b16 %v1650, %v1646
    %v1799 = vpack.c.b16 %v1655, %v1651
    %v1800 = vpack.c.b16 %v1656, %v1652
    %v1801 = vpack.c.b16 %v1657, %v1653
    %v1802 = vpack.c.b16 %v1658, %v1654
    %v1803 = vpack.c.b16 %v1663, %v1659
    %v1804 = vpack.c.b16 %v1664, %v1660
    %v1805 = vpack.c.b16 %v1665, %v1661
    %v1806 = vpack.c.b16 %v1666, %v1662
    %v1807 = vpack.c.b16 %v1671, %v1667
    %v1808 = vpack.c.b16 %v1672, %v1668
    %v1809 = vpack.c.b16 %v1673, %v1669
    %v1810 = vpack.c.b16 %v1674, %v1670
    %v1811 = vpack.c.b16 %v1679, %v1675
    %v1812 = vpack.c.b16 %v1680, %v1676
    %v1813 = vpack.c.b16 %v1681, %v1677
    %v1814 = vpack.c.b16 %v1682, %v1678
    %v1815 = vpack.c.b16 %v1687, %v1683
    %v1816 = vpack.c.b16 %v1688, %v1684
    %v1817 = vpack.c.b16 %v1689, %v1685
    %v1818 = vpack.c.b16 %v1690, %v1686
    %1947 = vmatprep.subr.bf16.mxu0 %v1720
    %1948 = vmatpush1.bf16.msra.mxu0 %v1719
    %1949 = vmatprep.subr.bf16.mxu0 %v1716
    %1950 = vmatpush1.bf16.msra.mxu0 %v1715
    %1951 = vmatprep.subr.bf16.mxu0 %v1712
    %1952 = vmatpush1.bf16.msra.mxu0 %v1711
    %1953 = vmatprep.subr.bf16.mxu0 %v1708
    %1954 = vmatpush1.bf16.msra.mxu0 %v1707
    %1955 = vmatprep.subr.bf16.mxu0 %v1704
    %1956 = vmatpush1.bf16.msra.mxu0 %v1703
    %1957 = vmatprep.subr.bf16.mxu0 %v1700
    %1958 = vmatpush1.bf16.msra.mxu0 %v1699
    %1959 = vmatprep.subr.bf16.mxu0 %v1696
    %1960 = vmatpush1.bf16.msra.mxu0 %v1695
    %1961 = vmatprep.subr.bf16.mxu0 %v1692
    %1962 = vmatpush1.bf16.msra.mxu0 %v1691
    %1963 = vmatprep.subr.bf16.mxu0 %v1752
    %1964 = vmatpush2.bf16.msra.mxu0 %v1751
    %1965 = vmatprep.subr.bf16.mxu0 %v1748
    %1966 = vmatpush2.bf16.msra.mxu0 %v1747
    %1967 = vmatprep.subr.bf16.mxu0 %v1744
    %1968 = vmatpush2.bf16.msra.mxu0 %v1743
    %1969 = vmatprep.subr.bf16.mxu0 %v1740
    %1970 = vmatpush2.bf16.msra.mxu0 %v1739
    %1971 = vmatprep.subr.bf16.mxu0 %v1736
    %1972 = vmatpush2.bf16.msra.mxu0 %v1735
    %1973 = vmatprep.subr.bf16.mxu0 %v1732
    %1974 = vmatpush2.bf16.msra.mxu0 %v1731
    %1975 = vmatprep.subr.bf16.mxu0 %v1728
    %1976 = vmatpush2.bf16.msra.mxu0 %v1727
    %1977 = vmatprep.subr.bf16.mxu0 %v1724
    %1978 = vmatpush2.bf16.msra.mxu0 %v1723
    %1979 = vmatprep.mubr.bf16.mxu0 %v128
    %1980 = vmatmul.mubr.bf16.gmra.mxu0 %v124
    %v1981 = vpop.f32.mrf.mxu0
    %v1982 = vadd.f32 %v1213, %v1981
    %v1983 = vpop.f32.mrf.mxu0
    %v1984 = vadd.f32 %v1215, %v1983
    %v1985 = vpop.f32.mrf.mxu0
    %v1986 = vadd.f32 %v1217, %v1985
    %v1987 = vpop.f32.mrf.mxu0
    %v1988 = vadd.f32 %v1219, %v1987
    %1989 = vdwg.mxu0
    %1990 = vmatprep.subr.bf16.mxu0 %v1784
    %1991 = vmatpush1.bf16.msra.mxu0 %v1783
    %1992 = vmatprep.subr.bf16.mxu0 %v1780
    %1993 = vmatpush1.bf16.msra.mxu0 %v1779
    %1994 = vmatprep.subr.bf16.mxu0 %v1776
    %1995 = vmatpush1.bf16.msra.mxu0 %v1775
    %1996 = vmatprep.subr.bf16.mxu0 %v1772
    %1997 = vmatpush1.bf16.msra.mxu0 %v1771
    %1998 = vmatprep.subr.bf16.mxu0 %v1768
    %1999 = vmatpush1.bf16.msra.mxu0 %v1767
    %2000 = vmatprep.subr.bf16.mxu0 %v1764
    %2001 = vmatpush1.bf16.msra.mxu0 %v1763
    %2002 = vmatprep.subr.bf16.mxu0 %v1760
    %2003 = vmatpush1.bf16.msra.mxu0 %v1759
    %2004 = vmatprep.subr.bf16.mxu0 %v1756
    %2005 = vmatpush1.bf16.msra.mxu0 %v1755
    %2006 = vmatprep.subr.bf16.mxu0 %v1816
    %2007 = vmatpush2.bf16.msra.mxu0 %v1815
    %2008 = vmatprep.subr.bf16.mxu0 %v1812
    %2009 = vmatpush2.bf16.msra.mxu0 %v1811
    %2010 = vmatprep.subr.bf16.mxu0 %v1808
    %2011 = vmatpush2.bf16.msra.mxu0 %v1807
    %2012 = vmatprep.subr.bf16.mxu0 %v1804
    %2013 = vmatpush2.bf16.msra.mxu0 %v1803
    %2014 = vmatprep.subr.bf16.mxu0 %v1800
    %2015 = vmatpush2.bf16.msra.mxu0 %v1799
    %2016 = vmatprep.subr.bf16.mxu0 %v1796
    %2017 = vmatpush2.bf16.msra.mxu0 %v1795
    %2018 = vmatprep.subr.bf16.mxu0 %v1792
    %2019 = vmatpush2.bf16.msra.mxu0 %v1791
    %2020 = vmatprep.subr.bf16.mxu0 %v1788
    %2021 = vmatpush2.bf16.msra.mxu0 %v1787
    %2022 = vmatprep.mubr.bf16.mxu0 %v136
    %2023 = vmatmul.mubr.bf16.gmra.mxu0 %v132
    %v2024 = vpop.f32.mrf.mxu0
    %v2025 = vadd.f32 %v1982, %v2024
    %v2026 = vpop.f32.mrf.mxu0
    %v2027 = vadd.f32 %v1984, %v2026
    %v2028 = vpop.f32.mrf.mxu0
    %v2029 = vadd.f32 %v1986, %v2028
    %v2030 = vpop.f32.mrf.mxu0
    %v2031 = vadd.f32 %v1988, %v2030
    %2032 = vdwg.mxu0
    %2033 = vmatprep.subr.bf16.mxu0 %v1722
    %2034 = vmatpush1.bf16.msra.mxu0 %v1721
    %2035 = vmatprep.subr.bf16.mxu0 %v1718
    %2036 = vmatpush1.bf16.msra.mxu0 %v1717
    %2037 = vmatprep.subr.bf16.mxu0 %v1714
    %2038 = vmatpush1.bf16.msra.mxu0 %v1713
    %2039 = vmatprep.subr.bf16.mxu0 %v1710
    %2040 = vmatpush1.bf16.msra.mxu0 %v1709
    %2041 = vmatprep.subr.bf16.mxu0 %v1706
    %2042 = vmatpush1.bf16.msra.mxu0 %v1705
    %2043 = vmatprep.subr.bf16.mxu0 %v1702
    %2044 = vmatpush1.bf16.msra.mxu0 %v1701
    %2045 = vmatprep.subr.bf16.mxu0 %v1698
    %2046 = vmatpush1.bf16.msra.mxu0 %v1697
    %2047 = vmatprep.subr.bf16.mxu0 %v1694
    %2048 = vmatpush1.bf16.msra.mxu0 %v1693
    %2049 = vmatprep.subr.bf16.mxu0 %v1754
    %2050 = vmatpush2.bf16.msra.mxu0 %v1753
    %2051 = vmatprep.subr.bf16.mxu0 %v1750
    %2052 = vmatpush2.bf16.msra.mxu0 %v1749
    %2053 = vmatprep.subr.bf16.mxu0 %v1746
    %2054 = vmatpush2.bf16.msra.mxu0 %v1745
    %2055 = vmatprep.subr.bf16.mxu0 %v1742
    %2056 = vmatpush2.bf16.msra.mxu0 %v1741
    %2057 = vmatprep.subr.bf16.mxu0 %v1738
    %2058 = vmatpush2.bf16.msra.mxu0 %v1737
    %2059 = vmatprep.subr.bf16.mxu0 %v1734
    %2060 = vmatpush2.bf16.msra.mxu0 %v1733
    %2061 = vmatprep.subr.bf16.mxu0 %v1730
    %2062 = vmatpush2.bf16.msra.mxu0 %v1729
    %2063 = vmatprep.subr.bf16.mxu0 %v1726
    %2064 = vmatpush2.bf16.msra.mxu0 %v1725
    %2065 = vmatprep.mubr.bf16.mxu0 %v128
    %2066 = vmatmul.mubr.bf16.gmra.mxu0 %v124
    %v2067 = vpop.f32.mrf.mxu0
    %v2068 = vadd.f32 %v1299, %v2067
    %v2069 = vpop.f32.mrf.mxu0
    %v2070 = vadd.f32 %v1301, %v2069
    %v2071 = vpop.f32.mrf.mxu0
    %v2072 = vadd.f32 %v1303, %v2071
    %v2073 = vpop.f32.mrf.mxu0
    %v2074 = vadd.f32 %v1305, %v2073
    %2075 = vdwg.mxu0
    %2076 = vmatprep.subr.bf16.mxu0 %v1786
    %2077 = vmatpush1.bf16.msra.mxu0 %v1785
    %2078 = vmatprep.subr.bf16.mxu0 %v1782
    %2079 = vmatpush1.bf16.msra.mxu0 %v1781
    %2080 = vmatprep.subr.bf16.mxu0 %v1778
    %2081 = vmatpush1.bf16.msra.mxu0 %v1777
    %2082 = vmatprep.subr.bf16.mxu0 %v1774
    %2083 = vmatpush1.bf16.msra.mxu0 %v1773
    %2084 = vmatprep.subr.bf16.mxu0 %v1770
    %2085 = vmatpush1.bf16.msra.mxu0 %v1769
    %2086 = vmatprep.subr.bf16.mxu0 %v1766
    %2087 = vmatpush1.bf16.msra.mxu0 %v1765
    %2088 = vmatprep.subr.bf16.mxu0 %v1762
    %2089 = vmatpush1.bf16.msra.mxu0 %v1761
    %2090 = vmatprep.subr.bf16.mxu0 %v1758
    %2091 = vmatpush1.bf16.msra.mxu0 %v1757
    %2092 = vmatprep.subr.bf16.mxu0 %v1818
    %2093 = vmatpush2.bf16.msra.mxu0 %v1817
    %2094 = vmatprep.subr.bf16.mxu0 %v1814
    %2095 = vmatpush2.bf16.msra.mxu0 %v1813
    %2096 = vmatprep.subr.bf16.mxu0 %v1810
    %2097 = vmatpush2.bf16.msra.mxu0 %v1809
    %2098 = vmatprep.subr.bf16.mxu0 %v1806
    %2099 = vmatpush2.bf16.msra.mxu0 %v1805
    %2100 = vmatprep.subr.bf16.mxu0 %v1802
    %2101 = vmatpush2.bf16.msra.mxu0 %v1801
    %2102 = vmatprep.subr.bf16.mxu0 %v1798
    %2103 = vmatpush2.bf16.msra.mxu0 %v1797
    %2104 = vmatprep.subr.bf16.mxu0 %v1794
    %2105 = vmatpush2.bf16.msra.mxu0 %v1793
    %2106 = vmatprep.subr.bf16.mxu0 %v1790
    %2107 = vmatpush2.bf16.msra.mxu0 %v1789
    %2108 = vmatprep.mubr.bf16.mxu0 %v136
    %2109 = vmatmul.mubr.bf16.gmra.mxu0 %v132
    %v2110 = vpop.f32.mrf.mxu0
    %v2111 = vadd.f32 %v2068, %v2110
    %v2112 = vpop.f32.mrf.mxu0
    %v2113 = vadd.f32 %v2070, %v2112
    %v2114 = vpop.f32.mrf.mxu0
    %v2115 = vadd.f32 %v2072, %v2114
    %v2116 = vpop.f32.mrf.mxu0
    %v2117 = vadd.f32 %v2074, %v2116
    %2118 = vdwg.mxu0
    %v2119 = vld [vmem:[#allocation2] sm:$0xee]
    %v2120 = vld [vmem:[#allocation2 + $0x8] sm:$0xee]
    %v2121 = vld [vmem:[#allocation2 + $0x10] sm:$0xcc]
    %v2122 = vld [vmem:[#allocation2 + $0x18] sm:$0xcc]
    %v2125 = vunpack.c.l.b16 %v2119
    %v2126 = vunpack.c.h.b16 %v2119
    %v2127 = vunpack.c.l.b16 %v2120
    %v2128 = vunpack.c.h.b16 %v2120
    %v2129 = vpack.c.b16 %v272, %v2125
    %v2130 = vpack.c.b16 %v273, %v2126
    %v2131 = vpack.c.b16 %v274, %v2127
    %v2132 = vpack.c.b16 %v275, %v2128
    %v2133 = vrot.slane %v2129, 1
    %v2134 = vrot.slane %v2130, 1
    %v2135 = vrot.slane %v2131, 1
    %v2136 = vrot.slane %v2132, 1
    %v2139 = vunpack.c.l.b16 %v2121
    %v2140 = vunpack.c.h.b16 %v2121
    %v2141 = vunpack.c.l.b16 %v2122
    %v2142 = vunpack.c.h.b16 %v2122
    %v2143 = vpack.c.b16 %v310, %v2139
    %v2144 = vpack.c.b16 %v311, %v2140
    %v2145 = vpack.c.b16 %v312, %v2141
    %v2146 = vpack.c.b16 %v313, %v2142
    %v2147 = vrot.slane %v2143, 6
    %v2148 = vrot.slane %v2144, 6
    %v2149 = vrot.slane %v2145, 6
    %v2150 = vrot.slane %v2146, 6
    %v2153 = vsel %vm121, %v2133, %v2147
    %v2157 = vsel %vm121, %v2134, %v2148
    %v2161 = vsel %vm121, %v2135, %v2149
    %v2165 = vsel %vm121, %v2136, %v2150
    %s2167 = scalar_lea.vmem [#allocation5], 2048
    %v2168 = vld [vmem:[%s2167] sm:$0xff]
    %v2169 = vld [vmem:[%s2167 + $0x8] sm:$0xff]
    %v2170 = vld [vmem:[%s2167 + $0x10] sm:$0xff]
    %v2171 = vld [vmem:[%s2167 + $0x18] sm:$0xff]
    %v2172 = vld [vmem:[%s2167 + $0x20] sm:$0xff]
    %v2173 = vld [vmem:[%s2167 + $0x28] sm:$0xff]
    %v2174 = vld [vmem:[%s2167 + $0x30] sm:$0xff]
    %v2175 = vld [vmem:[%s2167 + $0x38] sm:$0xff]
    %v2176 = vld [vmem:[%s2167 + $0x40] sm:$0xff]
    %v2177 = vld [vmem:[%s2167 + $0x48] sm:$0xff]
    %v2178 = vld [vmem:[%s2167 + $0x50] sm:$0xff]
    %v2179 = vld [vmem:[%s2167 + $0x58] sm:$0xff]
    %v2180 = vld [vmem:[%s2167 + $0x60] sm:$0xff]
    %v2181 = vld [vmem:[%s2167 + $0x68] sm:$0xff]
    %v2182 = vld [vmem:[%s2167 + $0x70] sm:$0xff]
    %v2183 = vld [vmem:[%s2167 + $0x78] sm:$0xff]
    %v2184 = vld [vmem:[%s2167 + $0x80] sm:$0xff]
    %v2185 = vld [vmem:[%s2167 + $0x88] sm:$0xff]
    %v2186 = vld [vmem:[%s2167 + $0x90] sm:$0xff]
    %v2187 = vld [vmem:[%s2167 + $0x98] sm:$0xff]
    %v2188 = vld [vmem:[%s2167 + $0xa0] sm:$0xff]
    %v2189 = vld [vmem:[%s2167 + $0xa8] sm:$0xff]
    %v2190 = vld [vmem:[%s2167 + $0xb0] sm:$0xff]
    %v2191 = vld [vmem:[%s2167 + $0xb8] sm:$0xff]
    %v2192 = vld [vmem:[%s2167 + $0xc0] sm:$0xff]
    %v2193 = vld [vmem:[%s2167 + $0xc8] sm:$0xff]
    %v2194 = vld [vmem:[%s2167 + $0xd0] sm:$0xff]
    %v2195 = vld [vmem:[%s2167 + $0xd8] sm:$0xff]
    %v2196 = vld [vmem:[%s2167 + $0xe0] sm:$0xff]
    %v2197 = vld [vmem:[%s2167 + $0xe8] sm:$0xff]
    %v2198 = vld [vmem:[%s2167 + $0xf0] sm:$0xff]
    %v2199 = vld [vmem:[%s2167 + $0xf8] sm:$0xff]
    %v2200 = vld [vmem:[%s2167 + $0x100] sm:$0xff]
    %v2201 = vld [vmem:[%s2167 + $0x108] sm:$0xff]
    %v2202 = vld [vmem:[%s2167 + $0x110] sm:$0xff]
    %v2203 = vld [vmem:[%s2167 + $0x118] sm:$0xff]
    %v2204 = vld [vmem:[%s2167 + $0x120] sm:$0xff]
    %v2205 = vld [vmem:[%s2167 + $0x128] sm:$0xff]
    %v2206 = vld [vmem:[%s2167 + $0x130] sm:$0xff]
    %v2207 = vld [vmem:[%s2167 + $0x138] sm:$0xff]
    %v2208 = vld [vmem:[%s2167 + $0x140] sm:$0xff]
    %v2209 = vld [vmem:[%s2167 + $0x148] sm:$0xff]
    %v2210 = vld [vmem:[%s2167 + $0x150] sm:$0xff]
    %v2211 = vld [vmem:[%s2167 + $0x158] sm:$0xff]
    %v2212 = vld [vmem:[%s2167 + $0x160] sm:$0xff]
    %v2213 = vld [vmem:[%s2167 + $0x168] sm:$0xff]
    %v2214 = vld [vmem:[%s2167 + $0x170] sm:$0xff]
    %v2215 = vld [vmem:[%s2167 + $0x178] sm:$0xff]
    %v2216 = vld [vmem:[%s2167 + $0x180] sm:$0xff]
    %v2217 = vld [vmem:[%s2167 + $0x188] sm:$0xff]
    %v2218 = vld [vmem:[%s2167 + $0x190] sm:$0xff]
    %v2219 = vld [vmem:[%s2167 + $0x198] sm:$0xff]
    %v2220 = vld [vmem:[%s2167 + $0x1a0] sm:$0xff]
    %v2221 = vld [vmem:[%s2167 + $0x1a8] sm:$0xff]
    %v2222 = vld [vmem:[%s2167 + $0x1b0] sm:$0xff]
    %v2223 = vld [vmem:[%s2167 + $0x1b8] sm:$0xff]
    %v2224 = vld [vmem:[%s2167 + $0x1c0] sm:$0xff]
    %v2225 = vld [vmem:[%s2167 + $0x1c8] sm:$0xff]
    %v2226 = vld [vmem:[%s2167 + $0x1d0] sm:$0xff]
    %v2227 = vld [vmem:[%s2167 + $0x1d8] sm:$0xff]
    %v2228 = vld [vmem:[%s2167 + $0x1e0] sm:$0xff]
    %v2229 = vld [vmem:[%s2167 + $0x1e8] sm:$0xff]
    %v2230 = vld [vmem:[%s2167 + $0x1f0] sm:$0xff]
    %v2231 = vld [vmem:[%s2167 + $0x1f8] sm:$0xff]
    %v2232 = vld [vmem:[%s2167 + $0x200] sm:$0xff]
    %v2233 = vld [vmem:[%s2167 + $0x208] sm:$0xff]
    %v2234 = vld [vmem:[%s2167 + $0x210] sm:$0xff]
    %v2235 = vld [vmem:[%s2167 + $0x218] sm:$0xff]
    %v2236 = vld [vmem:[%s2167 + $0x220] sm:$0xff]
    %v2237 = vld [vmem:[%s2167 + $0x228] sm:$0xff]
    %v2238 = vld [vmem:[%s2167 + $0x230] sm:$0xff]
    %v2239 = vld [vmem:[%s2167 + $0x238] sm:$0xff]
    %v2240 = vld [vmem:[%s2167 + $0x240] sm:$0xff]
    %v2241 = vld [vmem:[%s2167 + $0x248] sm:$0xff]
    %v2242 = vld [vmem:[%s2167 + $0x250] sm:$0xff]
    %v2243 = vld [vmem:[%s2167 + $0x258] sm:$0xff]
    %v2244 = vld [vmem:[%s2167 + $0x260] sm:$0xff]
    %v2245 = vld [vmem:[%s2167 + $0x268] sm:$0xff]
    %v2246 = vld [vmem:[%s2167 + $0x270] sm:$0xff]
    %v2247 = vld [vmem:[%s2167 + $0x278] sm:$0xff]
    %v2248 = vld [vmem:[%s2167 + $0x280] sm:$0xff]
    %v2249 = vld [vmem:[%s2167 + $0x288] sm:$0xff]
    %v2250 = vld [vmem:[%s2167 + $0x290] sm:$0xff]
    %v2251 = vld [vmem:[%s2167 + $0x298] sm:$0xff]
    %v2252 = vld [vmem:[%s2167 + $0x2a0] sm:$0xff]
    %v2253 = vld [vmem:[%s2167 + $0x2a8] sm:$0xff]
    %v2254 = vld [vmem:[%s2167 + $0x2b0] sm:$0xff]
    %v2255 = vld [vmem:[%s2167 + $0x2b8] sm:$0xff]
    %v2256 = vld [vmem:[%s2167 + $0x2c0] sm:$0xff]
    %v2257 = vld [vmem:[%s2167 + $0x2c8] sm:$0xff]
    %v2258 = vld [vmem:[%s2167 + $0x2d0] sm:$0xff]
    %v2259 = vld [vmem:[%s2167 + $0x2d8] sm:$0xff]
    %v2260 = vld [vmem:[%s2167 + $0x2e0] sm:$0xff]
    %v2261 = vld [vmem:[%s2167 + $0x2e8] sm:$0xff]
    %v2262 = vld [vmem:[%s2167 + $0x2f0] sm:$0xff]
    %v2263 = vld [vmem:[%s2167 + $0x2f8] sm:$0xff]
    %v2264 = vld [vmem:[%s2167 + $0x300] sm:$0xff]
    %v2265 = vld [vmem:[%s2167 + $0x308] sm:$0xff]
    %v2266 = vld [vmem:[%s2167 + $0x310] sm:$0xff]
    %v2267 = vld [vmem:[%s2167 + $0x318] sm:$0xff]
    %v2268 = vld [vmem:[%s2167 + $0x320] sm:$0xff]
    %v2269 = vld [vmem:[%s2167 + $0x328] sm:$0xff]
    %v2270 = vld [vmem:[%s2167 + $0x330] sm:$0xff]
    %v2271 = vld [vmem:[%s2167 + $0x338] sm:$0xff]
    %v2272 = vld [vmem:[%s2167 + $0x340] sm:$0xff]
    %v2273 = vld [vmem:[%s2167 + $0x348] sm:$0xff]
    %v2274 = vld [vmem:[%s2167 + $0x350] sm:$0xff]
    %v2275 = vld [vmem:[%s2167 + $0x358] sm:$0xff]
    %v2276 = vld [vmem:[%s2167 + $0x360] sm:$0xff]
    %v2277 = vld [vmem:[%s2167 + $0x368] sm:$0xff]
    %v2278 = vld [vmem:[%s2167 + $0x370] sm:$0xff]
    %v2279 = vld [vmem:[%s2167 + $0x378] sm:$0xff]
    %v2280 = vld [vmem:[%s2167 + $0x380] sm:$0xff]
    %v2281 = vld [vmem:[%s2167 + $0x388] sm:$0xff]
    %v2282 = vld [vmem:[%s2167 + $0x390] sm:$0xff]
    %v2283 = vld [vmem:[%s2167 + $0x398] sm:$0xff]
    %v2284 = vld [vmem:[%s2167 + $0x3a0] sm:$0xff]
    %v2285 = vld [vmem:[%s2167 + $0x3a8] sm:$0xff]
    %v2286 = vld [vmem:[%s2167 + $0x3b0] sm:$0xff]
    %v2287 = vld [vmem:[%s2167 + $0x3b8] sm:$0xff]
    %v2288 = vld [vmem:[%s2167 + $0x3c0] sm:$0xff]
    %v2289 = vld [vmem:[%s2167 + $0x3c8] sm:$0xff]
    %v2290 = vld [vmem:[%s2167 + $0x3d0] sm:$0xff]
    %v2291 = vld [vmem:[%s2167 + $0x3d8] sm:$0xff]
    %v2292 = vld [vmem:[%s2167 + $0x3e0] sm:$0xff]
    %v2293 = vld [vmem:[%s2167 + $0x3e8] sm:$0xff]
    %v2294 = vld [vmem:[%s2167 + $0x3f0] sm:$0xff]
    %v2295 = vld [vmem:[%s2167 + $0x3f8] sm:$0xff]
    %v2424 = vunpack.c.l.b16 %v2168
    %v2425 = vunpack.c.h.b16 %v2168
    %v2426 = vunpack.c.l.b16 %v2169
    %v2427 = vunpack.c.h.b16 %v2169
    %v2428 = vunpack.c.l.b16 %v2170
    %v2429 = vunpack.c.h.b16 %v2170
    %v2430 = vunpack.c.l.b16 %v2171
    %v2431 = vunpack.c.h.b16 %v2171
    %v2432 = vunpack.c.l.b16 %v2172
    %v2433 = vunpack.c.h.b16 %v2172
    %v2434 = vunpack.c.l.b16 %v2173
    %v2435 = vunpack.c.h.b16 %v2173
    %v2436 = vunpack.c.l.b16 %v2174
    %v2437 = vunpack.c.h.b16 %v2174
    %v2438 = vunpack.c.l.b16 %v2175
    %v2439 = vunpack.c.h.b16 %v2175
    %v2440 = vunpack.c.l.b16 %v2176
    %v2441 = vunpack.c.h.b16 %v2176
    %v2442 = vunpack.c.l.b16 %v2177
    %v2443 = vunpack.c.h.b16 %v2177
    %v2444 = vunpack.c.l.b16 %v2178
    %v2445 = vunpack.c.h.b16 %v2178
    %v2446 = vunpack.c.l.b16 %v2179
    %v2447 = vunpack.c.h.b16 %v2179
    %v2448 = vunpack.c.l.b16 %v2180
    %v2449 = vunpack.c.h.b16 %v2180
    %v2450 = vunpack.c.l.b16 %v2181
    %v2451 = vunpack.c.h.b16 %v2181
    %v2452 = vunpack.c.l.b16 %v2182
    %v2453 = vunpack.c.h.b16 %v2182
    %v2454 = vunpack.c.l.b16 %v2183
    %v2455 = vunpack.c.h.b16 %v2183
    %v2456 = vunpack.c.l.b16 %v2184
    %v2457 = vunpack.c.h.b16 %v2184
    %v2458 = vunpack.c.l.b16 %v2185
    %v2459 = vunpack.c.h.b16 %v2185
    %v2460 = vunpack.c.l.b16 %v2186
    %v2461 = vunpack.c.h.b16 %v2186
    %v2462 = vunpack.c.l.b16 %v2187
    %v2463 = vunpack.c.h.b16 %v2187
    %v2464 = vunpack.c.l.b16 %v2188
    %v2465 = vunpack.c.h.b16 %v2188
    %v2466 = vunpack.c.l.b16 %v2189
    %v2467 = vunpack.c.h.b16 %v2189
    %v2468 = vunpack.c.l.b16 %v2190
    %v2469 = vunpack.c.h.b16 %v2190
    %v2470 = vunpack.c.l.b16 %v2191
    %v2471 = vunpack.c.h.b16 %v2191
    %v2472 = vunpack.c.l.b16 %v2192
    %v2473 = vunpack.c.h.b16 %v2192
    %v2474 = vunpack.c.l.b16 %v2193
    %v2475 = vunpack.c.h.b16 %v2193
    %v2476 = vunpack.c.l.b16 %v2194
    %v2477 = vunpack.c.h.b16 %v2194
    %v2478 = vunpack.c.l.b16 %v2195
    %v2479 = vunpack.c.h.b16 %v2195
    %v2480 = vunpack.c.l.b16 %v2196
    %v2481 = vunpack.c.h.b16 %v2196
    %v2482 = vunpack.c.l.b16 %v2197
    %v2483 = vunpack.c.h.b16 %v2197
    %v2484 = vunpack.c.l.b16 %v2198
    %v2485 = vunpack.c.h.b16 %v2198
    %v2486 = vunpack.c.l.b16 %v2199
    %v2487 = vunpack.c.h.b16 %v2199
    %v2488 = vunpack.c.l.b16 %v2200
    %v2489 = vunpack.c.h.b16 %v2200
    %v2490 = vunpack.c.l.b16 %v2201
    %v2491 = vunpack.c.h.b16 %v2201
    %v2492 = vunpack.c.l.b16 %v2202
    %v2493 = vunpack.c.h.b16 %v2202
    %v2494 = vunpack.c.l.b16 %v2203
    %v2495 = vunpack.c.h.b16 %v2203
    %v2496 = vunpack.c.l.b16 %v2204
    %v2497 = vunpack.c.h.b16 %v2204
    %v2498 = vunpack.c.l.b16 %v2205
    %v2499 = vunpack.c.h.b16 %v2205
    %v2500 = vunpack.c.l.b16 %v2206
    %v2501 = vunpack.c.h.b16 %v2206
    %v2502 = vunpack.c.l.b16 %v2207
    %v2503 = vunpack.c.h.b16 %v2207
    %v2504 = vunpack.c.l.b16 %v2208
    %v2505 = vunpack.c.h.b16 %v2208
    %v2506 = vunpack.c.l.b16 %v2209
    %v2507 = vunpack.c.h.b16 %v2209
    %v2508 = vunpack.c.l.b16 %v2210
    %v2509 = vunpack.c.h.b16 %v2210
    %v2510 = vunpack.c.l.b16 %v2211
    %v2511 = vunpack.c.h.b16 %v2211
    %v2512 = vunpack.c.l.b16 %v2212
    %v2513 = vunpack.c.h.b16 %v2212
    %v2514 = vunpack.c.l.b16 %v2213
    %v2515 = vunpack.c.h.b16 %v2213
    %v2516 = vunpack.c.l.b16 %v2214
    %v2517 = vunpack.c.h.b16 %v2214
    %v2518 = vunpack.c.l.b16 %v2215
    %v2519 = vunpack.c.h.b16 %v2215
    %v2520 = vunpack.c.l.b16 %v2216
    %v2521 = vunpack.c.h.b16 %v2216
    %v2522 = vunpack.c.l.b16 %v2217
    %v2523 = vunpack.c.h.b16 %v2217
    %v2524 = vunpack.c.l.b16 %v2218
    %v2525 = vunpack.c.h.b16 %v2218
    %v2526 = vunpack.c.l.b16 %v2219
    %v2527 = vunpack.c.h.b16 %v2219
    %v2528 = vunpack.c.l.b16 %v2220
    %v2529 = vunpack.c.h.b16 %v2220
    %v2530 = vunpack.c.l.b16 %v2221
    %v2531 = vunpack.c.h.b16 %v2221
    %v2532 = vunpack.c.l.b16 %v2222
    %v2533 = vunpack.c.h.b16 %v2222
    %v2534 = vunpack.c.l.b16 %v2223
    %v2535 = vunpack.c.h.b16 %v2223
    %v2536 = vunpack.c.l.b16 %v2224
    %v2537 = vunpack.c.h.b16 %v2224
    %v2538 = vunpack.c.l.b16 %v2225
    %v2539 = vunpack.c.h.b16 %v2225
    %v2540 = vunpack.c.l.b16 %v2226
    %v2541 = vunpack.c.h.b16 %v2226
    %v2542 = vunpack.c.l.b16 %v2227
    %v2543 = vunpack.c.h.b16 %v2227
    %v2544 = vunpack.c.l.b16 %v2228
    %v2545 = vunpack.c.h.b16 %v2228
    %v2546 = vunpack.c.l.b16 %v2229
    %v2547 = vunpack.c.h.b16 %v2229
    %v2548 = vunpack.c.l.b16 %v2230
    %v2549 = vunpack.c.h.b16 %v2230
    %v2550 = vunpack.c.l.b16 %v2231
    %v2551 = vunpack.c.h.b16 %v2231
    %v2552 = vunpack.c.l.b16 %v2232
    %v2553 = vunpack.c.h.b16 %v2232
    %v2554 = vunpack.c.l.b16 %v2233
    %v2555 = vunpack.c.h.b16 %v2233
    %v2556 = vunpack.c.l.b16 %v2234
    %v2557 = vunpack.c.h.b16 %v2234
    %v2558 = vunpack.c.l.b16 %v2235
    %v2559 = vunpack.c.h.b16 %v2235
    %v2560 = vunpack.c.l.b16 %v2236
    %v2561 = vunpack.c.h.b16 %v2236
    %v2562 = vunpack.c.l.b16 %v2237
    %v2563 = vunpack.c.h.b16 %v2237
    %v2564 = vunpack.c.l.b16 %v2238
    %v2565 = vunpack.c.h.b16 %v2238
    %v2566 = vunpack.c.l.b16 %v2239
    %v2567 = vunpack.c.h.b16 %v2239
    %v2568 = vunpack.c.l.b16 %v2240
    %v2569 = vunpack.c.h.b16 %v2240
    %v2570 = vunpack.c.l.b16 %v2241
    %v2571 = vunpack.c.h.b16 %v2241
    %v2572 = vunpack.c.l.b16 %v2242
    %v2573 = vunpack.c.h.b16 %v2242
    %v2574 = vunpack.c.l.b16 %v2243
    %v2575 = vunpack.c.h.b16 %v2243
    %v2576 = vunpack.c.l.b16 %v2244
    %v2577 = vunpack.c.h.b16 %v2244
    %v2578 = vunpack.c.l.b16 %v2245
    %v2579 = vunpack.c.h.b16 %v2245
    %v2580 = vunpack.c.l.b16 %v2246
    %v2581 = vunpack.c.h.b16 %v2246
    %v2582 = vunpack.c.l.b16 %v2247
    %v2583 = vunpack.c.h.b16 %v2247
    %v2584 = vunpack.c.l.b16 %v2248
    %v2585 = vunpack.c.h.b16 %v2248
    %v2586 = vunpack.c.l.b16 %v2249
    %v2587 = vunpack.c.h.b16 %v2249
    %v2588 = vunpack.c.l.b16 %v2250
    %v2589 = vunpack.c.h.b16 %v2250
    %v2590 = vunpack.c.l.b16 %v2251
    %v2591 = vunpack.c.h.b16 %v2251
    %v2592 = vunpack.c.l.b16 %v2252
    %v2593 = vunpack.c.h.b16 %v2252
    %v2594 = vunpack.c.l.b16 %v2253
    %v2595 = vunpack.c.h.b16 %v2253
    %v2596 = vunpack.c.l.b16 %v2254
    %v2597 = vunpack.c.h.b16 %v2254
    %v2598 = vunpack.c.l.b16 %v2255
    %v2599 = vunpack.c.h.b16 %v2255
    %v2600 = vunpack.c.l.b16 %v2256
    %v2601 = vunpack.c.h.b16 %v2256
    %v2602 = vunpack.c.l.b16 %v2257
    %v2603 = vunpack.c.h.b16 %v2257
    %v2604 = vunpack.c.l.b16 %v2258
    %v2605 = vunpack.c.h.b16 %v2258
    %v2606 = vunpack.c.l.b16 %v2259
    %v2607 = vunpack.c.h.b16 %v2259
    %v2608 = vunpack.c.l.b16 %v2260
    %v2609 = vunpack.c.h.b16 %v2260
    %v2610 = vunpack.c.l.b16 %v2261
    %v2611 = vunpack.c.h.b16 %v2261
    %v2612 = vunpack.c.l.b16 %v2262
    %v2613 = vunpack.c.h.b16 %v2262
    %v2614 = vunpack.c.l.b16 %v2263
    %v2615 = vunpack.c.h.b16 %v2263
    %v2616 = vunpack.c.l.b16 %v2264
    %v2617 = vunpack.c.h.b16 %v2264
    %v2618 = vunpack.c.l.b16 %v2265
    %v2619 = vunpack.c.h.b16 %v2265
    %v2620 = vunpack.c.l.b16 %v2266
    %v2621 = vunpack.c.h.b16 %v2266
    %v2622 = vunpack.c.l.b16 %v2267
    %v2623 = vunpack.c.h.b16 %v2267
    %v2624 = vunpack.c.l.b16 %v2268
    %v2625 = vunpack.c.h.b16 %v2268
    %v2626 = vunpack.c.l.b16 %v2269
    %v2627 = vunpack.c.h.b16 %v2269
    %v2628 = vunpack.c.l.b16 %v2270
    %v2629 = vunpack.c.h.b16 %v2270
    %v2630 = vunpack.c.l.b16 %v2271
    %v2631 = vunpack.c.h.b16 %v2271
    %v2632 = vunpack.c.l.b16 %v2272
    %v2633 = vunpack.c.h.b16 %v2272
    %v2634 = vunpack.c.l.b16 %v2273
    %v2635 = vunpack.c.h.b16 %v2273
    %v2636 = vunpack.c.l.b16 %v2274
    %v2637 = vunpack.c.h.b16 %v2274
    %v2638 = vunpack.c.l.b16 %v2275
    %v2639 = vunpack.c.h.b16 %v2275
    %v2640 = vunpack.c.l.b16 %v2276
    %v2641 = vunpack.c.h.b16 %v2276
    %v2642 = vunpack.c.l.b16 %v2277
    %v2643 = vunpack.c.h.b16 %v2277
    %v2644 = vunpack.c.l.b16 %v2278
    %v2645 = vunpack.c.h.b16 %v2278
    %v2646 = vunpack.c.l.b16 %v2279
    %v2647 = vunpack.c.h.b16 %v2279
    %v2648 = vunpack.c.l.b16 %v2280
    %v2649 = vunpack.c.h.b16 %v2280
    %v2650 = vunpack.c.l.b16 %v2281
    %v2651 = vunpack.c.h.b16 %v2281
    %v2652 = vunpack.c.l.b16 %v2282
    %v2653 = vunpack.c.h.b16 %v2282
    %v2654 = vunpack.c.l.b16 %v2283
    %v2655 = vunpack.c.h.b16 %v2283
    %v2656 = vunpack.c.l.b16 %v2284
    %v2657 = vunpack.c.h.b16 %v2284
    %v2658 = vunpack.c.l.b16 %v2285
    %v2659 = vunpack.c.h.b16 %v2285
    %v2660 = vunpack.c.l.b16 %v2286
    %v2661 = vunpack.c.h.b16 %v2286
    %v2662 = vunpack.c.l.b16 %v2287
    %v2663 = vunpack.c.h.b16 %v2287
    %v2664 = vunpack.c.l.b16 %v2288
    %v2665 = vunpack.c.h.b16 %v2288
    %v2666 = vunpack.c.l.b16 %v2289
    %v2667 = vunpack.c.h.b16 %v2289
    %v2668 = vunpack.c.l.b16 %v2290
    %v2669 = vunpack.c.h.b16 %v2290
    %v2670 = vunpack.c.l.b16 %v2291
    %v2671 = vunpack.c.h.b16 %v2291
    %v2672 = vunpack.c.l.b16 %v2292
    %v2673 = vunpack.c.h.b16 %v2292
    %v2674 = vunpack.c.l.b16 %v2293
    %v2675 = vunpack.c.h.b16 %v2293
    %v2676 = vunpack.c.l.b16 %v2294
    %v2677 = vunpack.c.h.b16 %v2294
    %v2678 = vunpack.c.l.b16 %v2295
    %v2679 = vunpack.c.h.b16 %v2295
    %v2680 = vpack.c.b16 %v2428, %v2424
    %v2681 = vpack.c.b16 %v2429, %v2425
    %v2682 = vpack.c.b16 %v2430, %v2426
    %v2683 = vpack.c.b16 %v2431, %v2427
    %v2684 = vpack.c.b16 %v2436, %v2432
    %v2685 = vpack.c.b16 %v2437, %v2433
    %v2686 = vpack.c.b16 %v2438, %v2434
    %v2687 = vpack.c.b16 %v2439, %v2435
    %v2688 = vpack.c.b16 %v2444, %v2440
    %v2689 = vpack.c.b16 %v2445, %v2441
    %v2690 = vpack.c.b16 %v2446, %v2442
    %v2691 = vpack.c.b16 %v2447, %v2443
    %v2692 = vpack.c.b16 %v2452, %v2448
    %v2693 = vpack.c.b16 %v2453, %v2449
    %v2694 = vpack.c.b16 %v2454, %v2450
    %v2695 = vpack.c.b16 %v2455, %v2451
    %v2696 = vpack.c.b16 %v2460, %v2456
    %v2697 = vpack.c.b16 %v2461, %v2457
    %v2698 = vpack.c.b16 %v2462, %v2458
    %v2699 = vpack.c.b16 %v2463, %v2459
    %v2700 = vpack.c.b16 %v2468, %v2464
    %v2701 = vpack.c.b16 %v2469, %v2465
    %v2702 = vpack.c.b16 %v2470, %v2466
    %v2703 = vpack.c.b16 %v2471, %v2467
    %v2704 = vpack.c.b16 %v2476, %v2472
    %v2705 = vpack.c.b16 %v2477, %v2473
    %v2706 = vpack.c.b16 %v2478, %v2474
    %v2707 = vpack.c.b16 %v2479, %v2475
    %v2708 = vpack.c.b16 %v2484, %v2480
    %v2709 = vpack.c.b16 %v2485, %v2481
    %v2710 = vpack.c.b16 %v2486, %v2482
    %v2711 = vpack.c.b16 %v2487, %v2483
    %v2712 = vpack.c.b16 %v2492, %v2488
    %v2713 = vpack.c.b16 %v2493, %v2489
    %v2714 = vpack.c.b16 %v2494, %v2490
    %v2715 = vpack.c.b16 %v2495, %v2491
    %v2716 = vpack.c.b16 %v2500, %v2496
    %v2717 = vpack.c.b16 %v2501, %v2497
    %v2718 = vpack.c.b16 %v2502, %v2498
    %v2719 = vpack.c.b16 %v2503, %v2499
    %v2720 = vpack.c.b16 %v2508, %v2504
    %v2721 = vpack.c.b16 %v2509, %v2505
    %v2722 = vpack.c.b16 %v2510, %v2506
    %v2723 = vpack.c.b16 %v2511, %v2507
    %v2724 = vpack.c.b16 %v2516, %v2512
    %v2725 = vpack.c.b16 %v2517, %v2513
    %v2726 = vpack.c.b16 %v2518, %v2514
    %v2727 = vpack.c.b16 %v2519, %v2515
    %v2728 = vpack.c.b16 %v2524, %v2520
    %v2729 = vpack.c.b16 %v2525, %v2521
    %v2730 = vpack.c.b16 %v2526, %v2522
    %v2731 = vpack.c.b16 %v2527, %v2523
    %v2732 = vpack.c.b16 %v2532, %v2528
    %v2733 = vpack.c.b16 %v2533, %v2529
    %v2734 = vpack.c.b16 %v2534, %v2530
    %v2735 = vpack.c.b16 %v2535, %v2531
    %v2736 = vpack.c.b16 %v2540, %v2536
    %v2737 = vpack.c.b16 %v2541, %v2537
    %v2738 = vpack.c.b16 %v2542, %v2538
    %v2739 = vpack.c.b16 %v2543, %v2539
    %v2740 = vpack.c.b16 %v2548, %v2544
    %v2741 = vpack.c.b16 %v2549, %v2545
    %v2742 = vpack.c.b16 %v2550, %v2546
    %v2743 = vpack.c.b16 %v2551, %v2547
    %v2744 = vpack.c.b16 %v2556, %v2552
    %v2745 = vpack.c.b16 %v2557, %v2553
    %v2746 = vpack.c.b16 %v2558, %v2554
    %v2747 = vpack.c.b16 %v2559, %v2555
    %v2748 = vpack.c.b16 %v2564, %v2560
    %v2749 = vpack.c.b16 %v2565, %v2561
    %v2750 = vpack.c.b16 %v2566, %v2562
    %v2751 = vpack.c.b16 %v2567, %v2563
    %v2752 = vpack.c.b16 %v2572, %v2568
    %v2753 = vpack.c.b16 %v2573, %v2569
    %v2754 = vpack.c.b16 %v2574, %v2570
    %v2755 = vpack.c.b16 %v2575, %v2571
    %v2756 = vpack.c.b16 %v2580, %v2576
    %v2757 = vpack.c.b16 %v2581, %v2577
    %v2758 = vpack.c.b16 %v2582, %v2578
    %v2759 = vpack.c.b16 %v2583, %v2579
    %v2760 = vpack.c.b16 %v2588, %v2584
    %v2761 = vpack.c.b16 %v2589, %v2585
    %v2762 = vpack.c.b16 %v2590, %v2586
    %v2763 = vpack.c.b16 %v2591, %v2587
    %v2764 = vpack.c.b16 %v2596, %v2592
    %v2765 = vpack.c.b16 %v2597, %v2593
    %v2766 = vpack.c.b16 %v2598, %v2594
    %v2767 = vpack.c.b16 %v2599, %v2595
    %v2768 = vpack.c.b16 %v2604, %v2600
    %v2769 = vpack.c.b16 %v2605, %v2601
    %v2770 = vpack.c.b16 %v2606, %v2602
    %v2771 = vpack.c.b16 %v2607, %v2603
    %v2772 = vpack.c.b16 %v2612, %v2608
    %v2773 = vpack.c.b16 %v2613, %v2609
    %v2774 = vpack.c.b16 %v2614, %v2610
    %v2775 = vpack.c.b16 %v2615, %v2611
    %v2776 = vpack.c.b16 %v2620, %v2616
    %v2777 = vpack.c.b16 %v2621, %v2617
    %v2778 = vpack.c.b16 %v2622, %v2618
    %v2779 = vpack.c.b16 %v2623, %v2619
    %v2780 = vpack.c.b16 %v2628, %v2624
    %v2781 = vpack.c.b16 %v2629, %v2625
    %v2782 = vpack.c.b16 %v2630, %v2626
    %v2783 = vpack.c.b16 %v2631, %v2627
    %v2784 = vpack.c.b16 %v2636, %v2632
    %v2785 = vpack.c.b16 %v2637, %v2633
    %v2786 = vpack.c.b16 %v2638, %v2634
    %v2787 = vpack.c.b16 %v2639, %v2635
    %v2788 = vpack.c.b16 %v2644, %v2640
    %v2789 = vpack.c.b16 %v2645, %v2641
    %v2790 = vpack.c.b16 %v2646, %v2642
    %v2791 = vpack.c.b16 %v2647, %v2643
    %v2792 = vpack.c.b16 %v2652, %v2648
    %v2793 = vpack.c.b16 %v2653, %v2649
    %v2794 = vpack.c.b16 %v2654, %v2650
    %v2795 = vpack.c.b16 %v2655, %v2651
    %v2796 = vpack.c.b16 %v2660, %v2656
    %v2797 = vpack.c.b16 %v2661, %v2657
    %v2798 = vpack.c.b16 %v2662, %v2658
    %v2799 = vpack.c.b16 %v2663, %v2659
    %v2800 = vpack.c.b16 %v2668, %v2664
    %v2801 = vpack.c.b16 %v2669, %v2665
    %v2802 = vpack.c.b16 %v2670, %v2666
    %v2803 = vpack.c.b16 %v2671, %v2667
    %v2804 = vpack.c.b16 %v2676, %v2672
    %v2805 = vpack.c.b16 %v2677, %v2673
    %v2806 = vpack.c.b16 %v2678, %v2674
    %v2807 = vpack.c.b16 %v2679, %v2675
    %2936 = vmatprep.subr.bf16.mxu0 %v2709
    %2937 = vmatpush1.bf16.msra.mxu0 %v2708
    %2938 = vmatprep.subr.bf16.mxu0 %v2705
    %2939 = vmatpush1.bf16.msra.mxu0 %v2704
    %2940 = vmatprep.subr.bf16.mxu0 %v2701
    %2941 = vmatpush1.bf16.msra.mxu0 %v2700
    %2942 = vmatprep.subr.bf16.mxu0 %v2697
    %2943 = vmatpush1.bf16.msra.mxu0 %v2696
    %2944 = vmatprep.subr.bf16.mxu0 %v2693
    %2945 = vmatpush1.bf16.msra.mxu0 %v2692
    %2946 = vmatprep.subr.bf16.mxu0 %v2689
    %2947 = vmatpush1.bf16.msra.mxu0 %v2688
    %2948 = vmatprep.subr.bf16.mxu0 %v2685
    %2949 = vmatpush1.bf16.msra.mxu0 %v2684
    %2950 = vmatprep.subr.bf16.mxu0 %v2681
    %2951 = vmatpush1.bf16.msra.mxu0 %v2680
    %2952 = vmatprep.subr.bf16.mxu0 %v2741
    %2953 = vmatpush2.bf16.msra.mxu0 %v2740
    %2954 = vmatprep.subr.bf16.mxu0 %v2737
    %2955 = vmatpush2.bf16.msra.mxu0 %v2736
    %2956 = vmatprep.subr.bf16.mxu0 %v2733
    %2957 = vmatpush2.bf16.msra.mxu0 %v2732
    %2958 = vmatprep.subr.bf16.mxu0 %v2729
    %2959 = vmatpush2.bf16.msra.mxu0 %v2728
    %2960 = vmatprep.subr.bf16.mxu0 %v2725
    %2961 = vmatpush2.bf16.msra.mxu0 %v2724
    %2962 = vmatprep.subr.bf16.mxu0 %v2721
    %2963 = vmatpush2.bf16.msra.mxu0 %v2720
    %2964 = vmatprep.subr.bf16.mxu0 %v2717
    %2965 = vmatpush2.bf16.msra.mxu0 %v2716
    %2966 = vmatprep.subr.bf16.mxu0 %v2713
    %2967 = vmatpush2.bf16.msra.mxu0 %v2712
    %2968 = vmatprep.mubr.bf16.mxu0 %v2157
    %2969 = vmatmul.mubr.bf16.gmra.mxu0 %v2153
    %v2970 = vpop.f32.mrf.mxu0
    %v2971 = vadd.f32 0.0, %v2970
    %v2972 = vpop.f32.mrf.mxu0
    %v2973 = vadd.f32 0.0, %v2972
    %v2974 = vpop.f32.mrf.mxu0
    %v2975 = vadd.f32 0.0, %v2974
    %v2976 = vpop.f32.mrf.mxu0
    %v2977 = vadd.f32 0.0, %v2976
    %2978 = vdwg.mxu0
    %2979 = vmatprep.subr.bf16.mxu0 %v2773
    %2980 = vmatpush1.bf16.msra.mxu0 %v2772
    %2981 = vmatprep.subr.bf16.mxu0 %v2769
    %2982 = vmatpush1.bf16.msra.mxu0 %v2768
    %2983 = vmatprep.subr.bf16.mxu0 %v2765
    %2984 = vmatpush1.bf16.msra.mxu0 %v2764
    %2985 = vmatprep.subr.bf16.mxu0 %v2761
    %2986 = vmatpush1.bf16.msra.mxu0 %v2760
    %2987 = vmatprep.subr.bf16.mxu0 %v2757
    %2988 = vmatpush1.bf16.msra.mxu0 %v2756
    %2989 = vmatprep.subr.bf16.mxu0 %v2753
    %2990 = vmatpush1.bf16.msra.mxu0 %v2752
    %2991 = vmatprep.subr.bf16.mxu0 %v2749
    %2992 = vmatpush1.bf16.msra.mxu0 %v2748
    %2993 = vmatprep.subr.bf16.mxu0 %v2745
    %2994 = vmatpush1.bf16.msra.mxu0 %v2744
    %2995 = vmatprep.subr.bf16.mxu0 %v2805
    %2996 = vmatpush2.bf16.msra.mxu0 %v2804
    %2997 = vmatprep.subr.bf16.mxu0 %v2801
    %2998 = vmatpush2.bf16.msra.mxu0 %v2800
    %2999 = vmatprep.subr.bf16.mxu0 %v2797
    %3000 = vmatpush2.bf16.msra.mxu0 %v2796
    %3001 = vmatprep.subr.bf16.mxu0 %v2793
    %3002 = vmatpush2.bf16.msra.mxu0 %v2792
    %3003 = vmatprep.subr.bf16.mxu0 %v2789
    %3004 = vmatpush2.bf16.msra.mxu0 %v2788
    %3005 = vmatprep.subr.bf16.mxu0 %v2785
    %3006 = vmatpush2.bf16.msra.mxu0 %v2784
    %3007 = vmatprep.subr.bf16.mxu0 %v2781
    %3008 = vmatpush2.bf16.msra.mxu0 %v2780
    %3009 = vmatprep.subr.bf16.mxu0 %v2777
    %3010 = vmatpush2.bf16.msra.mxu0 %v2776
    %3011 = vmatprep.mubr.bf16.mxu0 %v2165
    %3012 = vmatmul.mubr.bf16.gmra.mxu0 %v2161
    %v3013 = vpop.f32.mrf.mxu0
    %v3014 = vadd.f32 %v2971, %v3013
    %v3015 = vpop.f32.mrf.mxu0
    %v3016 = vadd.f32 %v2973, %v3015
    %v3017 = vpop.f32.mrf.mxu0
    %v3018 = vadd.f32 %v2975, %v3017
    %v3019 = vpop.f32.mrf.mxu0
    %v3020 = vadd.f32 %v2977, %v3019
    %3021 = vdwg.mxu0
    %3022 = vmatprep.subr.bf16.mxu0 %v2711
    %3023 = vmatpush1.bf16.msra.mxu0 %v2710
    %3024 = vmatprep.subr.bf16.mxu0 %v2707
    %3025 = vmatpush1.bf16.msra.mxu0 %v2706
    %3026 = vmatprep.subr.bf16.mxu0 %v2703
    %3027 = vmatpush1.bf16.msra.mxu0 %v2702
    %3028 = vmatprep.subr.bf16.mxu0 %v2699
    %3029 = vmatpush1.bf16.msra.mxu0 %v2698
    %3030 = vmatprep.subr.bf16.mxu0 %v2695
    %3031 = vmatpush1.bf16.msra.mxu0 %v2694
    %3032 = vmatprep.subr.bf16.mxu0 %v2691
    %3033 = vmatpush1.bf16.msra.mxu0 %v2690
    %3034 = vmatprep.subr.bf16.mxu0 %v2687
    %3035 = vmatpush1.bf16.msra.mxu0 %v2686
    %3036 = vmatprep.subr.bf16.mxu0 %v2683
    %3037 = vmatpush1.bf16.msra.mxu0 %v2682
    %3038 = vmatprep.subr.bf16.mxu0 %v2743
    %3039 = vmatpush2.bf16.msra.mxu0 %v2742
    %3040 = vmatprep.subr.bf16.mxu0 %v2739
    %3041 = vmatpush2.bf16.msra.mxu0 %v2738
    %3042 = vmatprep.subr.bf16.mxu0 %v2735
    %3043 = vmatpush2.bf16.msra.mxu0 %v2734
    %3044 = vmatprep.subr.bf16.mxu0 %v2731
    %3045 = vmatpush2.bf16.msra.mxu0 %v2730
    %3046 = vmatprep.subr.bf16.mxu0 %v2727
    %3047 = vmatpush2.bf16.msra.mxu0 %v2726
    %3048 = vmatprep.subr.bf16.mxu0 %v2723
    %3049 = vmatpush2.bf16.msra.mxu0 %v2722
    %3050 = vmatprep.subr.bf16.mxu0 %v2719
    %3051 = vmatpush2.bf16.msra.mxu0 %v2718
    %3052 = vmatprep.subr.bf16.mxu0 %v2715
    %3053 = vmatpush2.bf16.msra.mxu0 %v2714
    %3054 = vmatprep.mubr.bf16.mxu0 %v2157
    %3055 = vmatmul.mubr.bf16.gmra.mxu0 %v2153
    %v3056 = vpop.f32.mrf.mxu0
    %v3057 = vadd.f32 0.0, %v3056
    %v3058 = vpop.f32.mrf.mxu0
    %v3059 = vadd.f32 0.0, %v3058
    %v3060 = vpop.f32.mrf.mxu0
    %v3061 = vadd.f32 0.0, %v3060
    %v3062 = vpop.f32.mrf.mxu0
    %v3063 = vadd.f32 0.0, %v3062
    %3064 = vdwg.mxu0
    %3065 = vmatprep.subr.bf16.mxu0 %v2775
    %3066 = vmatpush1.bf16.msra.mxu0 %v2774
    %3067 = vmatprep.subr.bf16.mxu0 %v2771
    %3068 = vmatpush1.bf16.msra.mxu0 %v2770
    %3069 = vmatprep.subr.bf16.mxu0 %v2767
    %3070 = vmatpush1.bf16.msra.mxu0 %v2766
    %3071 = vmatprep.subr.bf16.mxu0 %v2763
    %3072 = vmatpush1.bf16.msra.mxu0 %v2762
    %3073 = vmatprep.subr.bf16.mxu0 %v2759
    %3074 = vmatpush1.bf16.msra.mxu0 %v2758
    %3075 = vmatprep.subr.bf16.mxu0 %v2755
    %3076 = vmatpush1.bf16.msra.mxu0 %v2754
    %3077 = vmatprep.subr.bf16.mxu0 %v2751
    %3078 = vmatpush1.bf16.msra.mxu0 %v2750
    %3079 = vmatprep.subr.bf16.mxu0 %v2747
    %3080 = vmatpush1.bf16.msra.mxu0 %v2746
    %3081 = vmatprep.subr.bf16.mxu0 %v2807
    %3082 = vmatpush2.bf16.msra.mxu0 %v2806
    %3083 = vmatprep.subr.bf16.mxu0 %v2803
    %3084 = vmatpush2.bf16.msra.mxu0 %v2802
    %3085 = vmatprep.subr.bf16.mxu0 %v2799
    %3086 = vmatpush2.bf16.msra.mxu0 %v2798
    %3087 = vmatprep.subr.bf16.mxu0 %v2795
    %3088 = vmatpush2.bf16.msra.mxu0 %v2794
    %3089 = vmatprep.subr.bf16.mxu0 %v2791
    %3090 = vmatpush2.bf16.msra.mxu0 %v2790
    %3091 = vmatprep.subr.bf16.mxu0 %v2787
    %3092 = vmatpush2.bf16.msra.mxu0 %v2786
    %3093 = vmatprep.subr.bf16.mxu0 %v2783
    %3094 = vmatpush2.bf16.msra.mxu0 %v2782
    %3095 = vmatprep.subr.bf16.mxu0 %v2779
    %3096 = vmatpush2.bf16.msra.mxu0 %v2778
    %3097 = vmatprep.mubr.bf16.mxu0 %v2165
    %3098 = vmatmul.mubr.bf16.gmra.mxu0 %v2161
    %v3099 = vpop.f32.mrf.mxu0
    %v3100 = vadd.f32 %v3057, %v3099
    %v3101 = vpop.f32.mrf.mxu0
    %v3102 = vadd.f32 %v3059, %v3101
    %v3103 = vpop.f32.mrf.mxu0
    %v3104 = vadd.f32 %v3061, %v3103
    %v3105 = vpop.f32.mrf.mxu0
    %v3106 = vadd.f32 %v3063, %v3105
    %3107 = vdwg.mxu0
    %v3108 = vadd.f32 %v2025, %v3014
    %v3109 = vadd.f32 %v2027, %v3016
    %v3110 = vadd.f32 %v2111, %v3100
    %v3111 = vadd.f32 %v2113, %v3102
    %v3112 = vadd.f32 %v2029, %v3018
    %v3113 = vadd.f32 %v2031, %v3020
    %v3114 = vadd.f32 %v2115, %v3104
    %v3115 = vadd.f32 %v2117, %v3106
    %v3116 = vld [vmem:[#allocation7] sm:$0xff]
    %v3117 = vld [vmem:[#allocation7 + $0x8] sm:$0xff]
    %v3118 = vld [vmem:[#allocation7 + $0x10] sm:$0xff]
    %v3119 = vld [vmem:[#allocation7 + $0x18] sm:$0xff]
    %v3120 = vld [vmem:[#allocation7 + $0x20] sm:$0xff]
    %v3121 = vld [vmem:[#allocation7 + $0x28] sm:$0xff]
    %v3122 = vld [vmem:[#allocation7 + $0x30] sm:$0xff]
    %v3123 = vld [vmem:[#allocation7 + $0x38] sm:$0xff]
    %v3124 = vld [vmem:[#allocation7 + $0x40] sm:$0xff]
    %v3125 = vld [vmem:[#allocation7 + $0x48] sm:$0xff]
    %v3126 = vld [vmem:[#allocation7 + $0x50] sm:$0xff]
    %v3127 = vld [vmem:[#allocation7 + $0x58] sm:$0xff]
    %v3128 = vld [vmem:[#allocation7 + $0x60] sm:$0xff]
    %v3129 = vld [vmem:[#allocation7 + $0x68] sm:$0xff]
    %v3130 = vld [vmem:[#allocation7 + $0x70] sm:$0xff]
    %v3131 = vld [vmem:[#allocation7 + $0x78] sm:$0xff]
    %v3132 = vld [vmem:[#allocation7 + $0x80] sm:$0xff]
    %v3133 = vld [vmem:[#allocation7 + $0x88] sm:$0xff]
    %v3134 = vld [vmem:[#allocation7 + $0x90] sm:$0xff]
    %v3135 = vld [vmem:[#allocation7 + $0x98] sm:$0xff]
    %v3136 = vld [vmem:[#allocation7 + $0xa0] sm:$0xff]
    %v3137 = vld [vmem:[#allocation7 + $0xa8] sm:$0xff]
    %v3138 = vld [vmem:[#allocation7 + $0xb0] sm:$0xff]
    %v3139 = vld [vmem:[#allocation7 + $0xb8] sm:$0xff]
    %v3140 = vld [vmem:[#allocation7 + $0xc0] sm:$0xff]
    %v3141 = vld [vmem:[#allocation7 + $0xc8] sm:$0xff]
    %v3142 = vld [vmem:[#allocation7 + $0xd0] sm:$0xff]
    %v3143 = vld [vmem:[#allocation7 + $0xd8] sm:$0xff]
    %v3144 = vld [vmem:[#allocation7 + $0xe0] sm:$0xff]
    %v3145 = vld [vmem:[#allocation7 + $0xe8] sm:$0xff]
    %v3146 = vld [vmem:[#allocation7 + $0xf0] sm:$0xff]
    %v3147 = vld [vmem:[#allocation7 + $0xf8] sm:$0xff]
    %v3148 = vld [vmem:[#allocation7 + $0x100] sm:$0xff]
    %v3149 = vld [vmem:[#allocation7 + $0x108] sm:$0xff]
    %v3150 = vld [vmem:[#allocation7 + $0x110] sm:$0xff]
    %v3151 = vld [vmem:[#allocation7 + $0x118] sm:$0xff]
    %v3152 = vld [vmem:[#allocation7 + $0x120] sm:$0xff]
    %v3153 = vld [vmem:[#allocation7 + $0x128] sm:$0xff]
    %v3154 = vld [vmem:[#allocation7 + $0x130] sm:$0xff]
    %v3155 = vld [vmem:[#allocation7 + $0x138] sm:$0xff]
    %v3156 = vld [vmem:[#allocation7 + $0x140] sm:$0xff]
    %v3157 = vld [vmem:[#allocation7 + $0x148] sm:$0xff]
    %v3158 = vld [vmem:[#allocation7 + $0x150] sm:$0xff]
    %v3159 = vld [vmem:[#allocation7 + $0x158] sm:$0xff]
    %v3160 = vld [vmem:[#allocation7 + $0x160] sm:$0xff]
    %v3161 = vld [vmem:[#allocation7 + $0x168] sm:$0xff]
    %v3162 = vld [vmem:[#allocation7 + $0x170] sm:$0xff]
    %v3163 = vld [vmem:[#allocation7 + $0x178] sm:$0xff]
    %v3164 = vld [vmem:[#allocation7 + $0x180] sm:$0xff]
    %v3165 = vld [vmem:[#allocation7 + $0x188] sm:$0xff]
    %v3166 = vld [vmem:[#allocation7 + $0x190] sm:$0xff]
    %v3167 = vld [vmem:[#allocation7 + $0x198] sm:$0xff]
    %v3168 = vld [vmem:[#allocation7 + $0x1a0] sm:$0xff]
    %v3169 = vld [vmem:[#allocation7 + $0x1a8] sm:$0xff]
    %v3170 = vld [vmem:[#allocation7 + $0x1b0] sm:$0xff]
    %v3171 = vld [vmem:[#allocation7 + $0x1b8] sm:$0xff]
    %v3172 = vld [vmem:[#allocation7 + $0x1c0] sm:$0xff]
    %v3173 = vld [vmem:[#allocation7 + $0x1c8] sm:$0xff]
    %v3174 = vld [vmem:[#allocation7 + $0x1d0] sm:$0xff]
    %v3175 = vld [vmem:[#allocation7 + $0x1d8] sm:$0xff]
    %v3176 = vld [vmem:[#allocation7 + $0x1e0] sm:$0xff]
    %v3177 = vld [vmem:[#allocation7 + $0x1e8] sm:$0xff]
    %v3178 = vld [vmem:[#allocation7 + $0x1f0] sm:$0xff]
    %v3179 = vld [vmem:[#allocation7 + $0x1f8] sm:$0xff]
    %v3180 = vld [vmem:[#allocation7 + $0x200] sm:$0xff]
    %v3181 = vld [vmem:[#allocation7 + $0x208] sm:$0xff]
    %v3182 = vld [vmem:[#allocation7 + $0x210] sm:$0xff]
    %v3183 = vld [vmem:[#allocation7 + $0x218] sm:$0xff]
    %v3184 = vld [vmem:[#allocation7 + $0x220] sm:$0xff]
    %v3185 = vld [vmem:[#allocation7 + $0x228] sm:$0xff]
    %v3186 = vld [vmem:[#allocation7 + $0x230] sm:$0xff]
    %v3187 = vld [vmem:[#allocation7 + $0x238] sm:$0xff]
    %v3188 = vld [vmem:[#allocation7 + $0x240] sm:$0xff]
    %v3189 = vld [vmem:[#allocation7 + $0x248] sm:$0xff]
    %v3190 = vld [vmem:[#allocation7 + $0x250] sm:$0xff]
    %v3191 = vld [vmem:[#allocation7 + $0x258] sm:$0xff]
    %v3192 = vld [vmem:[#allocation7 + $0x260] sm:$0xff]
    %v3193 = vld [vmem:[#allocation7 + $0x268] sm:$0xff]
    %v3194 = vld [vmem:[#allocation7 + $0x270] sm:$0xff]
    %v3195 = vld [vmem:[#allocation7 + $0x278] sm:$0xff]
    %v3196 = vld [vmem:[#allocation7 + $0x280] sm:$0xff]
    %v3197 = vld [vmem:[#allocation7 + $0x288] sm:$0xff]
    %v3198 = vld [vmem:[#allocation7 + $0x290] sm:$0xff]
    %v3199 = vld [vmem:[#allocation7 + $0x298] sm:$0xff]
    %v3200 = vld [vmem:[#allocation7 + $0x2a0] sm:$0xff]
    %v3201 = vld [vmem:[#allocation7 + $0x2a8] sm:$0xff]
    %v3202 = vld [vmem:[#allocation7 + $0x2b0] sm:$0xff]
    %v3203 = vld [vmem:[#allocation7 + $0x2b8] sm:$0xff]
    %v3204 = vld [vmem:[#allocation7 + $0x2c0] sm:$0xff]
    %v3205 = vld [vmem:[#allocation7 + $0x2c8] sm:$0xff]
    %v3206 = vld [vmem:[#allocation7 + $0x2d0] sm:$0xff]
    %v3207 = vld [vmem:[#allocation7 + $0x2d8] sm:$0xff]
    %v3208 = vld [vmem:[#allocation7 + $0x2e0] sm:$0xff]
    %v3209 = vld [vmem:[#allocation7 + $0x2e8] sm:$0xff]
    %v3210 = vld [vmem:[#allocation7 + $0x2f0] sm:$0xff]
    %v3211 = vld [vmem:[#allocation7 + $0x2f8] sm:$0xff]
    %v3212 = vld [vmem:[#allocation7 + $0x300] sm:$0xff]
    %v3213 = vld [vmem:[#allocation7 + $0x308] sm:$0xff]
    %v3214 = vld [vmem:[#allocation7 + $0x310] sm:$0xff]
    %v3215 = vld [vmem:[#allocation7 + $0x318] sm:$0xff]
    %v3216 = vld [vmem:[#allocation7 + $0x320] sm:$0xff]
    %v3217 = vld [vmem:[#allocation7 + $0x328] sm:$0xff]
    %v3218 = vld [vmem:[#allocation7 + $0x330] sm:$0xff]
    %v3219 = vld [vmem:[#allocation7 + $0x338] sm:$0xff]
    %v3220 = vld [vmem:[#allocation7 + $0x340] sm:$0xff]
    %v3221 = vld [vmem:[#allocation7 + $0x348] sm:$0xff]
    %v3222 = vld [vmem:[#allocation7 + $0x350] sm:$0xff]
    %v3223 = vld [vmem:[#allocation7 + $0x358] sm:$0xff]
    %v3224 = vld [vmem:[#allocation7 + $0x360] sm:$0xff]
    %v3225 = vld [vmem:[#allocation7 + $0x368] sm:$0xff]
    %v3226 = vld [vmem:[#allocation7 + $0x370] sm:$0xff]
    %v3227 = vld [vmem:[#allocation7 + $0x378] sm:$0xff]
    %v3228 = vld [vmem:[#allocation7 + $0x380] sm:$0xff]
    %v3229 = vld [vmem:[#allocation7 + $0x388] sm:$0xff]
    %v3230 = vld [vmem:[#allocation7 + $0x390] sm:$0xff]
    %v3231 = vld [vmem:[#allocation7 + $0x398] sm:$0xff]
    %v3232 = vld [vmem:[#allocation7 + $0x3a0] sm:$0xff]
    %v3233 = vld [vmem:[#allocation7 + $0x3a8] sm:$0xff]
    %v3234 = vld [vmem:[#allocation7 + $0x3b0] sm:$0xff]
    %v3235 = vld [vmem:[#allocation7 + $0x3b8] sm:$0xff]
    %v3236 = vld [vmem:[#allocation7 + $0x3c0] sm:$0xff]
    %v3237 = vld [vmem:[#allocation7 + $0x3c8] sm:$0xff]
    %v3238 = vld [vmem:[#allocation7 + $0x3d0] sm:$0xff]
    %v3239 = vld [vmem:[#allocation7 + $0x3d8] sm:$0xff]
    %v3240 = vld [vmem:[#allocation7 + $0x3e0] sm:$0xff]
    %v3241 = vld [vmem:[#allocation7 + $0x3e8] sm:$0xff]
    %v3242 = vld [vmem:[#allocation7 + $0x3f0] sm:$0xff]
    %v3243 = vld [vmem:[#allocation7 + $0x3f8] sm:$0xff]
    %v3244 = vld [vmem:[#allocation7 + $0x400] sm:$0xff]
    %v3245 = vld [vmem:[#allocation7 + $0x408] sm:$0xff]
    %v3246 = vld [vmem:[#allocation7 + $0x410] sm:$0xff]
    %v3247 = vld [vmem:[#allocation7 + $0x418] sm:$0xff]
    %v3248 = vld [vmem:[#allocation7 + $0x420] sm:$0xff]
    %v3249 = vld [vmem:[#allocation7 + $0x428] sm:$0xff]
    %v3250 = vld [vmem:[#allocation7 + $0x430] sm:$0xff]
    %v3251 = vld [vmem:[#allocation7 + $0x438] sm:$0xff]
    %v3252 = vld [vmem:[#allocation7 + $0x440] sm:$0xff]
    %v3253 = vld [vmem:[#allocation7 + $0x448] sm:$0xff]
    %v3254 = vld [vmem:[#allocation7 + $0x450] sm:$0xff]
    %v3255 = vld [vmem:[#allocation7 + $0x458] sm:$0xff]
    %v3256 = vld [vmem:[#allocation7 + $0x460] sm:$0xff]
    %v3257 = vld [vmem:[#allocation7 + $0x468] sm:$0xff]
    %v3258 = vld [vmem:[#allocation7 + $0x470] sm:$0xff]
    %v3259 = vld [vmem:[#allocation7 + $0x478] sm:$0xff]
    %v3260 = vld [vmem:[#allocation7 + $0x480] sm:$0xff]
    %v3261 = vld [vmem:[#allocation7 + $0x488] sm:$0xff]
    %v3262 = vld [vmem:[#allocation7 + $0x490] sm:$0xff]
    %v3263 = vld [vmem:[#allocation7 + $0x498] sm:$0xff]
    %v3264 = vld [vmem:[#allocation7 + $0x4a0] sm:$0xff]
    %v3265 = vld [vmem:[#allocation7 + $0x4a8] sm:$0xff]
    %v3266 = vld [vmem:[#allocation7 + $0x4b0] sm:$0xff]
    %v3267 = vld [vmem:[#allocation7 + $0x4b8] sm:$0xff]
    %v3268 = vld [vmem:[#allocation7 + $0x4c0] sm:$0xff]
    %v3269 = vld [vmem:[#allocation7 + $0x4c8] sm:$0xff]
    %v3270 = vld [vmem:[#allocation7 + $0x4d0] sm:$0xff]
    %v3271 = vld [vmem:[#allocation7 + $0x4d8] sm:$0xff]
    %v3272 = vld [vmem:[#allocation7 + $0x4e0] sm:$0xff]
    %v3273 = vld [vmem:[#allocation7 + $0x4e8] sm:$0xff]
    %v3274 = vld [vmem:[#allocation7 + $0x4f0] sm:$0xff]
    %v3275 = vld [vmem:[#allocation7 + $0x4f8] sm:$0xff]
    %v3276 = vld [vmem:[#allocation7 + $0x500] sm:$0xff]
    %v3277 = vld [vmem:[#allocation7 + $0x508] sm:$0xff]
    %v3278 = vld [vmem:[#allocation7 + $0x510] sm:$0xff]
    %v3279 = vld [vmem:[#allocation7 + $0x518] sm:$0xff]
    %v3280 = vld [vmem:[#allocation7 + $0x520] sm:$0xff]
    %v3281 = vld [vmem:[#allocation7 + $0x528] sm:$0xff]
    %v3282 = vld [vmem:[#allocation7 + $0x530] sm:$0xff]
    %v3283 = vld [vmem:[#allocation7 + $0x538] sm:$0xff]
    %v3284 = vld [vmem:[#allocation7 + $0x540] sm:$0xff]
    %v3285 = vld [vmem:[#allocation7 + $0x548] sm:$0xff]
    %v3286 = vld [vmem:[#allocation7 + $0x550] sm:$0xff]
    %v3287 = vld [vmem:[#allocation7 + $0x558] sm:$0xff]
    %v3288 = vld [vmem:[#allocation7 + $0x560] sm:$0xff]
    %v3289 = vld [vmem:[#allocation7 + $0x568] sm:$0xff]
    %v3290 = vld [vmem:[#allocation7 + $0x570] sm:$0xff]
    %v3291 = vld [vmem:[#allocation7 + $0x578] sm:$0xff]
    %v3292 = vld [vmem:[#allocation7 + $0x580] sm:$0xff]
    %v3293 = vld [vmem:[#allocation7 + $0x588] sm:$0xff]
    %v3294 = vld [vmem:[#allocation7 + $0x590] sm:$0xff]
    %v3295 = vld [vmem:[#allocation7 + $0x598] sm:$0xff]
    %v3296 = vld [vmem:[#allocation7 + $0x5a0] sm:$0xff]
    %v3297 = vld [vmem:[#allocation7 + $0x5a8] sm:$0xff]
    %v3298 = vld [vmem:[#allocation7 + $0x5b0] sm:$0xff]
    %v3299 = vld [vmem:[#allocation7 + $0x5b8] sm:$0xff]
    %v3300 = vld [vmem:[#allocation7 + $0x5c0] sm:$0xff]
    %v3301 = vld [vmem:[#allocation7 + $0x5c8] sm:$0xff]
    %v3302 = vld [vmem:[#allocation7 + $0x5d0] sm:$0xff]
    %v3303 = vld [vmem:[#allocation7 + $0x5d8] sm:$0xff]
    %v3304 = vld [vmem:[#allocation7 + $0x5e0] sm:$0xff]
    %v3305 = vld [vmem:[#allocation7 + $0x5e8] sm:$0xff]
    %v3306 = vld [vmem:[#allocation7 + $0x5f0] sm:$0xff]
    %v3307 = vld [vmem:[#allocation7 + $0x5f8] sm:$0xff]
    %v3308 = vld [vmem:[#allocation7 + $0x600] sm:$0xff]
    %v3309 = vld [vmem:[#allocation7 + $0x608] sm:$0xff]
    %v3310 = vld [vmem:[#allocation7 + $0x610] sm:$0xff]
    %v3311 = vld [vmem:[#allocation7 + $0x618] sm:$0xff]
    %v3312 = vld [vmem:[#allocation7 + $0x620] sm:$0xff]
    %v3313 = vld [vmem:[#allocation7 + $0x628] sm:$0xff]
    %v3314 = vld [vmem:[#allocation7 + $0x630] sm:$0xff]
    %v3315 = vld [vmem:[#allocation7 + $0x638] sm:$0xff]
    %v3316 = vld [vmem:[#allocation7 + $0x640] sm:$0xff]
    %v3317 = vld [vmem:[#allocation7 + $0x648] sm:$0xff]
    %v3318 = vld [vmem:[#allocation7 + $0x650] sm:$0xff]
    %v3319 = vld [vmem:[#allocation7 + $0x658] sm:$0xff]
    %v3320 = vld [vmem:[#allocation7 + $0x660] sm:$0xff]
    %v3321 = vld [vmem:[#allocation7 + $0x668] sm:$0xff]
    %v3322 = vld [vmem:[#allocation7 + $0x670] sm:$0xff]
    %v3323 = vld [vmem:[#allocation7 + $0x678] sm:$0xff]
    %v3324 = vld [vmem:[#allocation7 + $0x680] sm:$0xff]
    %v3325 = vld [vmem:[#allocation7 + $0x688] sm:$0xff]
    %v3326 = vld [vmem:[#allocation7 + $0x690] sm:$0xff]
    %v3327 = vld [vmem:[#allocation7 + $0x698] sm:$0xff]
    %v3328 = vld [vmem:[#allocation7 + $0x6a0] sm:$0xff]
    %v3329 = vld [vmem:[#allocation7 + $0x6a8] sm:$0xff]
    %v3330 = vld [vmem:[#allocation7 + $0x6b0] sm:$0xff]
    %v3331 = vld [vmem:[#allocation7 + $0x6b8] sm:$0xff]
    %v3332 = vld [vmem:[#allocation7 + $0x6c0] sm:$0xff]
    %v3333 = vld [vmem:[#allocation7 + $0x6c8] sm:$0xff]
    %v3334 = vld [vmem:[#allocation7 + $0x6d0] sm:$0xff]
    %v3335 = vld [vmem:[#allocation7 + $0x6d8] sm:$0xff]
    %v3336 = vld [vmem:[#allocation7 + $0x6e0] sm:$0xff]
    %v3337 = vld [vmem:[#allocation7 + $0x6e8] sm:$0xff]
    %v3338 = vld [vmem:[#allocation7 + $0x6f0] sm:$0xff]
    %v3339 = vld [vmem:[#allocation7 + $0x6f8] sm:$0xff]
    %v3340 = vld [vmem:[#allocation7 + $0x700] sm:$0xff]
    %v3341 = vld [vmem:[#allocation7 + $0x708] sm:$0xff]
    %v3342 = vld [vmem:[#allocation7 + $0x710] sm:$0xff]
    %v3343 = vld [vmem:[#allocation7 + $0x718] sm:$0xff]
    %v3344 = vld [vmem:[#allocation7 + $0x720] sm:$0xff]
    %v3345 = vld [vmem:[#allocation7 + $0x728] sm:$0xff]
    %v3346 = vld [vmem:[#allocation7 + $0x730] sm:$0xff]
    %v3347 = vld [vmem:[#allocation7 + $0x738] sm:$0xff]
    %v3348 = vld [vmem:[#allocation7 + $0x740] sm:$0xff]
    %v3349 = vld [vmem:[#allocation7 + $0x748] sm:$0xff]
    %v3350 = vld [vmem:[#allocation7 + $0x750] sm:$0xff]
    %v3351 = vld [vmem:[#allocation7 + $0x758] sm:$0xff]
    %v3352 = vld [vmem:[#allocation7 + $0x760] sm:$0xff]
    %v3353 = vld [vmem:[#allocation7 + $0x768] sm:$0xff]
    %v3354 = vld [vmem:[#allocation7 + $0x770] sm:$0xff]
    %v3355 = vld [vmem:[#allocation7 + $0x778] sm:$0xff]
    %v3356 = vld [vmem:[#allocation7 + $0x780] sm:$0xff]
    %v3357 = vld [vmem:[#allocation7 + $0x788] sm:$0xff]
    %v3358 = vld [vmem:[#allocation7 + $0x790] sm:$0xff]
    %v3359 = vld [vmem:[#allocation7 + $0x798] sm:$0xff]
    %v3360 = vld [vmem:[#allocation7 + $0x7a0] sm:$0xff]
    %v3361 = vld [vmem:[#allocation7 + $0x7a8] sm:$0xff]
    %v3362 = vld [vmem:[#allocation7 + $0x7b0] sm:$0xff]
    %v3363 = vld [vmem:[#allocation7 + $0x7b8] sm:$0xff]
    %v3364 = vld [vmem:[#allocation7 + $0x7c0] sm:$0xff]
    %v3365 = vld [vmem:[#allocation7 + $0x7c8] sm:$0xff]
    %v3366 = vld [vmem:[#allocation7 + $0x7d0] sm:$0xff]
    %v3367 = vld [vmem:[#allocation7 + $0x7d8] sm:$0xff]
    %v3368 = vld [vmem:[#allocation7 + $0x7e0] sm:$0xff]
    %v3369 = vld [vmem:[#allocation7 + $0x7e8] sm:$0xff]
    %v3370 = vld [vmem:[#allocation7 + $0x7f0] sm:$0xff]
    %v3371 = vld [vmem:[#allocation7 + $0x7f8] sm:$0xff]
    %v3372 = vadd.f32 %v3108, %v3112
    %v3373 = vrot.slane %v3372, 4
    %v3374 = vadd.f32 %v3372, %v3373
    %v3375 = vrot.slane %v3374, 2
    %v3376 = vadd.f32 %v3374, %v3375
    %v3377 = vrot.slane %v3376, 1
    %v3378 = vadd.f32 %v3376, %v3377
    %v3379 = vadd.f32 %v3109, %v3113
    %v3380 = vrot.slane %v3379, 4
    %v3381 = vadd.f32 %v3379, %v3380
    %v3382 = vrot.slane %v3381, 2
    %v3383 = vadd.f32 %v3381, %v3382
    %v3384 = vrot.slane %v3383, 1
    %v3385 = vadd.f32 %v3383, %v3384
    %v3386 = vadd.f32 %v3110, %v3114
    %v3387 = vrot.slane %v3386, 4
    %v3388 = vadd.f32 %v3386, %v3387
    %v3389 = vrot.slane %v3388, 2
    %v3390 = vadd.f32 %v3388, %v3389
    %v3391 = vrot.slane %v3390, 1
    %v3392 = vadd.f32 %v3390, %v3391
    %v3393 = vadd.f32 %v3111, %v3115
    %v3394 = vrot.slane %v3393, 4
    %v3395 = vadd.f32 %v3393, %v3394
    %v3396 = vrot.slane %v3395, 2
    %v3397 = vadd.f32 %v3395, %v3396
    %v3398 = vrot.slane %v3397, 1
    %v3399 = vadd.f32 %v3397, %v3398
    %3400 = vmatprep.subr.mxu0 %v3177
    %3401 = vmatpush1.msra.mxu0 %v3176
    %3402 = vmatprep.subr.mxu0 %v3173
    %3403 = vmatpush1.msra.mxu0 %v3172
    %3404 = vmatprep.subr.mxu0 %v3169
    %3405 = vmatpush1.msra.mxu0 %v3168
    %3406 = vmatprep.subr.mxu0 %v3165
    %3407 = vmatpush1.msra.mxu0 %v3164
    %3408 = vmatprep.subr.mxu0 %v3161
    %3409 = vmatpush1.msra.mxu0 %v3160
    %3410 = vmatprep.subr.mxu0 %v3157
    %3411 = vmatpush1.msra.mxu0 %v3156
    %3412 = vmatprep.subr.mxu0 %v3153
    %3413 = vmatpush1.msra.mxu0 %v3152
    %3414 = vmatprep.subr.mxu0 %v3149
    %3415 = vmatpush1.msra.mxu0 %v3148
    %3416 = vmatprep.subr.mxu0 %v3145
    %3417 = vmatpush1.msra.mxu0 %v3144
    %3418 = vmatprep.subr.mxu0 %v3141
    %3419 = vmatpush1.msra.mxu0 %v3140
    %3420 = vmatprep.subr.mxu0 %v3137
    %3421 = vmatpush1.msra.mxu0 %v3136
    %3422 = vmatprep.subr.mxu0 %v3133
    %3423 = vmatpush1.msra.mxu0 %v3132
    %3424 = vmatprep.subr.mxu0 %v3129
    %3425 = vmatpush1.msra.mxu0 %v3128
    %3426 = vmatprep.subr.mxu0 %v3125
    %3427 = vmatpush1.msra.mxu0 %v3124
    %3428 = vmatprep.subr.mxu0 %v3121
    %3429 = vmatpush1.msra.mxu0 %v3120
    %3430 = vmatprep.subr.mxu0 %v3117
    %3431 = vmatpush1.msra.mxu0 %v3116
    %3432 = vmatprep.subr.mxu0 %v3241
    %3433 = vmatpush2.msra.mxu0 %v3240
    %3434 = vmatprep.subr.mxu0 %v3237
    %3435 = vmatpush2.msra.mxu0 %v3236
    %3436 = vmatprep.subr.mxu0 %v3233
    %3437 = vmatpush2.msra.mxu0 %v3232
    %3438 = vmatprep.subr.mxu0 %v3229
    %3439 = vmatpush2.msra.mxu0 %v3228
    %3440 = vmatprep.subr.mxu0 %v3225
    %3441 = vmatpush2.msra.mxu0 %v3224
    %3442 = vmatprep.subr.mxu0 %v3221
    %3443 = vmatpush2.msra.mxu0 %v3220
    %3444 = vmatprep.subr.mxu0 %v3217
    %3445 = vmatpush2.msra.mxu0 %v3216
    %3446 = vmatprep.subr.mxu0 %v3213
    %3447 = vmatpush2.msra.mxu0 %v3212
    %3448 = vmatprep.subr.mxu0 %v3209
    %3449 = vmatpush2.msra.mxu0 %v3208
    %3450 = vmatprep.subr.mxu0 %v3205
    %3451 = vmatpush2.msra.mxu0 %v3204
    %3452 = vmatprep.subr.mxu0 %v3201
    %3453 = vmatpush2.msra.mxu0 %v3200
    %3454 = vmatprep.subr.mxu0 %v3197
    %3455 = vmatpush2.msra.mxu0 %v3196
    %3456 = vmatprep.subr.mxu0 %v3193
    %3457 = vmatpush2.msra.mxu0 %v3192
    %3458 = vmatprep.subr.mxu0 %v3189
    %3459 = vmatpush2.msra.mxu0 %v3188
    %3460 = vmatprep.subr.mxu0 %v3185
    %3461 = vmatpush2.msra.mxu0 %v3184
    %3462 = vmatprep.subr.mxu0 %v3181
    %3463 = vmatpush2.msra.mxu0 %v3180
    %3464 = vmatprep.mubr.f32.mxu0 %v3385
    %3465 = vmatmul.mubr.f32.gmra.mxu0 %v3378
    %v3466 = vpop.f32.mrf.mxu0
    %v3467 = vadd.f32 0.0, %v3466
    %v3468 = vpop.f32.mrf.mxu0
    %v3469 = vadd.f32 0.0, %v3468
    %3470 = vdwg.mxu0
    %3471 = vmatprep.subr.mxu0 %v3305
    %3472 = vmatpush1.msra.mxu0 %v3304
    %3473 = vmatprep.subr.mxu0 %v3301
    %3474 = vmatpush1.msra.mxu0 %v3300
    %3475 = vmatprep.subr.mxu0 %v3297
    %3476 = vmatpush1.msra.mxu0 %v3296
    %3477 = vmatprep.subr.mxu0 %v3293
    %3478 = vmatpush1.msra.mxu0 %v3292
    %3479 = vmatprep.subr.mxu0 %v3289
    %3480 = vmatpush1.msra.mxu0 %v3288
    %3481 = vmatprep.subr.mxu0 %v3285
    %3482 = vmatpush1.msra.mxu0 %v3284
    %3483 = vmatprep.subr.mxu0 %v3281
    %3484 = vmatpush1.msra.mxu0 %v3280
    %3485 = vmatprep.subr.mxu0 %v3277
    %3486 = vmatpush1.msra.mxu0 %v3276
    %3487 = vmatprep.subr.mxu0 %v3273
    %3488 = vmatpush1.msra.mxu0 %v3272
    %3489 = vmatprep.subr.mxu0 %v3269
    %3490 = vmatpush1.msra.mxu0 %v3268
    %3491 = vmatprep.subr.mxu0 %v3265
    %3492 = vmatpush1.msra.mxu0 %v3264
    %3493 = vmatprep.subr.mxu0 %v3261
    %3494 = vmatpush1.msra.mxu0 %v3260
    %3495 = vmatprep.subr.mxu0 %v3257
    %3496 = vmatpush1.msra.mxu0 %v3256
    %3497 = vmatprep.subr.mxu0 %v3253
    %3498 = vmatpush1.msra.mxu0 %v3252
    %3499 = vmatprep.subr.mxu0 %v3249
    %3500 = vmatpush1.msra.mxu0 %v3248
    %3501 = vmatprep.subr.mxu0 %v3245
    %3502 = vmatpush1.msra.mxu0 %v3244
    %3503 = vmatprep.subr.mxu0 %v3369
    %3504 = vmatpush2.msra.mxu0 %v3368
    %3505 = vmatprep.subr.mxu0 %v3365
    %3506 = vmatpush2.msra.mxu0 %v3364
    %3507 = vmatprep.subr.mxu0 %v3361
    %3508 = vmatpush2.msra.mxu0 %v3360
    %3509 = vmatprep.subr.mxu0 %v3357
    %3510 = vmatpush2.msra.mxu0 %v3356
    %3511 = vmatprep.subr.mxu0 %v3353
    %3512 = vmatpush2.msra.mxu0 %v3352
    %3513 = vmatprep.subr.mxu0 %v3349
    %3514 = vmatpush2.msra.mxu0 %v3348
    %3515 = vmatprep.subr.mxu0 %v3345
    %3516 = vmatpush2.msra.mxu0 %v3344
    %3517 = vmatprep.subr.mxu0 %v3341
    %3518 = vmatpush2.msra.mxu0 %v3340
    %3519 = vmatprep.subr.mxu0 %v3337
    %3520 = vmatpush2.msra.mxu0 %v3336
    %3521 = vmatprep.subr.mxu0 %v3333
    %3522 = vmatpush2.msra.mxu0 %v3332
    %3523 = vmatprep.subr.mxu0 %v3329
    %3524 = vmatpush2.msra.mxu0 %v3328
    %3525 = vmatprep.subr.mxu0 %v3325
    %3526 = vmatpush2.msra.mxu0 %v3324
    %3527 = vmatprep.subr.mxu0 %v3321
    %3528 = vmatpush2.msra.mxu0 %v3320
    %3529 = vmatprep.subr.mxu0 %v3317
    %3530 = vmatpush2.msra.mxu0 %v3316
    %3531 = vmatprep.subr.mxu0 %v3313
    %3532 = vmatpush2.msra.mxu0 %v3312
    %3533 = vmatprep.subr.mxu0 %v3309
    %3534 = vmatpush2.msra.mxu0 %v3308
    %3535 = vmatprep.mubr.f32.mxu0 %v3399
    %3536 = vmatmul.mubr.f32.gmra.mxu0 %v3392
    %v3537 = vpop.f32.mrf.mxu0
    %v3538 = vadd.f32 %v3467, %v3537
    %v3539 = vpop.f32.mrf.mxu0
    %v3540 = vadd.f32 %v3469, %v3539
    %3541 = vdwg.mxu0
    %3542 = vmatprep.subr.mxu0 %v3179
    %3543 = vmatpush1.msra.mxu0 %v3178
    %3544 = vmatprep.subr.mxu0 %v3175
    %3545 = vmatpush1.msra.mxu0 %v3174
    %3546 = vmatprep.subr.mxu0 %v3171
    %3547 = vmatpush1.msra.mxu0 %v3170
    %3548 = vmatprep.subr.mxu0 %v3167
    %3549 = vmatpush1.msra.mxu0 %v3166
    %3550 = vmatprep.subr.mxu0 %v3163
    %3551 = vmatpush1.msra.mxu0 %v3162
    %3552 = vmatprep.subr.mxu0 %v3159
    %3553 = vmatpush1.msra.mxu0 %v3158
    %3554 = vmatprep.subr.mxu0 %v3155
    %3555 = vmatpush1.msra.mxu0 %v3154
    %3556 = vmatprep.subr.mxu0 %v3151
    %3557 = vmatpush1.msra.mxu0 %v3150
    %3558 = vmatprep.subr.mxu0 %v3147
    %3559 = vmatpush1.msra.mxu0 %v3146
    %3560 = vmatprep.subr.mxu0 %v3143
    %3561 = vmatpush1.msra.mxu0 %v3142
    %3562 = vmatprep.subr.mxu0 %v3139
    %3563 = vmatpush1.msra.mxu0 %v3138
    %3564 = vmatprep.subr.mxu0 %v3135
    %3565 = vmatpush1.msra.mxu0 %v3134
    %3566 = vmatprep.subr.mxu0 %v3131
    %3567 = vmatpush1.msra.mxu0 %v3130
    %3568 = vmatprep.subr.mxu0 %v3127
    %3569 = vmatpush1.msra.mxu0 %v3126
    %3570 = vmatprep.subr.mxu0 %v3123
    %3571 = vmatpush1.msra.mxu0 %v3122
    %3572 = vmatprep.subr.mxu0 %v3119
    %3573 = vmatpush1.msra.mxu0 %v3118
    %3574 = vmatprep.subr.mxu0 %v3243
    %3575 = vmatpush2.msra.mxu0 %v3242
    %3576 = vmatprep.subr.mxu0 %v3239
    %3577 = vmatpush2.msra.mxu0 %v3238
    %3578 = vmatprep.subr.mxu0 %v3235
    %3579 = vmatpush2.msra.mxu0 %v3234
    %3580 = vmatprep.subr.mxu0 %v3231
    %3581 = vmatpush2.msra.mxu0 %v3230
    %3582 = vmatprep.subr.mxu0 %v3227
    %3583 = vmatpush2.msra.mxu0 %v3226
    %3584 = vmatprep.subr.mxu0 %v3223
    %3585 = vmatpush2.msra.mxu0 %v3222
    %3586 = vmatprep.subr.mxu0 %v3219
    %3587 = vmatpush2.msra.mxu0 %v3218
    %3588 = vmatprep.subr.mxu0 %v3215
    %3589 = vmatpush2.msra.mxu0 %v3214
    %3590 = vmatprep.subr.mxu0 %v3211
    %3591 = vmatpush2.msra.mxu0 %v3210
    %3592 = vmatprep.subr.mxu0 %v3207
    %3593 = vmatpush2.msra.mxu0 %v3206
    %3594 = vmatprep.subr.mxu0 %v3203
    %3595 = vmatpush2.msra.mxu0 %v3202
    %3596 = vmatprep.subr.mxu0 %v3199
    %3597 = vmatpush2.msra.mxu0 %v3198
    %3598 = vmatprep.subr.mxu0 %v3195
    %3599 = vmatpush2.msra.mxu0 %v3194
    %3600 = vmatprep.subr.mxu0 %v3191
    %3601 = vmatpush2.msra.mxu0 %v3190
    %3602 = vmatprep.subr.mxu0 %v3187
    %3603 = vmatpush2.msra.mxu0 %v3186
    %3604 = vmatprep.subr.mxu0 %v3183
    %3605 = vmatpush2.msra.mxu0 %v3182
    %3606 = vmatprep.mubr.f32.mxu0 %v3385
    %3607 = vmatmul.mubr.f32.gmra.mxu0 %v3378
    %v3608 = vpop.f32.mrf.mxu0
    %v3609 = vadd.f32 0.0, %v3608
    %v3610 = vpop.f32.mrf.mxu0
    %v3611 = vadd.f32 0.0, %v3610
    %3612 = vdwg.mxu0
    %3613 = vmatprep.subr.mxu0 %v3307
    %3614 = vmatpush1.msra.mxu0 %v3306
    %3615 = vmatprep.subr.mxu0 %v3303
    %3616 = vmatpush1.msra.mxu0 %v3302
    %3617 = vmatprep.subr.mxu0 %v3299
    %3618 = vmatpush1.msra.mxu0 %v3298
    %3619 = vmatprep.subr.mxu0 %v3295
    %3620 = vmatpush1.msra.mxu0 %v3294
    %3621 = vmatprep.subr.mxu0 %v3291
    %3622 = vmatpush1.msra.mxu0 %v3290
    %3623 = vmatprep.subr.mxu0 %v3287
    %3624 = vmatpush1.msra.mxu0 %v3286
    %3625 = vmatprep.subr.mxu0 %v3283
    %3626 = vmatpush1.msra.mxu0 %v3282
    %3627 = vmatprep.subr.mxu0 %v3279
    %3628 = vmatpush1.msra.mxu0 %v3278
    %3629 = vmatprep.subr.mxu0 %v3275
    %3630 = vmatpush1.msra.mxu0 %v3274
    %3631 = vmatprep.subr.mxu0 %v3271
    %3632 = vmatpush1.msra.mxu0 %v3270
    %3633 = vmatprep.subr.mxu0 %v3267
    %3634 = vmatpush1.msra.mxu0 %v3266
    %3635 = vmatprep.subr.mxu0 %v3263
    %3636 = vmatpush1.msra.mxu0 %v3262
    %3637 = vmatprep.subr.mxu0 %v3259
    %3638 = vmatpush1.msra.mxu0 %v3258
    %3639 = vmatprep.subr.mxu0 %v3255
    %3640 = vmatpush1.msra.mxu0 %v3254
    %3641 = vmatprep.subr.mxu0 %v3251
    %3642 = vmatpush1.msra.mxu0 %v3250
    %3643 = vmatprep.subr.mxu0 %v3247
    %3644 = vmatpush1.msra.mxu0 %v3246
    %3645 = vmatprep.subr.mxu0 %v3371
    %3646 = vmatpush2.msra.mxu0 %v3370
    %3647 = vmatprep.subr.mxu0 %v3367
    %3648 = vmatpush2.msra.mxu0 %v3366
    %3649 = vmatprep.subr.mxu0 %v3363
    %3650 = vmatpush2.msra.mxu0 %v3362
    %3651 = vmatprep.subr.mxu0 %v3359
    %3652 = vmatpush2.msra.mxu0 %v3358
    %3653 = vmatprep.subr.mxu0 %v3355
    %3654 = vmatpush2.msra.mxu0 %v3354
    %3655 = vmatprep.subr.mxu0 %v3351
    %3656 = vmatpush2.msra.mxu0 %v3350
    %3657 = vmatprep.subr.mxu0 %v3347
    %3658 = vmatpush2.msra.mxu0 %v3346
    %3659 = vmatprep.subr.mxu0 %v3343
    %3660 = vmatpush2.msra.mxu0 %v3342
    %3661 = vmatprep.subr.mxu0 %v3339
    %3662 = vmatpush2.msra.mxu0 %v3338
    %3663 = vmatprep.subr.mxu0 %v3335
    %3664 = vmatpush2.msra.mxu0 %v3334
    %3665 = vmatprep.subr.mxu0 %v3331
    %3666 = vmatpush2.msra.mxu0 %v3330
    %3667 = vmatprep.subr.mxu0 %v3327
    %3668 = vmatpush2.msra.mxu0 %v3326
    %3669 = vmatprep.subr.mxu0 %v3323
    %3670 = vmatpush2.msra.mxu0 %v3322
    %3671 = vmatprep.subr.mxu0 %v3319
    %3672 = vmatpush2.msra.mxu0 %v3318
    %3673 = vmatprep.subr.mxu0 %v3315
    %3674 = vmatpush2.msra.mxu0 %v3314
    %3675 = vmatprep.subr.mxu0 %v3311
    %3676 = vmatpush2.msra.mxu0 %v3310
    %3677 = vmatprep.mubr.f32.mxu0 %v3399
    %3678 = vmatmul.mubr.f32.gmra.mxu0 %v3392
    %v3679 = vpop.f32.mrf.mxu0
    %v3680 = vadd.f32 %v3609, %v3679
    %v3681 = vpop.f32.mrf.mxu0
    %v3682 = vadd.f32 %v3611, %v3681
    %3683 = vdwg.mxu0
    %v3684 = vmul.f32 %v3538, 0.0009765625
    %v3685 = vmul.f32 %v3540, 0.0009765625
    %v3686 = vmul.f32 %v3680, 0.0009765625
    %v3687 = vmul.f32 %v3682, 0.0009765625
    %v3688 = vlaneseq
    %v3689 = vshrl.u32 %v3688, 7
    %v3690 = vsub.s32 0, %v3689
    %v3691 = vrot.slane %v3684, %v3690
    %v3692 = vlaneseq
    %v3693 = vshrl.u32 %v3692, 7
    %v3694 = vsub.s32 0, %v3693
    %v3695 = vrot.slane %v3685, %v3694
    %v3696 = vlaneseq
    %v3697 = vshrl.u32 %v3696, 7
    %v3698 = vsub.s32 0, %v3697
    %v3699 = vrot.slane %v3686, %v3698
    %v3700 = vlaneseq
    %v3701 = vshrl.u32 %v3700, 7
    %v3702 = vsub.s32 0, %v3701
    %v3703 = vrot.slane %v3687, %v3702
    %v3704 = vsub.f32 %v3108, %v3691
    %v3705 = vsub.f32 %v3109, %v3695
    %v3706 = vsub.f32 %v3110, %v3699
    %v3707 = vsub.f32 %v3111, %v3703
    %v3708 = vsub.f32 %v3112, %v3691
    %v3709 = vsub.f32 %v3113, %v3695
    %v3710 = vsub.f32 %v3114, %v3699
    %v3711 = vsub.f32 %v3115, %v3703
    %v3712 = vmul.f32 %v3704, %v3704
    %v3713 = vmul.f32 %v3705, %v3705
    %v3714 = vmul.f32 %v3706, %v3706
    %v3715 = vmul.f32 %v3707, %v3707
    %v3716 = vmul.f32 %v3708, %v3708
    %v3717 = vmul.f32 %v3709, %v3709
    %v3718 = vmul.f32 %v3710, %v3710
    %v3719 = vmul.f32 %v3711, %v3711
    %v3720 = vadd.f32 %v3712, %v3716
    %v3721 = vrot.slane %v3720, 4
    %v3722 = vadd.f32 %v3720, %v3721
    %v3723 = vrot.slane %v3722, 2
    %v3724 = vadd.f32 %v3722, %v3723
    %v3725 = vrot.slane %v3724, 1
    %v3726 = vadd.f32 %v3724, %v3725
    %v3727 = vadd.f32 %v3713, %v3717
    %v3728 = vrot.slane %v3727, 4
    %v3729 = vadd.f32 %v3727, %v3728
    %v3730 = vrot.slane %v3729, 2
    %v3731 = vadd.f32 %v3729, %v3730
    %v3732 = vrot.slane %v3731, 1
    %v3733 = vadd.f32 %v3731, %v3732
    %v3734 = vadd.f32 %v3714, %v3718
    %v3735 = vrot.slane %v3734, 4
    %v3736 = vadd.f32 %v3734, %v3735
    %v3737 = vrot.slane %v3736, 2
    %v3738 = vadd.f32 %v3736, %v3737
    %v3739 = vrot.slane %v3738, 1
    %v3740 = vadd.f32 %v3738, %v3739
    %v3741 = vadd.f32 %v3715, %v3719
    %v3742 = vrot.slane %v3741, 4
    %v3743 = vadd.f32 %v3741, %v3742
    %v3744 = vrot.slane %v3743, 2
    %v3745 = vadd.f32 %v3743, %v3744
    %v3746 = vrot.slane %v3745, 1
    %v3747 = vadd.f32 %v3745, %v3746
    %3748 = vmatprep.subr.mxu0 %v3177
    %3749 = vmatpush1.msra.mxu0 %v3176
    %3750 = vmatprep.subr.mxu0 %v3173
    %3751 = vmatpush1.msra.mxu0 %v3172
    %3752 = vmatprep.subr.mxu0 %v3169
    %3753 = vmatpush1.msra.mxu0 %v3168
    %3754 = vmatprep.subr.mxu0 %v3165
    %3755 = vmatpush1.msra.mxu0 %v3164
    %3756 = vmatprep.subr.mxu0 %v3161
    %3757 = vmatpush1.msra.mxu0 %v3160
    %3758 = vmatprep.subr.mxu0 %v3157
    %3759 = vmatpush1.msra.mxu0 %v3156
    %3760 = vmatprep.subr.mxu0 %v3153
    %3761 = vmatpush1.msra.mxu0 %v3152
    %3762 = vmatprep.subr.mxu0 %v3149
    %3763 = vmatpush1.msra.mxu0 %v3148
    %3764 = vmatprep.subr.mxu0 %v3145
    %3765 = vmatpush1.msra.mxu0 %v3144
    %3766 = vmatprep.subr.mxu0 %v3141
    %3767 = vmatpush1.msra.mxu0 %v3140
    %3768 = vmatprep.subr.mxu0 %v3137
    %3769 = vmatpush1.msra.mxu0 %v3136
    %3770 = vmatprep.subr.mxu0 %v3133
    %3771 = vmatpush1.msra.mxu0 %v3132
    %3772 = vmatprep.subr.mxu0 %v3129
    %3773 = vmatpush1.msra.mxu0 %v3128
    %3774 = vmatprep.subr.mxu0 %v3125
    %3775 = vmatpush1.msra.mxu0 %v3124
    %3776 = vmatprep.subr.mxu0 %v3121
    %3777 = vmatpush1.msra.mxu0 %v3120
    %3778 = vmatprep.subr.mxu0 %v3117
    %3779 = vmatpush1.msra.mxu0 %v3116
    %3780 = vmatprep.subr.mxu0 %v3241
    %3781 = vmatpush2.msra.mxu0 %v3240
    %3782 = vmatprep.subr.mxu0 %v3237
    %3783 = vmatpush2.msra.mxu0 %v3236
    %3784 = vmatprep.subr.mxu0 %v3233
    %3785 = vmatpush2.msra.mxu0 %v3232
    %3786 = vmatprep.subr.mxu0 %v3229
    %3787 = vmatpush2.msra.mxu0 %v3228
    %3788 = vmatprep.subr.mxu0 %v3225
    %3789 = vmatpush2.msra.mxu0 %v3224
    %3790 = vmatprep.subr.mxu0 %v3221
    %3791 = vmatpush2.msra.mxu0 %v3220
    %3792 = vmatprep.subr.mxu0 %v3217
    %3793 = vmatpush2.msra.mxu0 %v3216
    %3794 = vmatprep.subr.mxu0 %v3213
    %3795 = vmatpush2.msra.mxu0 %v3212
    %3796 = vmatprep.subr.mxu0 %v3209
    %3797 = vmatpush2.msra.mxu0 %v3208
    %3798 = vmatprep.subr.mxu0 %v3205
    %3799 = vmatpush2.msra.mxu0 %v3204
    %3800 = vmatprep.subr.mxu0 %v3201
    %3801 = vmatpush2.msra.mxu0 %v3200
    %3802 = vmatprep.subr.mxu0 %v3197
    %3803 = vmatpush2.msra.mxu0 %v3196
    %3804 = vmatprep.subr.mxu0 %v3193
    %3805 = vmatpush2.msra.mxu0 %v3192
    %3806 = vmatprep.subr.mxu0 %v3189
    %3807 = vmatpush2.msra.mxu0 %v3188
    %3808 = vmatprep.subr.mxu0 %v3185
    %3809 = vmatpush2.msra.mxu0 %v3184
    %3810 = vmatprep.subr.mxu0 %v3181
    %3811 = vmatpush2.msra.mxu0 %v3180
    %3812 = vmatprep.mubr.f32.mxu0 %v3733
    %3813 = vmatmul.mubr.f32.gmra.mxu0 %v3726
    %v3814 = vpop.f32.mrf.mxu0
    %v3815 = vadd.f32 0.0, %v3814
    %v3816 = vpop.f32.mrf.mxu0
    %v3817 = vadd.f32 0.0, %v3816
    %3818 = vdwg.mxu0
    %3819 = vmatprep.subr.mxu0 %v3305
    %3820 = vmatpush1.msra.mxu0 %v3304
    %3821 = vmatprep.subr.mxu0 %v3301
    %3822 = vmatpush1.msra.mxu0 %v3300
    %3823 = vmatprep.subr.mxu0 %v3297
    %3824 = vmatpush1.msra.mxu0 %v3296
    %3825 = vmatprep.subr.mxu0 %v3293
    %3826 = vmatpush1.msra.mxu0 %v3292
    %3827 = vmatprep.subr.mxu0 %v3289
    %3828 = vmatpush1.msra.mxu0 %v3288
    %3829 = vmatprep.subr.mxu0 %v3285
    %3830 = vmatpush1.msra.mxu0 %v3284
    %3831 = vmatprep.subr.mxu0 %v3281
    %3832 = vmatpush1.msra.mxu0 %v3280
    %3833 = vmatprep.subr.mxu0 %v3277
    %3834 = vmatpush1.msra.mxu0 %v3276
    %3835 = vmatprep.subr.mxu0 %v3273
    %3836 = vmatpush1.msra.mxu0 %v3272
    %3837 = vmatprep.subr.mxu0 %v3269
    %3838 = vmatpush1.msra.mxu0 %v3268
    %3839 = vmatprep.subr.mxu0 %v3265
    %3840 = vmatpush1.msra.mxu0 %v3264
    %3841 = vmatprep.subr.mxu0 %v3261
    %3842 = vmatpush1.msra.mxu0 %v3260
    %3843 = vmatprep.subr.mxu0 %v3257
    %3844 = vmatpush1.msra.mxu0 %v3256
    %3845 = vmatprep.subr.mxu0 %v3253
    %3846 = vmatpush1.msra.mxu0 %v3252
    %3847 = vmatprep.subr.mxu0 %v3249
    %3848 = vmatpush1.msra.mxu0 %v3248
    %3849 = vmatprep.subr.mxu0 %v3245
    %3850 = vmatpush1.msra.mxu0 %v3244
    %3851 = vmatprep.subr.mxu0 %v3369
    %3852 = vmatpush2.msra.mxu0 %v3368
    %3853 = vmatprep.subr.mxu0 %v3365
    %3854 = vmatpush2.msra.mxu0 %v3364
    %3855 = vmatprep.subr.mxu0 %v3361
    %3856 = vmatpush2.msra.mxu0 %v3360
    %3857 = vmatprep.subr.mxu0 %v3357
    %3858 = vmatpush2.msra.mxu0 %v3356
    %3859 = vmatprep.subr.mxu0 %v3353
    %3860 = vmatpush2.msra.mxu0 %v3352
    %3861 = vmatprep.subr.mxu0 %v3349
    %3862 = vmatpush2.msra.mxu0 %v3348
    %3863 = vmatprep.subr.mxu0 %v3345
    %3864 = vmatpush2.msra.mxu0 %v3344
    %3865 = vmatprep.subr.mxu0 %v3341
    %3866 = vmatpush2.msra.mxu0 %v3340
    %3867 = vmatprep.subr.mxu0 %v3337
    %3868 = vmatpush2.msra.mxu0 %v3336
    %3869 = vmatprep.subr.mxu0 %v3333
    %3870 = vmatpush2.msra.mxu0 %v3332
    %3871 = vmatprep.subr.mxu0 %v3329
    %3872 = vmatpush2.msra.mxu0 %v3328
    %3873 = vmatprep.subr.mxu0 %v3325
    %3874 = vmatpush2.msra.mxu0 %v3324
    %3875 = vmatprep.subr.mxu0 %v3321
    %3876 = vmatpush2.msra.mxu0 %v3320
    %3877 = vmatprep.subr.mxu0 %v3317
    %3878 = vmatpush2.msra.mxu0 %v3316
    %3879 = vmatprep.subr.mxu0 %v3313
    %3880 = vmatpush2.msra.mxu0 %v3312
    %3881 = vmatprep.subr.mxu0 %v3309
    %3882 = vmatpush2.msra.mxu0 %v3308
    %3883 = vmatprep.mubr.f32.mxu0 %v3747
    %3884 = vmatmul.mubr.f32.gmra.mxu0 %v3740
    %v3885 = vpop.f32.mrf.mxu0
    %v3886 = vadd.f32 %v3815, %v3885
    %v3887 = vpop.f32.mrf.mxu0
    %v3888 = vadd.f32 %v3817, %v3887
    %3889 = vdwg.mxu0
    %3890 = vmatprep.subr.mxu0 %v3179
    %3891 = vmatpush1.msra.mxu0 %v3178
    %3892 = vmatprep.subr.mxu0 %v3175
    %3893 = vmatpush1.msra.mxu0 %v3174
    %3894 = vmatprep.subr.mxu0 %v3171
    %3895 = vmatpush1.msra.mxu0 %v3170
    %3896 = vmatprep.subr.mxu0 %v3167
    %3897 = vmatpush1.msra.mxu0 %v3166
    %3898 = vmatprep.subr.mxu0 %v3163
    %3899 = vmatpush1.msra.mxu0 %v3162
    %3900 = vmatprep.subr.mxu0 %v3159
    %3901 = vmatpush1.msra.mxu0 %v3158
    %3902 = vmatprep.subr.mxu0 %v3155
    %3903 = vmatpush1.msra.mxu0 %v3154
    %3904 = vmatprep.subr.mxu0 %v3151
    %3905 = vmatpush1.msra.mxu0 %v3150
    %3906 = vmatprep.subr.mxu0 %v3147
    %3907 = vmatpush1.msra.mxu0 %v3146
    %3908 = vmatprep.subr.mxu0 %v3143
    %3909 = vmatpush1.msra.mxu0 %v3142
    %3910 = vmatprep.subr.mxu0 %v3139
    %3911 = vmatpush1.msra.mxu0 %v3138
    %3912 = vmatprep.subr.mxu0 %v3135
    %3913 = vmatpush1.msra.mxu0 %v3134
    %3914 = vmatprep.subr.mxu0 %v3131
    %3915 = vmatpush1.msra.mxu0 %v3130
    %3916 = vmatprep.subr.mxu0 %v3127
    %3917 = vmatpush1.msra.mxu0 %v3126
    %3918 = vmatprep.subr.mxu0 %v3123
    %3919 = vmatpush1.msra.mxu0 %v3122
    %3920 = vmatprep.subr.mxu0 %v3119
    %3921 = vmatpush1.msra.mxu0 %v3118
    %3922 = vmatprep.subr.mxu0 %v3243
    %3923 = vmatpush2.msra.mxu0 %v3242
    %3924 = vmatprep.subr.mxu0 %v3239
    %3925 = vmatpush2.msra.mxu0 %v3238
    %3926 = vmatprep.subr.mxu0 %v3235
    %3927 = vmatpush2.msra.mxu0 %v3234
    %3928 = vmatprep.subr.mxu0 %v3231
    %3929 = vmatpush2.msra.mxu0 %v3230
    %3930 = vmatprep.subr.mxu0 %v3227
    %3931 = vmatpush2.msra.mxu0 %v3226
    %3932 = vmatprep.subr.mxu0 %v3223
    %3933 = vmatpush2.msra.mxu0 %v3222
    %3934 = vmatprep.subr.mxu0 %v3219
    %3935 = vmatpush2.msra.mxu0 %v3218
    %3936 = vmatprep.subr.mxu0 %v3215
    %3937 = vmatpush2.msra.mxu0 %v3214
    %3938 = vmatprep.subr.mxu0 %v3211
    %3939 = vmatpush2.msra.mxu0 %v3210
    %3940 = vmatprep.subr.mxu0 %v3207
    %3941 = vmatpush2.msra.mxu0 %v3206
    %3942 = vmatprep.subr.mxu0 %v3203
    %3943 = vmatpush2.msra.mxu0 %v3202
    %3944 = vmatprep.subr.mxu0 %v3199
    %3945 = vmatpush2.msra.mxu0 %v3198
    %3946 = vmatprep.subr.mxu0 %v3195
    %3947 = vmatpush2.msra.mxu0 %v3194
    %3948 = vmatprep.subr.mxu0 %v3191
    %3949 = vmatpush2.msra.mxu0 %v3190
    %3950 = vmatprep.subr.mxu0 %v3187
    %3951 = vmatpush2.msra.mxu0 %v3186
    %3952 = vmatprep.subr.mxu0 %v3183
    %3953 = vmatpush2.msra.mxu0 %v3182
    %3954 = vmatprep.mubr.f32.mxu0 %v3733
    %3955 = vmatmul.mubr.f32.gmra.mxu0 %v3726
    %v3956 = vpop.f32.mrf.mxu0
    %v3957 = vadd.f32 0.0, %v3956
    %v3958 = vpop.f32.mrf.mxu0
    %v3959 = vadd.f32 0.0, %v3958
    %3960 = vdwg.mxu0
    %3961 = vmatprep.subr.mxu0 %v3307
    %3962 = vmatpush1.msra.mxu0 %v3306
    %3963 = vmatprep.subr.mxu0 %v3303
    %3964 = vmatpush1.msra.mxu0 %v3302
    %3965 = vmatprep.subr.mxu0 %v3299
    %3966 = vmatpush1.msra.mxu0 %v3298
    %3967 = vmatprep.subr.mxu0 %v3295
    %3968 = vmatpush1.msra.mxu0 %v3294
    %3969 = vmatprep.subr.mxu0 %v3291
    %3970 = vmatpush1.msra.mxu0 %v3290
    %3971 = vmatprep.subr.mxu0 %v3287
    %3972 = vmatpush1.msra.mxu0 %v3286
    %3973 = vmatprep.subr.mxu0 %v3283
    %3974 = vmatpush1.msra.mxu0 %v3282
    %3975 = vmatprep.subr.mxu0 %v3279
    %3976 = vmatpush1.msra.mxu0 %v3278
    %3977 = vmatprep.subr.mxu0 %v3275
    %3978 = vmatpush1.msra.mxu0 %v3274
    %3979 = vmatprep.subr.mxu0 %v3271
    %3980 = vmatpush1.msra.mxu0 %v3270
    %3981 = vmatprep.subr.mxu0 %v3267
    %3982 = vmatpush1.msra.mxu0 %v3266
    %3983 = vmatprep.subr.mxu0 %v3263
    %3984 = vmatpush1.msra.mxu0 %v3262
    %3985 = vmatprep.subr.mxu0 %v3259
    %3986 = vmatpush1.msra.mxu0 %v3258
    %3987 = vmatprep.subr.mxu0 %v3255
    %3988 = vmatpush1.msra.mxu0 %v3254
    %3989 = vmatprep.subr.mxu0 %v3251
    %3990 = vmatpush1.msra.mxu0 %v3250
    %3991 = vmatprep.subr.mxu0 %v3247
    %3992 = vmatpush1.msra.mxu0 %v3246
    %3993 = vmatprep.subr.mxu0 %v3371
    %3994 = vmatpush2.msra.mxu0 %v3370
    %3995 = vmatprep.subr.mxu0 %v3367
    %3996 = vmatpush2.msra.mxu0 %v3366
    %3997 = vmatprep.subr.mxu0 %v3363
    %3998 = vmatpush2.msra.mxu0 %v3362
    %3999 = vmatprep.subr.mxu0 %v3359
    %4000 = vmatpush2.msra.mxu0 %v3358
    %4001 = vmatprep.subr.mxu0 %v3355
    %4002 = vmatpush2.msra.mxu0 %v3354
    %4003 = vmatprep.subr.mxu0 %v3351
    %4004 = vmatpush2.msra.mxu0 %v3350
    %4005 = vmatprep.subr.mxu0 %v3347
    %4006 = vmatpush2.msra.mxu0 %v3346
    %4007 = vmatprep.subr.mxu0 %v3343
    %4008 = vmatpush2.msra.mxu0 %v3342
    %4009 = vmatprep.subr.mxu0 %v3339
    %4010 = vmatpush2.msra.mxu0 %v3338
    %4011 = vmatprep.subr.mxu0 %v3335
    %4012 = vmatpush2.msra.mxu0 %v3334
    %4013 = vmatprep.subr.mxu0 %v3331
    %4014 = vmatpush2.msra.mxu0 %v3330
    %4015 = vmatprep.subr.mxu0 %v3327
    %4016 = vmatpush2.msra.mxu0 %v3326
    %4017 = vmatprep.subr.mxu0 %v3323
    %4018 = vmatpush2.msra.mxu0 %v3322
    %4019 = vmatprep.subr.mxu0 %v3319
    %4020 = vmatpush2.msra.mxu0 %v3318
    %4021 = vmatprep.subr.mxu0 %v3315
    %4022 = vmatpush2.msra.mxu0 %v3314
    %4023 = vmatprep.subr.mxu0 %v3311
    %4024 = vmatpush2.msra.mxu0 %v3310
    %4025 = vmatprep.mubr.f32.mxu0 %v3747
    %4026 = vmatmul.mubr.f32.gmra.mxu0 %v3740
    %v4027 = vpop.f32.mrf.mxu0
    %v4028 = vadd.f32 %v3957, %v4027
    %v4029 = vpop.f32.mrf.mxu0
    %v4030 = vadd.f32 %v3959, %v4029
    %4031 = vdwg.mxu0
    %v4032 = vmul.f32 %v3886, 0.0009765625
    %v4033 = vmul.f32 %v3888, 0.0009765625
    %v4034 = vmul.f32 %v4028, 0.0009765625
    %v4035 = vmul.f32 %v4030, 0.0009765625
    %v4036 = vadd.f32 %v4032, 1e-05
    %v4037 = vadd.f32 %v4033, 1e-05
    %v4038 = vadd.f32 %v4034, 1e-05
    %v4039 = vadd.f32 %v4035, 1e-05
    %v4040 = vrsqrt.pop %v4036
    %v4041 = vrsqrt.pop %v4037
    %v4042 = vrsqrt.pop %v4038
    %v4043 = vrsqrt.pop %v4039
    %v4044 = vld [vmem:[#allocation8] sm:$0xf]
    %v4046 = vlaneseq
    %v4047 = vshrl.u32 %v4046, 7
    %v4048 = vsub.s32 0, %v4047
    %v4049 = vrot.slane %v4044, %v4048
    %v4050 = vlaneseq
    %v4051 = vshrl.u32 %v4050, 7
    %v4052 = vsub.s32 1, %v4051
    %v4053 = vrot.slane %v4044, %v4052
    %v4054 = vlaneseq
    %v4055 = vshrl.u32 %v4054, 7
    %v4056 = vsub.s32 2, %v4055
    %v4057 = vrot.slane %v4044, %v4056
    %v4058 = vlaneseq
    %v4059 = vshrl.u32 %v4058, 7
    %v4060 = vsub.s32 3, %v4059
    %v4061 = vrot.slane %v4044, %v4060
    %v4066 = vmul.f32 %v4040, %v4049
    %v4067 = vmul.f32 %v4041, %v4053
    %v4068 = vmul.f32 %v4042, %v4057
    %v4069 = vmul.f32 %v4043, %v4061
    %v4070 = vlaneseq
    %v4071 = vshrl.u32 %v4070, 7
    %v4072 = vsub.s32 0, %v4071
    %v4073 = vrot.slane %v4066, %v4072
    %v4074 = vlaneseq
    %v4075 = vshrl.u32 %v4074, 7
    %v4076 = vsub.s32 0, %v4075
    %v4077 = vrot.slane %v4067, %v4076
    %v4078 = vlaneseq
    %v4079 = vshrl.u32 %v4078, 7
    %v4080 = vsub.s32 0, %v4079
    %v4081 = vrot.slane %v4068, %v4080
    %v4082 = vlaneseq
    %v4083 = vshrl.u32 %v4082, 7
    %v4084 = vsub.s32 0, %v4083
    %v4085 = vrot.slane %v4069, %v4084
    %v4086 = vmul.f32 %v3704, %v4073
    %v4087 = vmul.f32 %v3705, %v4077
    %v4088 = vmul.f32 %v3706, %v4081
    %v4089 = vmul.f32 %v3707, %v4085
    %v4090 = vmul.f32 %v3708, %v4073
    %v4091 = vmul.f32 %v3709, %v4077
    %v4092 = vmul.f32 %v3710, %v4081
    %v4093 = vmul.f32 %v3711, %v4085
    %v4094 = vld [vmem:[#allocation10] sm:$0xf]
    %v4096 = vlaneseq
    %v4097 = vshrl.u32 %v4096, 7
    %v4098 = vsub.s32 0, %v4097
    %v4099 = vrot.slane %v4094, %v4098
    %v4100 = vlaneseq
    %v4101 = vshrl.u32 %v4100, 7
    %v4102 = vsub.s32 1, %v4101
    %v4103 = vrot.slane %v4094, %v4102
    %v4104 = vlaneseq
    %v4105 = vshrl.u32 %v4104, 7
    %v4106 = vsub.s32 2, %v4105
    %v4107 = vrot.slane %v4094, %v4106
    %v4108 = vlaneseq
    %v4109 = vshrl.u32 %v4108, 7
    %v4110 = vsub.s32 3, %v4109
    %v4111 = vrot.slane %v4094, %v4110
    %v4116 = vadd.f32 %v4086, %v4099
    %v4117 = vadd.f32 %v4087, %v4103
    %v4118 = vadd.f32 %v4088, %v4107
    %v4119 = vadd.f32 %v4089, %v4111
    %v4120 = vadd.f32 %v4090, %v4099
    %v4121 = vadd.f32 %v4091, %v4103
    %v4122 = vadd.f32 %v4092, %v4107
    %v4123 = vadd.f32 %v4093, %v4111
    %v4124 = vmax.f32 %v4116, 0.0
    %v4125 = vmax.f32 %v4117, 0.0
    %v4126 = vmax.f32 %v4118, 0.0
    %v4127 = vmax.f32 %v4119, 0.0
    %v4128 = vmax.f32 %v4120, 0.0
    %v4129 = vmax.f32 %v4121, 0.0
    %v4130 = vmax.f32 %v4122, 0.0
    %v4131 = vmax.f32 %v4123, 0.0
    %4132 = vst [vmem:[#allocation11] sm:$0xff] %v4124
    %4133 = vst [vmem:[#allocation11 + $0x8] sm:$0xff] %v4125
    %4134 = vst [vmem:[#allocation11 + $0x10] sm:$0xff] %v4126
    %4135 = vst [vmem:[#allocation11 + $0x18] sm:$0xff] %v4127
    %4136 = vst [vmem:[#allocation11 + $0x20] sm:$0xff] %v4128
    %4137 = vst [vmem:[#allocation11 + $0x28] sm:$0xff] %v4129
    %4138 = vst [vmem:[#allocation11 + $0x30] sm:$0xff] %v4130
    %4139 = vst [vmem:[#allocation11 + $0x38] sm:$0xff] %v4131
    // Predicated region
    $region42: #{tpu_custom_call.1} parent=1 // pred_check
      _
    $region43: #{tpu_custom_call.1} parent=1 // pred_check_branch
      %4141 = sbr.rel (0) target = $region45
    $region44: #{tpu_custom_call.1} parent=1 // pred_region
      %s4143 = ssub.s32 1024, 1024
      %4144 = vsyncadd [#allocation4], %s4143
      %s4145 = sshll.u32 [#allocation11], 4
      %s4146 = int_to_ptr.vmem [resolvable:$true] %s4145
      %4151 = dma.vmem_to_hbm [thread:$0]  %s4146, 1024, %s5, [#allocation4], 512, 512, 32
    $region45: #{tpu_custom_call.1} parent=1 // pred_fallthru
      _
    // Predicated region
    $region46: #{tpu_custom_call.1} parent=1 // pred_check
      _
    $region47: #{tpu_custom_call.1} parent=1 // pred_check_branch
      %4153 = sbr.rel (0) target = $region49
    $region48: #{tpu_custom_call.1} parent=1 // pred_region
      %4154 = dma.done [#allocation4], 1024
    $region49: #{tpu_custom_call.1} parent=1 // pred_fallthru
      _
    %4155 = vsyncpa [#allocation3], 1
    %4156 = vsyncpa [#allocation6], 1
    %4157 = vsyncpa [#allocation9], 1
    %4158 = vsyncpa [#allocation4], 1

</llo_original>
